<compile_context>
chip_gen: v7x
topology: tpu7x:2x2x1
jax: 0.10.0
libtpu: 0.0.40
codegen_flags: <defaults>
</compile_context>

<pallas_src>
import functools
import math

import jax
import jax.numpy as jnp
from jax.experimental import pallas as pl
from jax.experimental.pallas import tpu as pltpu


_T_SUB = 8  # timesteps per scan sub-tile (one full sublane group)


def _silu(x):
    # exact EUP reciprocal on the residual path; approx=True is a further
    # (small, systematic) speed/accuracy trade if tolerance allows.
    return x * pl.reciprocal(1.0 + jnp.exp(-x))


def _softplus(x):
    # overflow-safe softplus
    return jnp.where(x > 20.0, x, jnp.log(1.0 + jnp.exp(jnp.minimum(x, 20.0))))


def mamba_block_kernel(h_ref, r_ref, normw_ref, wx_ref, wz_ref, convw_ref,
                       convb_ref, wxp_ref, wdtp_ref, dtb_ref, AT_ref,
                       Dp_ref, wout_ref,
                       h_out_ref, r_out_ref,
                       xpad_scr, tail_scr, hstate_scr,
                       dt_scr, u_scr, bc_scr, y_scr,
                       *, add_residual_to_out, scan_exp_bf16):
    Lt, D = h_ref.shape
    K, E = convw_ref.shape            # conv kernel size, d_inner
    S = AT_ref.shape[0]               # d_state
    two_s = 2 * S
    r_pad = wxp_ref.shape[1] - two_s  # padded dt_rank (multiple of 128)
    eps = 1e-5
    f32 = jnp.float32
    bf16 = jnp.bfloat16

    l_idx = pl.program_id(1)

    @pl.when(l_idx == 0)
    def _():                          # new sequence: reset carried state
        hstate_scr[...] = jnp.zeros_like(hstate_scr)
        tail_scr[...] = jnp.zeros_like(tail_scr)

    h_in = h_ref[...]                 # (Lt, D)
    r_in = r_ref[...]

    # Block: residual = hidden + residual ; hidden = RMSNorm(residual)
    res_new = h_in + r_in
    var = jnp.mean(res_new * res_new, axis=-1, keepdims=True)
    hn = res_new * jax.lax.rsqrt(var + eps) * normw_ref[...]

    # in_proj split into two lane-dense matmuls (bf16 MXU, f32 accumulate)
    hn_b = hn.astype(bf16)
    x = jnp.dot(hn_b, wx_ref[...], preferred_element_type=f32)   # (Lt, E)
    z = jnp.dot(hn_b, wz_ref[...], preferred_element_type=f32)   # (Lt, E)

    # causal depthwise conv1d: previous chunk's K-1 tail carried in scratch
    xpad_scr[0:K - 1, :] = tail_scr[...]
    xpad_scr[K - 1:K - 1 + Lt, :] = x
    tail_scr[...] = x[Lt - (K - 1):, :]
    acc = jnp.zeros((Lt, E), f32)
    for k in range(K):                # K == 4, static unroll, shifted reads
        acc = acc + xpad_scr[k:k + Lt, :] * convw_ref[k:k + 1, :]
    x_c = _silu(acc + convb_ref[...])                            # (Lt, E)

    # fused x_proj [dt_low | B | C]: one lane-dense matmul, then the small
    # low-rank dt_proj (Lt, R_pad) @ (R_pad, E).  B|C kept as one 128-wide
    # lane-dense slab.
    x_b = x_c.astype(bf16)
    xdbl = jnp.dot(x_b, wxp_ref[...], preferred_element_type=f32)  # (Lt, Rp+2S)
    dt_low = xdbl[:, 0:r_pad]                                      # (Lt, Rp)
    dt = _softplus(jnp.dot(dt_low.astype(bf16), wdtp_ref[...],
                           preferred_element_type=f32) + dtb_ref[...])
    dt_scr[...] = dt
    u_scr[...] = dt * x_c
    bc_scr[...] = xdbl[:, r_pad:]                                  # (Lt, 2S)

    A_T = AT_ref[...]                 # (S, E) = -exp(A_log).T  (precomputed)
    if scan_exp_bf16:                 # v6e/v7x only: bf16 EUP for the dA exp
        A_T = A_T.astype(bf16)

    n_sub = Lt // _T_SUB

    # sequential selective scan, 8 timesteps per fori iteration; state carried
    # across chunks in hstate_scr.
    def subtile_body(j, h):
        t0 = pl.multiple_of(j * _T_SUB, _T_SUB)
        dt_sub = dt_scr[pl.ds(t0, _T_SUB), :]      # (8, E)  aligned loads
        u_sub = u_scr[pl.ds(t0, _T_SUB), :]        # (8, E)
        bc_sub = bc_scr[pl.ds(t0, _T_SUB), :]      # (8, 2S)
        bc_t = bc_sub.T                            # (2S, 8) one small XLU xpose
        b_t = bc_t[0:S, :]                         # (S, 8)
        c_t = bc_t[S:, :]                          # (S, 8)

        # Hoisted off the loop-carried recurrence: dA (EUP exp) and dBu
        # (VPU broadcast outer product) for all 8 steps are independent of h,
        # so the scheduler overlaps them with the serial chain below.
        # No MXU ops in the scan.
        if scan_exp_bf16:
            dA = [jnp.exp(A_T * dt_sub[t:t + 1, :].astype(jnp.bfloat16))
                  .astype(f32) for t in range(_T_SUB)]
        else:
            dA = [jnp.exp(A_T * dt_sub[t:t + 1, :]) for t in range(_T_SUB)]
        dBu = [b_t[:, t:t + 1] * u_sub[t:t + 1, :] for t in range(_T_SUB)]

        # serial part: pure VPU multiply-add + sublane reduce for y
        ys = []
        for t in range(_T_SUB):
            h = dA[t] * h + dBu[t]                                  # (S, E)
            ys.append(jnp.sum(c_t[:, t:t + 1] * h, axis=0, keepdims=True))
        # one full (8, E) aligned store instead of 8 masked row stores
        y_scr[pl.ds(t0, _T_SUB), :] = jnp.concatenate(ys, axis=0)
        return h

    h_fin = jax.lax.fori_loop(0, n_sub, subtile_body, hstate_scr[...])
    hstate_scr[...] = h_fin

    # skip connection D, gating, out_proj
    y = y_scr[...] + x_c * Dp_ref[...]
    y = y * _silu(z)
    out = jnp.dot(y.astype(bf16), wout_ref[...], preferred_element_type=f32)

    if add_residual_to_out:           # fuse the stack's final `hidden + residual`
        h_out_ref[...] = out + res_new
    else:
        h_out_ref[...] = out
    r_out_ref[...] = res_new


_PARAM_ORDER = ("norm_w", "w_x", "w_z", "conv_w", "conv_b", "w_xp", "w_dtp",
                "dt_b", "A_T", "D", "w_out")


def _param_spec(shape):
    # Weights never change across the grid -> single-buffer them so resident
    # weight VMEM is not doubled for nothing.  (Fallback keeps default
    # buffering if this jax build lacks pipeline_mode.)
    try:
        return pl.BlockSpec(shape, lambda b, l: (0, 0),
                            pipeline_mode=pl.Buffered(1))
    except (TypeError, AttributeError):
        return pl.BlockSpec(shape, lambda b, l: (0, 0))


def mamba_layer_call(hidden, residual, params, *, add_residual_to_out=False,
                     seq_tile=256, scan_exp_bf16=False):
    # seq_tile: 256 keeps v6e/v7x 256-wide MXUs full; use 128 on v5e (smaller
    # MXU, 16 MiB default scoped VMEM).  scan_exp_bf16: enable on v6e/v7x only.
    B, L, D = hidden.shape
    Lt = L if L <= seq_tile else seq_tile
    assert L % Lt == 0, "sequence length must be a multiple of the L-tile"
    assert Lt % _T_SUB == 0, "L-tile must be a multiple of the scan sub-tile"
    NL = L // Lt
    K, E = params["conv_w"].shape
    S = params["A_T"].shape[0]

    seq_spec = pl.BlockSpec((None, Lt, D), lambda b, l: (b, l, 0))
    param_specs = [_param_spec(params[k].shape) for k in _PARAM_ORDER]

    scratch_shapes = [
        pltpu.VMEM((Lt + K - 1, E), jnp.float32),   # padded conv input
        pltpu.VMEM((K - 1, E), jnp.float32),        # conv tail carry
        pltpu.VMEM((S, E), jnp.float32),            # SSM state carry
        pltpu.VMEM((Lt, E), jnp.float32),           # dt
        pltpu.VMEM((Lt, E), jnp.float32),           # u = dt * x_conv
        pltpu.VMEM((Lt, 2 * S), jnp.float32),       # [B | C] lane-dense
        pltpu.VMEM((Lt, E), jnp.float32),           # y
    ]

    kernel = functools.partial(mamba_block_kernel,
                               add_residual_to_out=add_residual_to_out,
                               scan_exp_bf16=scan_exp_bf16)

    out_shape = (jax.ShapeDtypeStruct((B, L, D), jnp.float32),
                 jax.ShapeDtypeStruct((B, L, D), jnp.float32))
    return pl.pallas_call(
        kernel,
        grid=(B, NL),
        in_specs=[seq_spec, seq_spec] + param_specs,
        out_specs=(seq_spec, seq_spec),
        out_shape=out_shape,
        scratch_shapes=scratch_shapes,
        input_output_aliases={0: 0, 1: 1},
        compiler_params=pltpu.CompilerParams(
            dimension_semantics=("parallel", "arbitrary"),
            vmem_limit_bytes=48 * 1024 * 1024),
    )(hidden, residual, *[params[k] for k in _PARAM_ORDER])


def init_mamba_params(key, d_model, d_state=64, d_conv=4, expand=2,
                      is_complex=True):
    E = expand * d_model
    R = math.ceil(d_model / 16)
    if is_complex and R % 2 != 0:
        R += 1
    R_pad = max(128, ((R + 127) // 128) * 128)   # lane-dense dt_rank padding

    k = jax.random.split(key, 6)
    norm_w = jnp.ones((1, d_model), jnp.float32)
    in_w = jax.random.normal(k[0], (d_model, 2 * E), jnp.float32) * 0.02
    conv_w = jax.random.normal(k[1], (d_conv, E), jnp.float32) * 0.1   # (K, E)
    conv_b = jnp.zeros((1, E), jnp.float32)
    x_w = jax.random.normal(k[2], (E, R + 2 * d_state), jnp.float32) * 0.02
    dt_w = jax.random.normal(k[3], (R, E), jnp.float32) * (R ** -0.5)
    # dt bias = softplus^{-1}(dt), dt ~ LogUniform[1e-3, 1e-1] (Mamba init)
    dt = jnp.exp(jax.random.uniform(k[4], (1, E), jnp.float32)
                 * (math.log(0.1) - math.log(0.001)) + math.log(0.001))
    dt_b = dt + jnp.log(-jnp.expm1(-dt))
    # A_log = log(A) with A[e, s] = s+1  ->  -exp(A_log).T is constant per row.
    A_T = -jnp.tile(jnp.arange(1, d_state + 1, dtype=jnp.float32)[:, None],
                    (1, E))                                   # (S, E)
    Dp = jnp.ones((1, E), jnp.float32)
    out_w = jax.random.normal(k[5], (E, d_model), jnp.float32) * 0.02

    # Host-side weight packing for the kernel:
    #  * in_proj split into x / z halves (lane-dense matmuls),
    #  * low-rank dt_proj kept TWO-STAGE (no dense (E,E) fusion): x_proj
    #    columns packed as [dt_low(pad to R_pad) | B | C] and a zero-padded
    #    (R_pad, E) dt_proj weight,
    #  * matmul weights in bf16 (kernel accumulates in f32).
    bf16 = jnp.bfloat16
    w_xp = jnp.zeros((E, R_pad + 2 * d_state), jnp.float32)
    w_xp = w_xp.at[:, :R].set(x_w[:, :R])
    w_xp = w_xp.at[:, R_pad:].set(x_w[:, R:])
    w_dtp = jnp.zeros((R_pad, E), jnp.float32).at[:R, :].set(dt_w)

    return dict(
        norm_w=norm_w,
        w_x=in_w[:, :E].astype(bf16),
        w_z=in_w[:, E:].astype(bf16),
        conv_w=conv_w,
        conv_b=conv_b,
        w_xp=w_xp.astype(bf16),
        w_dtp=w_dtp.astype(bf16),
        dt_b=dt_b,
        A_T=A_T,
        D=Dp,
        w_out=out_w.astype(bf16))


def pure_mamba_forward(hidden_states, layer_params):
    # residual is None for the first layer -> equivalent to adding zeros
    residual = jnp.zeros_like(hidden_states)
    hidden = hidden_states
    n = len(layer_params)
    for i, p in enumerate(layer_params):
        hidden, residual = mamba_layer_call(
            hidden, residual, p, add_residual_to_out=(i == n - 1))
    # final `hidden + residual` already fused into the last layer's kernel
    return hidden, None


if __name__ == "__main__":
    key = jax.random.PRNGKey(0)
    B, L, d_model, n_layers = 2, 8, 32, 4
    kx, kp = jax.random.split(key)
    x = jax.random.normal(kx, (B, L, d_model), jnp.float32)
    layer_keys = jax.random.split(kp, n_layers)
    params = [init_mamba_params(layer_keys[i], d_model) for i in range(n_layers)]

    # donate the hidden-state buffer so input_output_aliases avoids copies
    fwd = jax.jit(pure_mamba_forward, donate_argnums=(0,))
    out, _ = fwd(x, params)
    out = jax.block_until_ready(out)
    assert out.shape == (B, L, d_model)
    assert bool(jnp.all(jnp.isfinite(out)))
    print("KERNEL_OK")
</pallas_src>

<mosaic_0001>
module attributes {stable_mosaic.version = 11 : i64} {
  func.func @mamba_block_kernel(%arg0: i32, %arg1: i32, %arg2: memref<1x8x32xf32, #tpu.memory_space<vmem>>, %arg3: memref<1x8x32xf32, #tpu.memory_space<vmem>>, %arg4: memref<1x32xf32, #tpu.memory_space<vmem>>, %arg5: memref<32x64xbf16, #tpu.memory_space<vmem>>, %arg6: memref<32x64xbf16, #tpu.memory_space<vmem>>, %arg7: memref<4x64xf32, #tpu.memory_space<vmem>>, %arg8: memref<1x64xf32, #tpu.memory_space<vmem>>, %arg9: memref<64x256xbf16, #tpu.memory_space<vmem>>, %arg10: memref<128x64xbf16, #tpu.memory_space<vmem>>, %arg11: memref<1x64xf32, #tpu.memory_space<vmem>>, %arg12: memref<64x64xf32, #tpu.memory_space<vmem>>, %arg13: memref<1x64xf32, #tpu.memory_space<vmem>>, %arg14: memref<64x32xbf16, #tpu.memory_space<vmem>>, %arg15: memref<1x8x32xf32, #tpu.memory_space<vmem>>, %arg16: memref<1x8x32xf32, #tpu.memory_space<vmem>>, %arg17: memref<11x64xf32, #tpu.memory_space<vmem>>, %arg18: memref<3x64xf32, #tpu.memory_space<vmem>>, %arg19: memref<64x64xf32, #tpu.memory_space<vmem>>, %arg20: memref<8x64xf32, #tpu.memory_space<vmem>>, %arg21: memref<8x64xf32, #tpu.memory_space<vmem>>, %arg22: memref<8x128xf32, #tpu.memory_space<vmem>>, %arg23: memref<8x64xf32, #tpu.memory_space<vmem>>) attributes {dimension_semantics = [#tpu.dimension_semantics<parallel>, #tpu.dimension_semantics<arbitrary>], iteration_bounds = array<i64: 2, 1>, scalar_prefetch = 0 : i64, scratch_operands = 7 : i64, tpu.core_type = #tpu.core_type<tc>, window_params = [{transform_indices = @transform_0, window_bounds = array<i64: 1, 8, 32>}, {transform_indices = @transform_1, window_bounds = array<i64: 1, 8, 32>}, {pipeline_mode = #tpu.pipeline_mode<synchronous>, transform_indices = @transform_2, window_bounds = array<i64: 1, 32>}, {pipeline_mode = #tpu.pipeline_mode<synchronous>, transform_indices = @transform_3, window_bounds = array<i64: 32, 64>}, {pipeline_mode = #tpu.pipeline_mode<synchronous>, transform_indices = @transform_4, window_bounds = array<i64: 32, 64>}, {pipeline_mode = #tpu.pipeline_mode<synchronous>, transform_indices = @transform_5, window_bounds = array<i64: 4, 64>}, {pipeline_mode = #tpu.pipeline_mode<synchronous>, transform_indices = @transform_6, window_bounds = array<i64: 1, 64>}, {pipeline_mode = #tpu.pipeline_mode<synchronous>, transform_indices = @transform_7, window_bounds = array<i64: 64, 256>}, {pipeline_mode = #tpu.pipeline_mode<synchronous>, transform_indices = @transform_8, window_bounds = array<i64: 128, 64>}, {pipeline_mode = #tpu.pipeline_mode<synchronous>, transform_indices = @transform_9, window_bounds = array<i64: 1, 64>}, {pipeline_mode = #tpu.pipeline_mode<synchronous>, transform_indices = @transform_10, window_bounds = array<i64: 64, 64>}, {pipeline_mode = #tpu.pipeline_mode<synchronous>, transform_indices = @transform_11, window_bounds = array<i64: 1, 64>}, {pipeline_mode = #tpu.pipeline_mode<synchronous>, transform_indices = @transform_12, window_bounds = array<i64: 64, 32>}, {transform_indices = @transform_13, window_bounds = array<i64: 1, 8, 32>}, {transform_indices = @transform_14, window_bounds = array<i64: 1, 8, 32>}]} {
    %c0_i32 = arith.constant 0 : i32
    %0 = arith.cmpi eq, %arg1, %c0_i32 : i32
    %1 = arith.extui %0 : i1 to i32
    %c0_i32_0 = arith.constant 0 : i32
    %2 = arith.cmpi ne, %1, %c0_i32_0 : i32
    scf.if %2 {
      %cst_93 = arith.constant 0.000000e+00 : f32
      %253 = vector.broadcast %cst_93 : f32 to vector<64x64xf32>
      %c0_94 = arith.constant 0 : index
      %c0_95 = arith.constant 0 : index
      %254 = vector.load %arg19[%c0_94, %c0_95] : memref<64x64xf32, #tpu.memory_space<vmem>>, vector<64x64xf32>
      tpu.vector_store %arg19[%c0_94, %c0_95], %253 {strides = array<i32>} : memref<64x64xf32, #tpu.memory_space<vmem>>, vector<64x64xf32>,
      %cst_96 = arith.constant 0.000000e+00 : f32
      %255 = vector.broadcast %cst_96 : f32 to vector<3x64xf32>
      %c0_97 = arith.constant 0 : index
      %c0_98 = arith.constant 0 : index
      %256 = vector.load %arg18[%c0_97, %c0_98] : memref<3x64xf32, #tpu.memory_space<vmem>>, vector<3x64xf32>
      tpu.vector_store %arg18[%c0_97, %c0_98], %255 {strides = array<i32>} : memref<3x64xf32, #tpu.memory_space<vmem>>, vector<3x64xf32>,
    } else {
    }
    %c0 = arith.constant 0 : index
    %c0_1 = arith.constant 0 : index
    %c0_2 = arith.constant 0 : index
    %3 = vector.load %arg2[%c0, %c0_1, %c0_2] : memref<1x8x32xf32, #tpu.memory_space<vmem>>, vector<1x8x32xf32>
    %4 = vector.shape_cast %3 : vector<1x8x32xf32> to vector<8x32xf32>
    %c0_3 = arith.constant 0 : index
    %c0_4 = arith.constant 0 : index
    %c0_5 = arith.constant 0 : index
    %5 = vector.load %arg3[%c0_3, %c0_4, %c0_5] : memref<1x8x32xf32, #tpu.memory_space<vmem>>, vector<1x8x32xf32>
    %6 = vector.shape_cast %5 : vector<1x8x32xf32> to vector<8x32xf32>
    %7 = arith.addf %4, %6 : vector<8x32xf32>
    %8 = arith.mulf %7, %7 : vector<8x32xf32>
    %cst = arith.constant dense<0.000000e+00> : vector<8xf32>
    %9 = vector.multi_reduction <add>, %8, %cst [1] : vector<8x32xf32> to vector<8xf32>
    %10 = vector.shape_cast %9 : vector<8xf32> to vector<8x1xf32>
    %cst_6 = arith.constant 3.200000e+01 : f32
    %11 = vector.broadcast %cst_6 : f32 to vector<8x1xf32>
    %12 = arith.divf %10, %11 : vector<8x1xf32>
    %cst_7 = arith.constant 9.99999974E-6 : f32
    %13 = vector.broadcast %cst_7 : f32 to vector<8x1xf32>
    %14 = arith.addf %12, %13 : vector<8x1xf32>
    %15 = math.rsqrt %14 : vector<8x1xf32>
    %16 = vector.broadcast %15 : vector<8x1xf32> to vector<8x32xf32>
    %17 = arith.mulf %7, %16 : vector<8x32xf32>
    %c0_8 = arith.constant 0 : index
    %c0_9 = arith.constant 0 : index
    %18 = vector.load %arg4[%c0_8, %c0_9] : memref<1x32xf32, #tpu.memory_space<vmem>>, vector<1x32xf32>
    %19 = vector.broadcast %18 : vector<1x32xf32> to vector<8x32xf32>
    %20 = arith.mulf %17, %19 : vector<8x32xf32>
    %21 = arith.truncf %20 : vector<8x32xf32> to vector<8x32xbf16>
    %c0_10 = arith.constant 0 : index
    %c0_11 = arith.constant 0 : index
    %22 = vector.load %arg5[%c0_10, %c0_11] : memref<32x64xbf16, #tpu.memory_space<vmem>>, vector<32x64xbf16>
    %cst_12 = arith.constant dense<0.000000e+00> : vector<8x64xf32>
    %23 = tpu.matmul %21, %22, %cst_12 {dimension_numbers = #tpu.dot_dimension_numbers<[1], [0], [0], [1], [0, 0, 1, 1], [], []>} : vector<8x32xbf16>, vector<32x64xbf16>, vector<8x64xf32> -> vector<8x64xf32>
    %c0_13 = arith.constant 0 : index
    %c0_14 = arith.constant 0 : index
    %24 = vector.load %arg6[%c0_13, %c0_14] : memref<32x64xbf16, #tpu.memory_space<vmem>>, vector<32x64xbf16>
    %cst_15 = arith.constant dense<0.000000e+00> : vector<8x64xf32>
    %25 = tpu.matmul %21, %24, %cst_15 {dimension_numbers = #tpu.dot_dimension_numbers<[1], [0], [0], [1], [0, 0, 1, 1], [], []>} : vector<8x32xbf16>, vector<32x64xbf16>, vector<8x64xf32> -> vector<8x64xf32>
    %c0_16 = arith.constant 0 : index
    %c0_17 = arith.constant 0 : index
    %26 = vector.load %arg18[%c0_16, %c0_17] : memref<3x64xf32, #tpu.memory_space<vmem>>, vector<3x64xf32>
    %c0_18 = arith.constant 0 : index
    %c0_19 = arith.constant 0 : index
    %27 = vector.load %arg17[%c0_18, %c0_19] : memref<11x64xf32, #tpu.memory_space<vmem>>, vector<3x64xf32>
    tpu.vector_store %arg17[%c0_18, %c0_19], %26 {strides = array<i32>} : memref<11x64xf32, #tpu.memory_space<vmem>>, vector<3x64xf32>,
    %c3 = arith.constant 3 : index
    %c0_20 = arith.constant 0 : index
    %28 = vector.load %arg17[%c3, %c0_20] : memref<11x64xf32, #tpu.memory_space<vmem>>, vector<8x64xf32>
    tpu.vector_store %arg17[%c3, %c0_20], %23 {strides = array<i32>} : memref<11x64xf32, #tpu.memory_space<vmem>>, vector<8x64xf32>,
    %29 = vector.extract_strided_slice %23 {offsets = [5, 0], sizes = [3, 64], strides = [1, 1]} : vector<8x64xf32> to vector<3x64xf32>
    %c0_21 = arith.constant 0 : index
    %c0_22 = arith.constant 0 : index
    %30 = vector.load %arg18[%c0_21, %c0_22] : memref<3x64xf32, #tpu.memory_space<vmem>>, vector<3x64xf32>
    tpu.vector_store %arg18[%c0_21, %c0_22], %29 {strides = array<i32>} : memref<3x64xf32, #tpu.memory_space<vmem>>, vector<3x64xf32>,
    %cst_23 = arith.constant 0.000000e+00 : f32
    %31 = vector.broadcast %cst_23 : f32 to vector<8x64xf32>
    %c0_24 = arith.constant 0 : index
    %c0_25 = arith.constant 0 : index
    %32 = vector.load %arg17[%c0_24, %c0_25] : memref<11x64xf32, #tpu.memory_space<vmem>>, vector<8x64xf32>
    %c0_26 = arith.constant 0 : index
    %c0_27 = arith.constant 0 : index
    %33 = vector.load %arg7[%c0_26, %c0_27] : memref<4x64xf32, #tpu.memory_space<vmem>>, vector<1x64xf32>
    %34 = vector.broadcast %33 : vector<1x64xf32> to vector<8x64xf32>
    %35 = arith.mulf %32, %34 : vector<8x64xf32>
    %36 = arith.addf %31, %35 : vector<8x64xf32>
    %c1 = arith.constant 1 : index
    %c0_28 = arith.constant 0 : index
    %37 = vector.load %arg17[%c1, %c0_28] : memref<11x64xf32, #tpu.memory_space<vmem>>, vector<8x64xf32>
    %c1_29 = arith.constant 1 : index
    %c0_30 = arith.constant 0 : index
    %38 = vector.load %arg7[%c1_29, %c0_30] : memref<4x64xf32, #tpu.memory_space<vmem>>, vector<1x64xf32>
    %39 = vector.broadcast %38 : vector<1x64xf32> to vector<8x64xf32>
    %40 = arith.mulf %37, %39 : vector<8x64xf32>
    %41 = arith.addf %36, %40 : vector<8x64xf32>
    %c2 = arith.constant 2 : index
    %c0_31 = arith.constant 0 : index
    %42 = vector.load %arg17[%c2, %c0_31] : memref<11x64xf32, #tpu.memory_space<vmem>>, vector<8x64xf32>
    %c2_32 = arith.constant 2 : index
    %c0_33 = arith.constant 0 : index
    %43 = vector.load %arg7[%c2_32, %c0_33] : memref<4x64xf32, #tpu.memory_space<vmem>>, vector<1x64xf32>
    %44 = vector.broadcast %43 : vector<1x64xf32> to vector<8x64xf32>
    %45 = arith.mulf %42, %44 : vector<8x64xf32>
    %46 = arith.addf %41, %45 : vector<8x64xf32>
    %c3_34 = arith.constant 3 : index
    %c0_35 = arith.constant 0 : index
    %47 = vector.load %arg17[%c3_34, %c0_35] : memref<11x64xf32, #tpu.memory_space<vmem>>, vector<8x64xf32>
    %c3_36 = arith.constant 3 : index
    %c0_37 = arith.constant 0 : index
    %48 = vector.load %arg7[%c3_36, %c0_37] : memref<4x64xf32, #tpu.memory_space<vmem>>, vector<1x64xf32>
    %49 = vector.broadcast %48 : vector<1x64xf32> to vector<8x64xf32>
    %50 = arith.mulf %47, %49 : vector<8x64xf32>
    %51 = arith.addf %46, %50 : vector<8x64xf32>
    %c0_38 = arith.constant 0 : index
    %c0_39 = arith.constant 0 : index
    %52 = vector.load %arg8[%c0_38, %c0_39] : memref<1x64xf32, #tpu.memory_space<vmem>>, vector<1x64xf32>
    %53 = vector.broadcast %52 : vector<1x64xf32> to vector<8x64xf32>
    %54 = arith.addf %51, %53 : vector<8x64xf32>
    %cst_40 = arith.constant 0.000000e+00 : f32
    %55 = vector.broadcast %cst_40 : f32 to vector<8x64xf32>
    %56 = arith.subf %55, %54 : vector<8x64xf32>
    %57 = math.exp %56 : vector<8x64xf32>
    %cst_41 = arith.constant 1.000000e+00 : f32
    %58 = vector.broadcast %cst_41 : f32 to vector<8x64xf32>
    %59 = arith.addf %58, %57 : vector<8x64xf32>
    %60 = tpu.reciprocal %59 : vector<8x64xf32> -> vector<8x64xf32>
    %61 = arith.mulf %54, %60 : vector<8x64xf32>
    %62 = arith.truncf %61 : vector<8x64xf32> to vector<8x64xbf16>
    %c0_42 = arith.constant 0 : index
    %c0_43 = arith.constant 0 : index
    %63 = vector.load %arg9[%c0_42, %c0_43] : memref<64x256xbf16, #tpu.memory_space<vmem>>, vector<64x256xbf16>
    %cst_44 = arith.constant dense<0.000000e+00> : vector<8x256xf32>
    %64 = tpu.matmul %62, %63, %cst_44 {dimension_numbers = #tpu.dot_dimension_numbers<[1], [0], [0], [1], [0, 0, 1, 1], [], []>} : vector<8x64xbf16>, vector<64x256xbf16>, vector<8x256xf32> -> vector<8x256xf32>
    %65 = vector.extract_strided_slice %64 {offsets = [0, 0], sizes = [8, 128], strides = [1, 1]} : vector<8x256xf32> to vector<8x128xf32>
    %66 = arith.truncf %65 : vector<8x128xf32> to vector<8x128xbf16>
    %c0_45 = arith.constant 0 : index
    %c0_46 = arith.constant 0 : index
    %67 = vector.load %arg10[%c0_45, %c0_46] : memref<128x64xbf16, #tpu.memory_space<vmem>>, vector<128x64xbf16>
    %cst_47 = arith.constant dense<0.000000e+00> : vector<8x64xf32>
    %68 = tpu.matmul %66, %67, %cst_47 {dimension_numbers = #tpu.dot_dimension_numbers<[1], [0], [0], [1], [0, 0, 1, 1], [], []>} : vector<8x128xbf16>, vector<128x64xbf16>, vector<8x64xf32> -> vector<8x64xf32>
    %c0_48 = arith.constant 0 : index
    %c0_49 = arith.constant 0 : index
    %69 = vector.load %arg11[%c0_48, %c0_49] : memref<1x64xf32, #tpu.memory_space<vmem>>, vector<1x64xf32>
    %70 = vector.broadcast %69 : vector<1x64xf32> to vector<8x64xf32>
    %71 = arith.addf %68, %70 : vector<8x64xf32>
    %cst_50 = arith.constant 2.000000e+01 : f32
    %72 = vector.broadcast %cst_50 : f32 to vector<8x64xf32>
    %73 = arith.cmpf ogt, %71, %72 : vector<8x64xf32>
    %cst_51 = arith.constant 2.000000e+01 : f32
    %74 = vector.broadcast %cst_51 : f32 to vector<8x64xf32>
    %75 = arith.minimumf %71, %74 : vector<8x64xf32>
    %76 = math.exp %75 : vector<8x64xf32>
    %cst_52 = arith.constant 1.000000e+00 : f32
    %77 = vector.broadcast %cst_52 : f32 to vector<8x64xf32>
    %78 = arith.addf %77, %76 : vector<8x64xf32>
    %79 = math.log %78 : vector<8x64xf32>
    %80 = arith.select %73, %71, %79 : vector<8x64xi1>, vector<8x64xf32>
    %c0_53 = arith.constant 0 : index
    %c0_54 = arith.constant 0 : index
    %81 = vector.load %arg20[%c0_53, %c0_54] : memref<8x64xf32, #tpu.memory_space<vmem>>, vector<8x64xf32>
    tpu.vector_store %arg20[%c0_53, %c0_54], %80 {strides = array<i32>} : memref<8x64xf32, #tpu.memory_space<vmem>>, vector<8x64xf32>,
    %82 = arith.mulf %80, %61 : vector<8x64xf32>
    %c0_55 = arith.constant 0 : index
    %c0_56 = arith.constant 0 : index
    %83 = vector.load %arg21[%c0_55, %c0_56] : memref<8x64xf32, #tpu.memory_space<vmem>>, vector<8x64xf32>
    tpu.vector_store %arg21[%c0_55, %c0_56], %82 {strides = array<i32>} : memref<8x64xf32, #tpu.memory_space<vmem>>, vector<8x64xf32>,
    %84 = vector.extract_strided_slice %64 {offsets = [0, 128], sizes = [8, 128], strides = [1, 1]} : vector<8x256xf32> to vector<8x128xf32>
    %c0_57 = arith.constant 0 : index
    %c0_58 = arith.constant 0 : index
    %85 = vector.load %arg22[%c0_57, %c0_58] : memref<8x128xf32, #tpu.memory_space<vmem>>, vector<8x128xf32>
    tpu.vector_store %arg22[%c0_57, %c0_58], %84 {strides = array<i32>} : memref<8x128xf32, #tpu.memory_space<vmem>>, vector<8x128xf32>,
    %c0_59 = arith.constant 0 : index
    %c0_60 = arith.constant 0 : index
    %86 = vector.load %arg12[%c0_59, %c0_60] : memref<64x64xf32, #tpu.memory_space<vmem>>, vector<64x64xf32>
    %c0_61 = arith.constant 0 : index
    %c0_62 = arith.constant 0 : index
    %87 = vector.load %arg19[%c0_61, %c0_62] : memref<64x64xf32, #tpu.memory_space<vmem>>, vector<64x64xf32>
    %c0_i32_63 = arith.constant 0 : i32
    %c8_i32 = arith.constant 8 : i32
    %88 = arith.muli %c0_i32_63, %c8_i32 : i32
    %89 = tpu.assume_multiple %88, 8 : i32
    %90 = arith.index_cast %89 : i32 to index
    %c0_64 = arith.constant 0 : index
    %91 = vector.load %arg20[%90, %c0_64] : memref<8x64xf32, #tpu.memory_space<vmem>>, vector<8x64xf32>
    %92 = arith.index_cast %89 : i32 to index
    %c0_65 = arith.constant 0 : index
    %93 = vector.load %arg21[%92, %c0_65] : memref<8x64xf32, #tpu.memory_space<vmem>>, vector<8x64xf32>
    %94 = arith.index_cast %89 : i32 to index
    %c0_66 = arith.constant 0 : index
    %95 = vector.load %arg22[%94, %c0_66] : memref<8x128xf32, #tpu.memory_space<vmem>>, vector<8x128xf32>
    %96 = tpu.transpose %95, [1, 0] : vector<8x128xf32> -> vector<128x8xf32>
    %97 = vector.extract_strided_slice %96 {offsets = [0, 0], sizes = [64, 8], strides = [1, 1]} : vector<128x8xf32> to vector<64x8xf32>
    %98 = vector.extract_strided_slice %96 {offsets = [64, 0], sizes = [64, 8], strides = [1, 1]} : vector<128x8xf32> to vector<64x8xf32>
    %99 = vector.extract_strided_slice %91 {offsets = [0, 0], sizes = [1, 64], strides = [1, 1]} : vector<8x64xf32> to vector<1x64xf32>
    %100 = vector.broadcast %99 : vector<1x64xf32> to vector<64x64xf32>
    %101 = arith.mulf %86, %100 : vector<64x64xf32>
    %102 = math.exp %101 : vector<64x64xf32>
    %103 = vector.extract_strided_slice %91 {offsets = [1, 0], sizes = [1, 64], strides = [1, 1]} : vector<8x64xf32> to vector<1x64xf32>
    %104 = vector.broadcast %103 : vector<1x64xf32> to vector<64x64xf32>
    %105 = arith.mulf %86, %104 : vector<64x64xf32>
    %106 = math.exp %105 : vector<64x64xf32>
    %107 = vector.extract_strided_slice %91 {offsets = [2, 0], sizes = [1, 64], strides = [1, 1]} : vector<8x64xf32> to vector<1x64xf32>
    %108 = vector.broadcast %107 : vector<1x64xf32> to vector<64x64xf32>
    %109 = arith.mulf %86, %108 : vector<64x64xf32>
    %110 = math.exp %109 : vector<64x64xf32>
    %111 = vector.extract_strided_slice %91 {offsets = [3, 0], sizes = [1, 64], strides = [1, 1]} : vector<8x64xf32> to vector<1x64xf32>
    %112 = vector.broadcast %111 : vector<1x64xf32> to vector<64x64xf32>
    %113 = arith.mulf %86, %112 : vector<64x64xf32>
    %114 = math.exp %113 : vector<64x64xf32>
    %115 = vector.extract_strided_slice %91 {offsets = [4, 0], sizes = [1, 64], strides = [1, 1]} : vector<8x64xf32> to vector<1x64xf32>
    %116 = vector.broadcast %115 : vector<1x64xf32> to vector<64x64xf32>
    %117 = arith.mulf %86, %116 : vector<64x64xf32>
    %118 = math.exp %117 : vector<64x64xf32>
    %119 = vector.extract_strided_slice %91 {offsets = [5, 0], sizes = [1, 64], strides = [1, 1]} : vector<8x64xf32> to vector<1x64xf32>
    %120 = vector.broadcast %119 : vector<1x64xf32> to vector<64x64xf32>
    %121 = arith.mulf %86, %120 : vector<64x64xf32>
    %122 = math.exp %121 : vector<64x64xf32>
    %123 = vector.extract_strided_slice %91 {offsets = [6, 0], sizes = [1, 64], strides = [1, 1]} : vector<8x64xf32> to vector<1x64xf32>
    %124 = vector.broadcast %123 : vector<1x64xf32> to vector<64x64xf32>
    %125 = arith.mulf %86, %124 : vector<64x64xf32>
    %126 = math.exp %125 : vector<64x64xf32>
    %127 = vector.extract_strided_slice %91 {offsets = [7, 0], sizes = [1, 64], strides = [1, 1]} : vector<8x64xf32> to vector<1x64xf32>
    %128 = vector.broadcast %127 : vector<1x64xf32> to vector<64x64xf32>
    %129 = arith.mulf %86, %128 : vector<64x64xf32>
    %130 = math.exp %129 : vector<64x64xf32>
    %131 = vector.extract_strided_slice %97 {offsets = [0, 0], sizes = [64, 1], strides = [1, 1]} : vector<64x8xf32> to vector<64x1xf32>
    %132 = vector.extract_strided_slice %93 {offsets = [0, 0], sizes = [1, 64], strides = [1, 1]} : vector<8x64xf32> to vector<1x64xf32>
    %133 = vector.broadcast %131 : vector<64x1xf32> to vector<64x64xf32>
    %134 = vector.broadcast %132 : vector<1x64xf32> to vector<64x64xf32>
    %135 = arith.mulf %133, %134 : vector<64x64xf32>
    %136 = vector.extract_strided_slice %97 {offsets = [0, 1], sizes = [64, 1], strides = [1, 1]} : vector<64x8xf32> to vector<64x1xf32>
    %137 = vector.extract_strided_slice %93 {offsets = [1, 0], sizes = [1, 64], strides = [1, 1]} : vector<8x64xf32> to vector<1x64xf32>
    %138 = vector.broadcast %136 : vector<64x1xf32> to vector<64x64xf32>
    %139 = vector.broadcast %137 : vector<1x64xf32> to vector<64x64xf32>
    %140 = arith.mulf %138, %139 : vector<64x64xf32>
    %141 = vector.extract_strided_slice %97 {offsets = [0, 2], sizes = [64, 1], strides = [1, 1]} : vector<64x8xf32> to vector<64x1xf32>
    %142 = vector.extract_strided_slice %93 {offsets = [2, 0], sizes = [1, 64], strides = [1, 1]} : vector<8x64xf32> to vector<1x64xf32>
    %143 = vector.broadcast %141 : vector<64x1xf32> to vector<64x64xf32>
    %144 = vector.broadcast %142 : vector<1x64xf32> to vector<64x64xf32>
    %145 = arith.mulf %143, %144 : vector<64x64xf32>
    %146 = vector.extract_strided_slice %97 {offsets = [0, 3], sizes = [64, 1], strides = [1, 1]} : vector<64x8xf32> to vector<64x1xf32>
    %147 = vector.extract_strided_slice %93 {offsets = [3, 0], sizes = [1, 64], strides = [1, 1]} : vector<8x64xf32> to vector<1x64xf32>
    %148 = vector.broadcast %146 : vector<64x1xf32> to vector<64x64xf32>
    %149 = vector.broadcast %147 : vector<1x64xf32> to vector<64x64xf32>
    %150 = arith.mulf %148, %149 : vector<64x64xf32>
    %151 = vector.extract_strided_slice %97 {offsets = [0, 4], sizes = [64, 1], strides = [1, 1]} : vector<64x8xf32> to vector<64x1xf32>
    %152 = vector.extract_strided_slice %93 {offsets = [4, 0], sizes = [1, 64], strides = [1, 1]} : vector<8x64xf32> to vector<1x64xf32>
    %153 = vector.broadcast %151 : vector<64x1xf32> to vector<64x64xf32>
    %154 = vector.broadcast %152 : vector<1x64xf32> to vector<64x64xf32>
    %155 = arith.mulf %153, %154 : vector<64x64xf32>
    %156 = vector.extract_strided_slice %97 {offsets = [0, 5], sizes = [64, 1], strides = [1, 1]} : vector<64x8xf32> to vector<64x1xf32>
    %157 = vector.extract_strided_slice %93 {offsets = [5, 0], sizes = [1, 64], strides = [1, 1]} : vector<8x64xf32> to vector<1x64xf32>
    %158 = vector.broadcast %156 : vector<64x1xf32> to vector<64x64xf32>
    %159 = vector.broadcast %157 : vector<1x64xf32> to vector<64x64xf32>
    %160 = arith.mulf %158, %159 : vector<64x64xf32>
    %161 = vector.extract_strided_slice %97 {offsets = [0, 6], sizes = [64, 1], strides = [1, 1]} : vector<64x8xf32> to vector<64x1xf32>
    %162 = vector.extract_strided_slice %93 {offsets = [6, 0], sizes = [1, 64], strides = [1, 1]} : vector<8x64xf32> to vector<1x64xf32>
    %163 = vector.broadcast %161 : vector<64x1xf32> to vector<64x64xf32>
    %164 = vector.broadcast %162 : vector<1x64xf32> to vector<64x64xf32>
    %165 = arith.mulf %163, %164 : vector<64x64xf32>
    %166 = vector.extract_strided_slice %97 {offsets = [0, 7], sizes = [64, 1], strides = [1, 1]} : vector<64x8xf32> to vector<64x1xf32>
    %167 = vector.extract_strided_slice %93 {offsets = [7, 0], sizes = [1, 64], strides = [1, 1]} : vector<8x64xf32> to vector<1x64xf32>
    %168 = vector.broadcast %166 : vector<64x1xf32> to vector<64x64xf32>
    %169 = vector.broadcast %167 : vector<1x64xf32> to vector<64x64xf32>
    %170 = arith.mulf %168, %169 : vector<64x64xf32>
    %171 = arith.mulf %102, %87 : vector<64x64xf32>
    %172 = arith.addf %171, %135 : vector<64x64xf32>
    %173 = vector.extract_strided_slice %98 {offsets = [0, 0], sizes = [64, 1], strides = [1, 1]} : vector<64x8xf32> to vector<64x1xf32>
    %174 = vector.broadcast %173 : vector<64x1xf32> to vector<64x64xf32>
    %175 = arith.mulf %174, %172 : vector<64x64xf32>
    %cst_67 = arith.constant dense<0.000000e+00> : vector<64xf32>
    %176 = vector.multi_reduction <add>, %175, %cst_67 [0] : vector<64x64xf32> to vector<64xf32>
    %177 = vector.shape_cast %176 : vector<64xf32> to vector<1x64xf32>
    %178 = arith.mulf %106, %172 : vector<64x64xf32>
    %179 = arith.addf %178, %140 : vector<64x64xf32>
    %180 = vector.extract_strided_slice %98 {offsets = [0, 1], sizes = [64, 1], strides = [1, 1]} : vector<64x8xf32> to vector<64x1xf32>
    %181 = vector.broadcast %180 : vector<64x1xf32> to vector<64x64xf32>
    %182 = arith.mulf %181, %179 : vector<64x64xf32>
    %cst_68 = arith.constant dense<0.000000e+00> : vector<64xf32>
    %183 = vector.multi_reduction <add>, %182, %cst_68 [0] : vector<64x64xf32> to vector<64xf32>
    %184 = vector.shape_cast %183 : vector<64xf32> to vector<1x64xf32>
    %185 = arith.mulf %110, %179 : vector<64x64xf32>
    %186 = arith.addf %185, %145 : vector<64x64xf32>
    %187 = vector.extract_strided_slice %98 {offsets = [0, 2], sizes = [64, 1], strides = [1, 1]} : vector<64x8xf32> to vector<64x1xf32>
    %188 = vector.broadcast %187 : vector<64x1xf32> to vector<64x64xf32>
    %189 = arith.mulf %188, %186 : vector<64x64xf32>
    %cst_69 = arith.constant dense<0.000000e+00> : vector<64xf32>
    %190 = vector.multi_reduction <add>, %189, %cst_69 [0] : vector<64x64xf32> to vector<64xf32>
    %191 = vector.shape_cast %190 : vector<64xf32> to vector<1x64xf32>
    %192 = arith.mulf %114, %186 : vector<64x64xf32>
    %193 = arith.addf %192, %150 : vector<64x64xf32>
    %194 = vector.extract_strided_slice %98 {offsets = [0, 3], sizes = [64, 1], strides = [1, 1]} : vector<64x8xf32> to vector<64x1xf32>
    %195 = vector.broadcast %194 : vector<64x1xf32> to vector<64x64xf32>
    %196 = arith.mulf %195, %193 : vector<64x64xf32>
    %cst_70 = arith.constant dense<0.000000e+00> : vector<64xf32>
    %197 = vector.multi_reduction <add>, %196, %cst_70 [0] : vector<64x64xf32> to vector<64xf32>
    %198 = vector.shape_cast %197 : vector<64xf32> to vector<1x64xf32>
    %199 = arith.mulf %118, %193 : vector<64x64xf32>
    %200 = arith.addf %199, %155 : vector<64x64xf32>
    %201 = vector.extract_strided_slice %98 {offsets = [0, 4], sizes = [64, 1], strides = [1, 1]} : vector<64x8xf32> to vector<64x1xf32>
    %202 = vector.broadcast %201 : vector<64x1xf32> to vector<64x64xf32>
    %203 = arith.mulf %202, %200 : vector<64x64xf32>
    %cst_71 = arith.constant dense<0.000000e+00> : vector<64xf32>
    %204 = vector.multi_reduction <add>, %203, %cst_71 [0] : vector<64x64xf32> to vector<64xf32>
    %205 = vector.shape_cast %204 : vector<64xf32> to vector<1x64xf32>
    %206 = arith.mulf %122, %200 : vector<64x64xf32>
    %207 = arith.addf %206, %160 : vector<64x64xf32>
    %208 = vector.extract_strided_slice %98 {offsets = [0, 5], sizes = [64, 1], strides = [1, 1]} : vector<64x8xf32> to vector<64x1xf32>
    %209 = vector.broadcast %208 : vector<64x1xf32> to vector<64x64xf32>
    %210 = arith.mulf %209, %207 : vector<64x64xf32>
    %cst_72 = arith.constant dense<0.000000e+00> : vector<64xf32>
    %211 = vector.multi_reduction <add>, %210, %cst_72 [0] : vector<64x64xf32> to vector<64xf32>
    %212 = vector.shape_cast %211 : vector<64xf32> to vector<1x64xf32>
    %213 = arith.mulf %126, %207 : vector<64x64xf32>
    %214 = arith.addf %213, %165 : vector<64x64xf32>
    %215 = vector.extract_strided_slice %98 {offsets = [0, 6], sizes = [64, 1], strides = [1, 1]} : vector<64x8xf32> to vector<64x1xf32>
    %216 = vector.broadcast %215 : vector<64x1xf32> to vector<64x64xf32>
    %217 = arith.mulf %216, %214 : vector<64x64xf32>
    %cst_73 = arith.constant dense<0.000000e+00> : vector<64xf32>
    %218 = vector.multi_reduction <add>, %217, %cst_73 [0] : vector<64x64xf32> to vector<64xf32>
    %219 = vector.shape_cast %218 : vector<64xf32> to vector<1x64xf32>
    %220 = arith.mulf %130, %214 : vector<64x64xf32>
    %221 = arith.addf %220, %170 : vector<64x64xf32>
    %222 = vector.extract_strided_slice %98 {offsets = [0, 7], sizes = [64, 1], strides = [1, 1]} : vector<64x8xf32> to vector<64x1xf32>
    %223 = vector.broadcast %222 : vector<64x1xf32> to vector<64x64xf32>
    %224 = arith.mulf %223, %221 : vector<64x64xf32>
    %cst_74 = arith.constant dense<0.000000e+00> : vector<64xf32>
    %225 = vector.multi_reduction <add>, %224, %cst_74 [0] : vector<64x64xf32> to vector<64xf32>
    %226 = vector.shape_cast %225 : vector<64xf32> to vector<1x64xf32>
    %227 = tpu.concatenate %177, %184, %191, %198, %205, %212, %219, %226 in 0 : vector<1x64xf32>, vector<1x64xf32>, vector<1x64xf32>, vector<1x64xf32>, vector<1x64xf32>, vector<1x64xf32>, vector<1x64xf32>, vector<1x64xf32> -> vector<8x64xf32>
    %228 = arith.index_cast %89 : i32 to index
    %c0_75 = arith.constant 0 : index
    %229 = vector.load %arg23[%228, %c0_75] : memref<8x64xf32, #tpu.memory_space<vmem>>, vector<8x64xf32>
    tpu.vector_store %arg23[%228, %c0_75], %227 {strides = array<i32>} : memref<8x64xf32, #tpu.memory_space<vmem>>, vector<8x64xf32>,
    %c1_i32 = arith.constant 1 : i32
    %c0_76 = arith.constant 0 : index
    %c0_77 = arith.constant 0 : index
    %230 = vector.load %arg19[%c0_76, %c0_77] : memref<64x64xf32, #tpu.memory_space<vmem>>, vector<64x64xf32>
    tpu.vector_store %arg19[%c0_76, %c0_77], %221 {strides = array<i32>} : memref<64x64xf32, #tpu.memory_space<vmem>>, vector<64x64xf32>,
    %c0_78 = arith.constant 0 : index
    %c0_79 = arith.constant 0 : index
    %231 = vector.load %arg23[%c0_78, %c0_79] : memref<8x64xf32, #tpu.memory_space<vmem>>, vector<8x64xf32>
    %c0_80 = arith.constant 0 : index
    %c0_81 = arith.constant 0 : index
    %232 = vector.load %arg13[%c0_80, %c0_81] : memref<1x64xf32, #tpu.memory_space<vmem>>, vector<1x64xf32>
    %233 = vector.broadcast %232 : vector<1x64xf32> to vector<8x64xf32>
    %234 = arith.mulf %61, %233 : vector<8x64xf32>
    %235 = arith.addf %231, %234 : vector<8x64xf32>
    %cst_82 = arith.constant 0.000000e+00 : f32
    %236 = vector.broadcast %cst_82 : f32 to vector<8x64xf32>
    %237 = arith.subf %236, %25 : vector<8x64xf32>
    %238 = math.exp %237 : vector<8x64xf32>
    %cst_83 = arith.constant 1.000000e+00 : f32
    %239 = vector.broadcast %cst_83 : f32 to vector<8x64xf32>
    %240 = arith.addf %239, %238 : vector<8x64xf32>
    %241 = tpu.reciprocal %240 : vector<8x64xf32> -> vector<8x64xf32>
    %242 = arith.mulf %25, %241 : vector<8x64xf32>
    %243 = arith.mulf %235, %242 : vector<8x64xf32>
    %244 = arith.truncf %243 : vector<8x64xf32> to vector<8x64xbf16>
    %c0_84 = arith.constant 0 : index
    %c0_85 = arith.constant 0 : index
    %245 = vector.load %arg14[%c0_84, %c0_85] : memref<64x32xbf16, #tpu.memory_space<vmem>>, vector<64x32xbf16>
    %cst_86 = arith.constant dense<0.000000e+00> : vector<8x32xf32>
    %246 = tpu.matmul %244, %245, %cst_86 {dimension_numbers = #tpu.dot_dimension_numbers<[1], [0], [0], [1], [0, 0, 1, 1], [], []>} : vector<8x64xbf16>, vector<64x32xbf16>, vector<8x32xf32> -> vector<8x32xf32>
    %c0_87 = arith.constant 0 : index
    %c0_88 = arith.constant 0 : index
    %c0_89 = arith.constant 0 : index
    %247 = vector.load %arg15[%c0_87, %c0_88, %c0_89] : memref<1x8x32xf32, #tpu.memory_space<vmem>>, vector<1x8x32xf32>
    %248 = vector.shape_cast %247 : vector<1x8x32xf32> to vector<8x32xf32>
    %249 = vector.shape_cast %246 : vector<8x32xf32> to vector<1x8x32xf32>
    tpu.vector_store %arg15[%c0_87, %c0_88, %c0_89], %249 {strides = array<i32>} : memref<1x8x32xf32, #tpu.memory_space<vmem>>, vector<1x8x32xf32>,
    %c0_90 = arith.constant 0 : index
    %c0_91 = arith.constant 0 : index
    %c0_92 = arith.constant 0 : index
    %250 = vector.load %arg16[%c0_90, %c0_91, %c0_92] : memref<1x8x32xf32, #tpu.memory_space<vmem>>, vector<1x8x32xf32>
    %251 = vector.shape_cast %250 : vector<1x8x32xf32> to vector<8x32xf32>
    %252 = vector.shape_cast %7 : vector<8x32xf32> to vector<1x8x32xf32>
    tpu.vector_store %arg16[%c0_90, %c0_91, %c0_92], %252 {strides = array<i32>} : memref<1x8x32xf32, #tpu.memory_space<vmem>>, vector<1x8x32xf32>,
    return
  }
  func.func @transform_0(%arg0: i32, %arg1: i32) -> (i32, i32, i32) {
    %c0_i32 = arith.constant 0 : i32
    %c0_i32_0 = arith.constant 0 : i32
    return %arg0, %arg1, %c0_i32 : i32, i32, i32
  }
  func.func @transform_1(%arg0: i32, %arg1: i32) -> (i32, i32, i32) {
    %c0_i32 = arith.constant 0 : i32
    %c0_i32_0 = arith.constant 0 : i32
    return %arg0, %arg1, %c0_i32 : i32, i32, i32
  }
  func.func @transform_2(%arg0: i32, %arg1: i32) -> (i32, i32) {
    %c0_i32 = arith.constant 0 : i32
    %c0_i32_0 = arith.constant 0 : i32
    %c0_i32_1 = arith.constant 0 : i32
    return %c0_i32, %c0_i32_0 : i32, i32
  }
  func.func @transform_3(%arg0: i32, %arg1: i32) -> (i32, i32) {
    %c0_i32 = arith.constant 0 : i32
    %c0_i32_0 = arith.constant 0 : i32
    %c0_i32_1 = arith.constant 0 : i32
    return %c0_i32, %c0_i32_0 : i32, i32
  }
  func.func @transform_4(%arg0: i32, %arg1: i32) -> (i32, i32) {
    %c0_i32 = arith.constant 0 : i32
    %c0_i32_0 = arith.constant 0 : i32
    %c0_i32_1 = arith.constant 0 : i32
    return %c0_i32, %c0_i32_0 : i32, i32
  }
  func.func @transform_5(%arg0: i32, %arg1: i32) -> (i32, i32) {
    %c0_i32 = arith.constant 0 : i32
    %c0_i32_0 = arith.constant 0 : i32
    %c0_i32_1 = arith.constant 0 : i32
    return %c0_i32, %c0_i32_0 : i32, i32
  }
  func.func @transform_6(%arg0: i32, %arg1: i32) -> (i32, i32) {
    %c0_i32 = arith.constant 0 : i32
    %c0_i32_0 = arith.constant 0 : i32
    %c0_i32_1 = arith.constant 0 : i32
    return %c0_i32, %c0_i32_0 : i32, i32
  }
  func.func @transform_7(%arg0: i32, %arg1: i32) -> (i32, i32) {
    %c0_i32 = arith.constant 0 : i32
    %c0_i32_0 = arith.constant 0 : i32
    %c0_i32_1 = arith.constant 0 : i32
    return %c0_i32, %c0_i32_0 : i32, i32
  }
  func.func @transform_8(%arg0: i32, %arg1: i32) -> (i32, i32) {
    %c0_i32 = arith.constant 0 : i32
    %c0_i32_0 = arith.constant 0 : i32
    %c0_i32_1 = arith.constant 0 : i32
    return %c0_i32, %c0_i32_0 : i32, i32
  }
  func.func @transform_9(%arg0: i32, %arg1: i32) -> (i32, i32) {
    %c0_i32 = arith.constant 0 : i32
    %c0_i32_0 = arith.constant 0 : i32
    %c0_i32_1 = arith.constant 0 : i32
    return %c0_i32, %c0_i32_0 : i32, i32
  }
  func.func @transform_10(%arg0: i32, %arg1: i32) -> (i32, i32) {
    %c0_i32 = arith.constant 0 : i32
    %c0_i32_0 = arith.constant 0 : i32
    %c0_i32_1 = arith.constant 0 : i32
    return %c0_i32, %c0_i32_0 : i32, i32
  }
  func.func @transform_11(%arg0: i32, %arg1: i32) -> (i32, i32) {
    %c0_i32 = arith.constant 0 : i32
    %c0_i32_0 = arith.constant 0 : i32
    %c0_i32_1 = arith.constant 0 : i32
    return %c0_i32, %c0_i32_0 : i32, i32
  }
  func.func @transform_12(%arg0: i32, %arg1: i32) -> (i32, i32) {
    %c0_i32 = arith.constant 0 : i32
    %c0_i32_0 = arith.constant 0 : i32
    %c0_i32_1 = arith.constant 0 : i32
    return %c0_i32, %c0_i32_0 : i32, i32
  }
  func.func @transform_13(%arg0: i32, %arg1: i32) -> (i32, i32, i32) {
    %c0_i32 = arith.constant 0 : i32
    %c0_i32_0 = arith.constant 0 : i32
    return %arg0, %arg1, %c0_i32 : i32, i32, i32
  }
  func.func @transform_14(%arg0: i32, %arg1: i32) -> (i32, i32, i32) {
    %c0_i32 = arith.constant 0 : i32
    %c0_i32_0 = arith.constant 0 : i32
    return %arg0, %arg1, %c0_i32 : i32, i32, i32
  }
}

module attributes {stable_mosaic.version = 11 : i64} {
  func.func @mamba_block_kernel(%arg0: i32, %arg1: i32, %arg2: memref<1x8x32xf32, #tpu.memory_space<vmem>>, %arg3: memref<1x8x32xf32, #tpu.memory_space<vmem>>, %arg4: memref<1x32xf32, #tpu.memory_space<vmem>>, %arg5: memref<32x64xbf16, #tpu.memory_space<vmem>>, %arg6: memref<32x64xbf16, #tpu.memory_space<vmem>>, %arg7: memref<4x64xf32, #tpu.memory_space<vmem>>, %arg8: memref<1x64xf32, #tpu.memory_space<vmem>>, %arg9: memref<64x256xbf16, #tpu.memory_space<vmem>>, %arg10: memref<128x64xbf16, #tpu.memory_space<vmem>>, %arg11: memref<1x64xf32, #tpu.memory_space<vmem>>, %arg12: memref<64x64xf32, #tpu.memory_space<vmem>>, %arg13: memref<1x64xf32, #tpu.memory_space<vmem>>, %arg14: memref<64x32xbf16, #tpu.memory_space<vmem>>, %arg15: memref<1x8x32xf32, #tpu.memory_space<vmem>>, %arg16: memref<1x8x32xf32, #tpu.memory_space<vmem>>, %arg17: memref<11x64xf32, #tpu.memory_space<vmem>>, %arg18: memref<3x64xf32, #tpu.memory_space<vmem>>, %arg19: memref<64x64xf32, #tpu.memory_space<vmem>>, %arg20: memref<8x64xf32, #tpu.memory_space<vmem>>, %arg21: memref<8x64xf32, #tpu.memory_space<vmem>>, %arg22: memref<8x128xf32, #tpu.memory_space<vmem>>, %arg23: memref<8x64xf32, #tpu.memory_space<vmem>>) attributes {dimension_semantics = [#tpu.dimension_semantics<parallel>, #tpu.dimension_semantics<arbitrary>], iteration_bounds = array<i64: 2, 1>, scalar_prefetch = 0 : i64, scratch_operands = 7 : i64, tpu.core_type = #tpu.core_type<tc>, window_params = [{transform_indices = @transform_0, window_bounds = array<i64: 1, 8, 32>}, {transform_indices = @transform_1, window_bounds = array<i64: 1, 8, 32>}, {pipeline_mode = #tpu.pipeline_mode<synchronous>, transform_indices = @transform_2, window_bounds = array<i64: 1, 32>}, {pipeline_mode = #tpu.pipeline_mode<synchronous>, transform_indices = @transform_3, window_bounds = array<i64: 32, 64>}, {pipeline_mode = #tpu.pipeline_mode<synchronous>, transform_indices = @transform_4, window_bounds = array<i64: 32, 64>}, {pipeline_mode = #tpu.pipeline_mode<synchronous>, transform_indices = @transform_5, window_bounds = array<i64: 4, 64>}, {pipeline_mode = #tpu.pipeline_mode<synchronous>, transform_indices = @transform_6, window_bounds = array<i64: 1, 64>}, {pipeline_mode = #tpu.pipeline_mode<synchronous>, transform_indices = @transform_7, window_bounds = array<i64: 64, 256>}, {pipeline_mode = #tpu.pipeline_mode<synchronous>, transform_indices = @transform_8, window_bounds = array<i64: 128, 64>}, {pipeline_mode = #tpu.pipeline_mode<synchronous>, transform_indices = @transform_9, window_bounds = array<i64: 1, 64>}, {pipeline_mode = #tpu.pipeline_mode<synchronous>, transform_indices = @transform_10, window_bounds = array<i64: 64, 64>}, {pipeline_mode = #tpu.pipeline_mode<synchronous>, transform_indices = @transform_11, window_bounds = array<i64: 1, 64>}, {pipeline_mode = #tpu.pipeline_mode<synchronous>, transform_indices = @transform_12, window_bounds = array<i64: 64, 32>}, {transform_indices = @transform_13, window_bounds = array<i64: 1, 8, 32>}, {transform_indices = @transform_14, window_bounds = array<i64: 1, 8, 32>}]} {
    %c0_i32 = arith.constant 0 : i32
    %0 = arith.cmpi eq, %arg1, %c0_i32 : i32
    %1 = arith.extui %0 : i1 to i32
    %c0_i32_0 = arith.constant 0 : i32
    %2 = arith.cmpi ne, %1, %c0_i32_0 : i32
    scf.if %2 {
      %cst_93 = arith.constant 0.000000e+00 : f32
      %254 = vector.broadcast %cst_93 : f32 to vector<64x64xf32>
      %c0_94 = arith.constant 0 : index
      %c0_95 = arith.constant 0 : index
      %255 = vector.load %arg19[%c0_94, %c0_95] : memref<64x64xf32, #tpu.memory_space<vmem>>, vector<64x64xf32>
      tpu.vector_store %arg19[%c0_94, %c0_95], %254 {strides = array<i32>} : memref<64x64xf32, #tpu.memory_space<vmem>>, vector<64x64xf32>,
      %cst_96 = arith.constant 0.000000e+00 : f32
      %256 = vector.broadcast %cst_96 : f32 to vector<3x64xf32>
      %c0_97 = arith.constant 0 : index
      %c0_98 = arith.constant 0 : index
      %257 = vector.load %arg18[%c0_97, %c0_98] : memref<3x64xf32, #tpu.memory_space<vmem>>, vector<3x64xf32>
      tpu.vector_store %arg18[%c0_97, %c0_98], %256 {strides = array<i32>} : memref<3x64xf32, #tpu.memory_space<vmem>>, vector<3x64xf32>,
    } else {
    }
    %c0 = arith.constant 0 : index
    %c0_1 = arith.constant 0 : index
    %c0_2 = arith.constant 0 : index
    %3 = vector.load %arg2[%c0, %c0_1, %c0_2] : memref<1x8x32xf32, #tpu.memory_space<vmem>>, vector<1x8x32xf32>
    %4 = vector.shape_cast %3 : vector<1x8x32xf32> to vector<8x32xf32>
    %c0_3 = arith.constant 0 : index
    %c0_4 = arith.constant 0 : index
    %c0_5 = arith.constant 0 : index
    %5 = vector.load %arg3[%c0_3, %c0_4, %c0_5] : memref<1x8x32xf32, #tpu.memory_space<vmem>>, vector<1x8x32xf32>
    %6 = vector.shape_cast %5 : vector<1x8x32xf32> to vector<8x32xf32>
    %7 = arith.addf %4, %6 : vector<8x32xf32>
    %8 = arith.mulf %7, %7 : vector<8x32xf32>
    %cst = arith.constant dense<0.000000e+00> : vector<8xf32>
    %9 = vector.multi_reduction <add>, %8, %cst [1] : vector<8x32xf32> to vector<8xf32>
    %10 = vector.shape_cast %9 : vector<8xf32> to vector<8x1xf32>
    %cst_6 = arith.constant 3.200000e+01 : f32
    %11 = vector.broadcast %cst_6 : f32 to vector<8x1xf32>
    %12 = arith.divf %10, %11 : vector<8x1xf32>
    %cst_7 = arith.constant 9.99999974E-6 : f32
    %13 = vector.broadcast %cst_7 : f32 to vector<8x1xf32>
    %14 = arith.addf %12, %13 : vector<8x1xf32>
    %15 = math.rsqrt %14 : vector<8x1xf32>
    %16 = vector.broadcast %15 : vector<8x1xf32> to vector<8x32xf32>
    %17 = arith.mulf %7, %16 : vector<8x32xf32>
    %c0_8 = arith.constant 0 : index
    %c0_9 = arith.constant 0 : index
    %18 = vector.load %arg4[%c0_8, %c0_9] : memref<1x32xf32, #tpu.memory_space<vmem>>, vector<1x32xf32>
    %19 = vector.broadcast %18 : vector<1x32xf32> to vector<8x32xf32>
    %20 = arith.mulf %17, %19 : vector<8x32xf32>
    %21 = arith.truncf %20 : vector<8x32xf32> to vector<8x32xbf16>
    %c0_10 = arith.constant 0 : index
    %c0_11 = arith.constant 0 : index
    %22 = vector.load %arg5[%c0_10, %c0_11] : memref<32x64xbf16, #tpu.memory_space<vmem>>, vector<32x64xbf16>
    %cst_12 = arith.constant dense<0.000000e+00> : vector<8x64xf32>
    %23 = tpu.matmul %21, %22, %cst_12 {dimension_numbers = #tpu.dot_dimension_numbers<[1], [0], [0], [1], [0, 0, 1, 1], [], []>} : vector<8x32xbf16>, vector<32x64xbf16>, vector<8x64xf32> -> vector<8x64xf32>
    %c0_13 = arith.constant 0 : index
    %c0_14 = arith.constant 0 : index
    %24 = vector.load %arg6[%c0_13, %c0_14] : memref<32x64xbf16, #tpu.memory_space<vmem>>, vector<32x64xbf16>
    %cst_15 = arith.constant dense<0.000000e+00> : vector<8x64xf32>
    %25 = tpu.matmul %21, %24, %cst_15 {dimension_numbers = #tpu.dot_dimension_numbers<[1], [0], [0], [1], [0, 0, 1, 1], [], []>} : vector<8x32xbf16>, vector<32x64xbf16>, vector<8x64xf32> -> vector<8x64xf32>
    %c0_16 = arith.constant 0 : index
    %c0_17 = arith.constant 0 : index
    %26 = vector.load %arg18[%c0_16, %c0_17] : memref<3x64xf32, #tpu.memory_space<vmem>>, vector<3x64xf32>
    %c0_18 = arith.constant 0 : index
    %c0_19 = arith.constant 0 : index
    %27 = vector.load %arg17[%c0_18, %c0_19] : memref<11x64xf32, #tpu.memory_space<vmem>>, vector<3x64xf32>
    tpu.vector_store %arg17[%c0_18, %c0_19], %26 {strides = array<i32>} : memref<11x64xf32, #tpu.memory_space<vmem>>, vector<3x64xf32>,
    %c3 = arith.constant 3 : index
    %c0_20 = arith.constant 0 : index
    %28 = vector.load %arg17[%c3, %c0_20] : memref<11x64xf32, #tpu.memory_space<vmem>>, vector<8x64xf32>
    tpu.vector_store %arg17[%c3, %c0_20], %23 {strides = array<i32>} : memref<11x64xf32, #tpu.memory_space<vmem>>, vector<8x64xf32>,
    %29 = vector.extract_strided_slice %23 {offsets = [5, 0], sizes = [3, 64], strides = [1, 1]} : vector<8x64xf32> to vector<3x64xf32>
    %c0_21 = arith.constant 0 : index
    %c0_22 = arith.constant 0 : index
    %30 = vector.load %arg18[%c0_21, %c0_22] : memref<3x64xf32, #tpu.memory_space<vmem>>, vector<3x64xf32>
    tpu.vector_store %arg18[%c0_21, %c0_22], %29 {strides = array<i32>} : memref<3x64xf32, #tpu.memory_space<vmem>>, vector<3x64xf32>,
    %cst_23 = arith.constant 0.000000e+00 : f32
    %31 = vector.broadcast %cst_23 : f32 to vector<8x64xf32>
    %c0_24 = arith.constant 0 : index
    %c0_25 = arith.constant 0 : index
    %32 = vector.load %arg17[%c0_24, %c0_25] : memref<11x64xf32, #tpu.memory_space<vmem>>, vector<8x64xf32>
    %c0_26 = arith.constant 0 : index
    %c0_27 = arith.constant 0 : index
    %33 = vector.load %arg7[%c0_26, %c0_27] : memref<4x64xf32, #tpu.memory_space<vmem>>, vector<1x64xf32>
    %34 = vector.broadcast %33 : vector<1x64xf32> to vector<8x64xf32>
    %35 = arith.mulf %32, %34 : vector<8x64xf32>
    %36 = arith.addf %31, %35 : vector<8x64xf32>
    %c1 = arith.constant 1 : index
    %c0_28 = arith.constant 0 : index
    %37 = vector.load %arg17[%c1, %c0_28] : memref<11x64xf32, #tpu.memory_space<vmem>>, vector<8x64xf32>
    %c1_29 = arith.constant 1 : index
    %c0_30 = arith.constant 0 : index
    %38 = vector.load %arg7[%c1_29, %c0_30] : memref<4x64xf32, #tpu.memory_space<vmem>>, vector<1x64xf32>
    %39 = vector.broadcast %38 : vector<1x64xf32> to vector<8x64xf32>
    %40 = arith.mulf %37, %39 : vector<8x64xf32>
    %41 = arith.addf %36, %40 : vector<8x64xf32>
    %c2 = arith.constant 2 : index
    %c0_31 = arith.constant 0 : index
    %42 = vector.load %arg17[%c2, %c0_31] : memref<11x64xf32, #tpu.memory_space<vmem>>, vector<8x64xf32>
    %c2_32 = arith.constant 2 : index
    %c0_33 = arith.constant 0 : index
    %43 = vector.load %arg7[%c2_32, %c0_33] : memref<4x64xf32, #tpu.memory_space<vmem>>, vector<1x64xf32>
    %44 = vector.broadcast %43 : vector<1x64xf32> to vector<8x64xf32>
    %45 = arith.mulf %42, %44 : vector<8x64xf32>
    %46 = arith.addf %41, %45 : vector<8x64xf32>
    %c3_34 = arith.constant 3 : index
    %c0_35 = arith.constant 0 : index
    %47 = vector.load %arg17[%c3_34, %c0_35] : memref<11x64xf32, #tpu.memory_space<vmem>>, vector<8x64xf32>
    %c3_36 = arith.constant 3 : index
    %c0_37 = arith.constant 0 : index
    %48 = vector.load %arg7[%c3_36, %c0_37] : memref<4x64xf32, #tpu.memory_space<vmem>>, vector<1x64xf32>
    %49 = vector.broadcast %48 : vector<1x64xf32> to vector<8x64xf32>
    %50 = arith.mulf %47, %49 : vector<8x64xf32>
    %51 = arith.addf %46, %50 : vector<8x64xf32>
    %c0_38 = arith.constant 0 : index
    %c0_39 = arith.constant 0 : index
    %52 = vector.load %arg8[%c0_38, %c0_39] : memref<1x64xf32, #tpu.memory_space<vmem>>, vector<1x64xf32>
    %53 = vector.broadcast %52 : vector<1x64xf32> to vector<8x64xf32>
    %54 = arith.addf %51, %53 : vector<8x64xf32>
    %cst_40 = arith.constant 0.000000e+00 : f32
    %55 = vector.broadcast %cst_40 : f32 to vector<8x64xf32>
    %56 = arith.subf %55, %54 : vector<8x64xf32>
    %57 = math.exp %56 : vector<8x64xf32>
    %cst_41 = arith.constant 1.000000e+00 : f32
    %58 = vector.broadcast %cst_41 : f32 to vector<8x64xf32>
    %59 = arith.addf %58, %57 : vector<8x64xf32>
    %60 = tpu.reciprocal %59 : vector<8x64xf32> -> vector<8x64xf32>
    %61 = arith.mulf %54, %60 : vector<8x64xf32>
    %62 = arith.truncf %61 : vector<8x64xf32> to vector<8x64xbf16>
    %c0_42 = arith.constant 0 : index
    %c0_43 = arith.constant 0 : index
    %63 = vector.load %arg9[%c0_42, %c0_43] : memref<64x256xbf16, #tpu.memory_space<vmem>>, vector<64x256xbf16>
    %cst_44 = arith.constant dense<0.000000e+00> : vector<8x256xf32>
    %64 = tpu.matmul %62, %63, %cst_44 {dimension_numbers = #tpu.dot_dimension_numbers<[1], [0], [0], [1], [0, 0, 1, 1], [], []>} : vector<8x64xbf16>, vector<64x256xbf16>, vector<8x256xf32> -> vector<8x256xf32>
    %65 = vector.extract_strided_slice %64 {offsets = [0, 0], sizes = [8, 128], strides = [1, 1]} : vector<8x256xf32> to vector<8x128xf32>
    %66 = arith.truncf %65 : vector<8x128xf32> to vector<8x128xbf16>
    %c0_45 = arith.constant 0 : index
    %c0_46 = arith.constant 0 : index
    %67 = vector.load %arg10[%c0_45, %c0_46] : memref<128x64xbf16, #tpu.memory_space<vmem>>, vector<128x64xbf16>
    %cst_47 = arith.constant dense<0.000000e+00> : vector<8x64xf32>
    %68 = tpu.matmul %66, %67, %cst_47 {dimension_numbers = #tpu.dot_dimension_numbers<[1], [0], [0], [1], [0, 0, 1, 1], [], []>} : vector<8x128xbf16>, vector<128x64xbf16>, vector<8x64xf32> -> vector<8x64xf32>
    %c0_48 = arith.constant 0 : index
    %c0_49 = arith.constant 0 : index
    %69 = vector.load %arg11[%c0_48, %c0_49] : memref<1x64xf32, #tpu.memory_space<vmem>>, vector<1x64xf32>
    %70 = vector.broadcast %69 : vector<1x64xf32> to vector<8x64xf32>
    %71 = arith.addf %68, %70 : vector<8x64xf32>
    %cst_50 = arith.constant 2.000000e+01 : f32
    %72 = vector.broadcast %cst_50 : f32 to vector<8x64xf32>
    %73 = arith.cmpf ogt, %71, %72 : vector<8x64xf32>
    %cst_51 = arith.constant 2.000000e+01 : f32
    %74 = vector.broadcast %cst_51 : f32 to vector<8x64xf32>
    %75 = arith.minimumf %71, %74 : vector<8x64xf32>
    %76 = math.exp %75 : vector<8x64xf32>
    %cst_52 = arith.constant 1.000000e+00 : f32
    %77 = vector.broadcast %cst_52 : f32 to vector<8x64xf32>
    %78 = arith.addf %77, %76 : vector<8x64xf32>
    %79 = math.log %78 : vector<8x64xf32>
    %80 = arith.select %73, %71, %79 : vector<8x64xi1>, vector<8x64xf32>
    %c0_53 = arith.constant 0 : index
    %c0_54 = arith.constant 0 : index
    %81 = vector.load %arg20[%c0_53, %c0_54] : memref<8x64xf32, #tpu.memory_space<vmem>>, vector<8x64xf32>
    tpu.vector_store %arg20[%c0_53, %c0_54], %80 {strides = array<i32>} : memref<8x64xf32, #tpu.memory_space<vmem>>, vector<8x64xf32>,
    %82 = arith.mulf %80, %61 : vector<8x64xf32>
    %c0_55 = arith.constant 0 : index
    %c0_56 = arith.constant 0 : index
    %83 = vector.load %arg21[%c0_55, %c0_56] : memref<8x64xf32, #tpu.memory_space<vmem>>, vector<8x64xf32>
    tpu.vector_store %arg21[%c0_55, %c0_56], %82 {strides = array<i32>} : memref<8x64xf32, #tpu.memory_space<vmem>>, vector<8x64xf32>,
    %84 = vector.extract_strided_slice %64 {offsets = [0, 128], sizes = [8, 128], strides = [1, 1]} : vector<8x256xf32> to vector<8x128xf32>
    %c0_57 = arith.constant 0 : index
    %c0_58 = arith.constant 0 : index
    %85 = vector.load %arg22[%c0_57, %c0_58] : memref<8x128xf32, #tpu.memory_space<vmem>>, vector<8x128xf32>
    tpu.vector_store %arg22[%c0_57, %c0_58], %84 {strides = array<i32>} : memref<8x128xf32, #tpu.memory_space<vmem>>, vector<8x128xf32>,
    %c0_59 = arith.constant 0 : index
    %c0_60 = arith.constant 0 : index
    %86 = vector.load %arg12[%c0_59, %c0_60] : memref<64x64xf32, #tpu.memory_space<vmem>>, vector<64x64xf32>
    %c0_61 = arith.constant 0 : index
    %c0_62 = arith.constant 0 : index
    %87 = vector.load %arg19[%c0_61, %c0_62] : memref<64x64xf32, #tpu.memory_space<vmem>>, vector<64x64xf32>
    %c0_i32_63 = arith.constant 0 : i32
    %c8_i32 = arith.constant 8 : i32
    %88 = arith.muli %c0_i32_63, %c8_i32 : i32
    %89 = tpu.assume_multiple %88, 8 : i32
    %90 = arith.index_cast %89 : i32 to index
    %c0_64 = arith.constant 0 : index
    %91 = vector.load %arg20[%90, %c0_64] : memref<8x64xf32, #tpu.memory_space<vmem>>, vector<8x64xf32>
    %92 = arith.index_cast %89 : i32 to index
    %c0_65 = arith.constant 0 : index
    %93 = vector.load %arg21[%92, %c0_65] : memref<8x64xf32, #tpu.memory_space<vmem>>, vector<8x64xf32>
    %94 = arith.index_cast %89 : i32 to index
    %c0_66 = arith.constant 0 : index
    %95 = vector.load %arg22[%94, %c0_66] : memref<8x128xf32, #tpu.memory_space<vmem>>, vector<8x128xf32>
    %96 = tpu.transpose %95, [1, 0] : vector<8x128xf32> -> vector<128x8xf32>
    %97 = vector.extract_strided_slice %96 {offsets = [0, 0], sizes = [64, 8], strides = [1, 1]} : vector<128x8xf32> to vector<64x8xf32>
    %98 = vector.extract_strided_slice %96 {offsets = [64, 0], sizes = [64, 8], strides = [1, 1]} : vector<128x8xf32> to vector<64x8xf32>
    %99 = vector.extract_strided_slice %91 {offsets = [0, 0], sizes = [1, 64], strides = [1, 1]} : vector<8x64xf32> to vector<1x64xf32>
    %100 = vector.broadcast %99 : vector<1x64xf32> to vector<64x64xf32>
    %101 = arith.mulf %86, %100 : vector<64x64xf32>
    %102 = math.exp %101 : vector<64x64xf32>
    %103 = vector.extract_strided_slice %91 {offsets = [1, 0], sizes = [1, 64], strides = [1, 1]} : vector<8x64xf32> to vector<1x64xf32>
    %104 = vector.broadcast %103 : vector<1x64xf32> to vector<64x64xf32>
    %105 = arith.mulf %86, %104 : vector<64x64xf32>
    %106 = math.exp %105 : vector<64x64xf32>
    %107 = vector.extract_strided_slice %91 {offsets = [2, 0], sizes = [1, 64], strides = [1, 1]} : vector<8x64xf32> to vector<1x64xf32>
    %108 = vector.broadcast %107 : vector<1x64xf32> to vector<64x64xf32>
    %109 = arith.mulf %86, %108 : vector<64x64xf32>
    %110 = math.exp %109 : vector<64x64xf32>
    %111 = vector.extract_strided_slice %91 {offsets = [3, 0], sizes = [1, 64], strides = [1, 1]} : vector<8x64xf32> to vector<1x64xf32>
    %112 = vector.broadcast %111 : vector<1x64xf32> to vector<64x64xf32>
    %113 = arith.mulf %86, %112 : vector<64x64xf32>
    %114 = math.exp %113 : vector<64x64xf32>
    %115 = vector.extract_strided_slice %91 {offsets = [4, 0], sizes = [1, 64], strides = [1, 1]} : vector<8x64xf32> to vector<1x64xf32>
    %116 = vector.broadcast %115 : vector<1x64xf32> to vector<64x64xf32>
    %117 = arith.mulf %86, %116 : vector<64x64xf32>
    %118 = math.exp %117 : vector<64x64xf32>
    %119 = vector.extract_strided_slice %91 {offsets = [5, 0], sizes = [1, 64], strides = [1, 1]} : vector<8x64xf32> to vector<1x64xf32>
    %120 = vector.broadcast %119 : vector<1x64xf32> to vector<64x64xf32>
    %121 = arith.mulf %86, %120 : vector<64x64xf32>
    %122 = math.exp %121 : vector<64x64xf32>
    %123 = vector.extract_strided_slice %91 {offsets = [6, 0], sizes = [1, 64], strides = [1, 1]} : vector<8x64xf32> to vector<1x64xf32>
    %124 = vector.broadcast %123 : vector<1x64xf32> to vector<64x64xf32>
    %125 = arith.mulf %86, %124 : vector<64x64xf32>
    %126 = math.exp %125 : vector<64x64xf32>
    %127 = vector.extract_strided_slice %91 {offsets = [7, 0], sizes = [1, 64], strides = [1, 1]} : vector<8x64xf32> to vector<1x64xf32>
    %128 = vector.broadcast %127 : vector<1x64xf32> to vector<64x64xf32>
    %129 = arith.mulf %86, %128 : vector<64x64xf32>
    %130 = math.exp %129 : vector<64x64xf32>
    %131 = vector.extract_strided_slice %97 {offsets = [0, 0], sizes = [64, 1], strides = [1, 1]} : vector<64x8xf32> to vector<64x1xf32>
    %132 = vector.extract_strided_slice %93 {offsets = [0, 0], sizes = [1, 64], strides = [1, 1]} : vector<8x64xf32> to vector<1x64xf32>
    %133 = vector.broadcast %131 : vector<64x1xf32> to vector<64x64xf32>
    %134 = vector.broadcast %132 : vector<1x64xf32> to vector<64x64xf32>
    %135 = arith.mulf %133, %134 : vector<64x64xf32>
    %136 = vector.extract_strided_slice %97 {offsets = [0, 1], sizes = [64, 1], strides = [1, 1]} : vector<64x8xf32> to vector<64x1xf32>
    %137 = vector.extract_strided_slice %93 {offsets = [1, 0], sizes = [1, 64], strides = [1, 1]} : vector<8x64xf32> to vector<1x64xf32>
    %138 = vector.broadcast %136 : vector<64x1xf32> to vector<64x64xf32>
    %139 = vector.broadcast %137 : vector<1x64xf32> to vector<64x64xf32>
    %140 = arith.mulf %138, %139 : vector<64x64xf32>
    %141 = vector.extract_strided_slice %97 {offsets = [0, 2], sizes = [64, 1], strides = [1, 1]} : vector<64x8xf32> to vector<64x1xf32>
    %142 = vector.extract_strided_slice %93 {offsets = [2, 0], sizes = [1, 64], strides = [1, 1]} : vector<8x64xf32> to vector<1x64xf32>
    %143 = vector.broadcast %141 : vector<64x1xf32> to vector<64x64xf32>
    %144 = vector.broadcast %142 : vector<1x64xf32> to vector<64x64xf32>
    %145 = arith.mulf %143, %144 : vector<64x64xf32>
    %146 = vector.extract_strided_slice %97 {offsets = [0, 3], sizes = [64, 1], strides = [1, 1]} : vector<64x8xf32> to vector<64x1xf32>
    %147 = vector.extract_strided_slice %93 {offsets = [3, 0], sizes = [1, 64], strides = [1, 1]} : vector<8x64xf32> to vector<1x64xf32>
    %148 = vector.broadcast %146 : vector<64x1xf32> to vector<64x64xf32>
    %149 = vector.broadcast %147 : vector<1x64xf32> to vector<64x64xf32>
    %150 = arith.mulf %148, %149 : vector<64x64xf32>
    %151 = vector.extract_strided_slice %97 {offsets = [0, 4], sizes = [64, 1], strides = [1, 1]} : vector<64x8xf32> to vector<64x1xf32>
    %152 = vector.extract_strided_slice %93 {offsets = [4, 0], sizes = [1, 64], strides = [1, 1]} : vector<8x64xf32> to vector<1x64xf32>
    %153 = vector.broadcast %151 : vector<64x1xf32> to vector<64x64xf32>
    %154 = vector.broadcast %152 : vector<1x64xf32> to vector<64x64xf32>
    %155 = arith.mulf %153, %154 : vector<64x64xf32>
    %156 = vector.extract_strided_slice %97 {offsets = [0, 5], sizes = [64, 1], strides = [1, 1]} : vector<64x8xf32> to vector<64x1xf32>
    %157 = vector.extract_strided_slice %93 {offsets = [5, 0], sizes = [1, 64], strides = [1, 1]} : vector<8x64xf32> to vector<1x64xf32>
    %158 = vector.broadcast %156 : vector<64x1xf32> to vector<64x64xf32>
    %159 = vector.broadcast %157 : vector<1x64xf32> to vector<64x64xf32>
    %160 = arith.mulf %158, %159 : vector<64x64xf32>
    %161 = vector.extract_strided_slice %97 {offsets = [0, 6], sizes = [64, 1], strides = [1, 1]} : vector<64x8xf32> to vector<64x1xf32>
    %162 = vector.extract_strided_slice %93 {offsets = [6, 0], sizes = [1, 64], strides = [1, 1]} : vector<8x64xf32> to vector<1x64xf32>
    %163 = vector.broadcast %161 : vector<64x1xf32> to vector<64x64xf32>
    %164 = vector.broadcast %162 : vector<1x64xf32> to vector<64x64xf32>
    %165 = arith.mulf %163, %164 : vector<64x64xf32>
    %166 = vector.extract_strided_slice %97 {offsets = [0, 7], sizes = [64, 1], strides = [1, 1]} : vector<64x8xf32> to vector<64x1xf32>
    %167 = vector.extract_strided_slice %93 {offsets = [7, 0], sizes = [1, 64], strides = [1, 1]} : vector<8x64xf32> to vector<1x64xf32>
    %168 = vector.broadcast %166 : vector<64x1xf32> to vector<64x64xf32>
    %169 = vector.broadcast %167 : vector<1x64xf32> to vector<64x64xf32>
    %170 = arith.mulf %168, %169 : vector<64x64xf32>
    %171 = arith.mulf %102, %87 : vector<64x64xf32>
    %172 = arith.addf %171, %135 : vector<64x64xf32>
    %173 = vector.extract_strided_slice %98 {offsets = [0, 0], sizes = [64, 1], strides = [1, 1]} : vector<64x8xf32> to vector<64x1xf32>
    %174 = vector.broadcast %173 : vector<64x1xf32> to vector<64x64xf32>
    %175 = arith.mulf %174, %172 : vector<64x64xf32>
    %cst_67 = arith.constant dense<0.000000e+00> : vector<64xf32>
    %176 = vector.multi_reduction <add>, %175, %cst_67 [0] : vector<64x64xf32> to vector<64xf32>
    %177 = vector.shape_cast %176 : vector<64xf32> to vector<1x64xf32>
    %178 = arith.mulf %106, %172 : vector<64x64xf32>
    %179 = arith.addf %178, %140 : vector<64x64xf32>
    %180 = vector.extract_strided_slice %98 {offsets = [0, 1], sizes = [64, 1], strides = [1, 1]} : vector<64x8xf32> to vector<64x1xf32>
    %181 = vector.broadcast %180 : vector<64x1xf32> to vector<64x64xf32>
    %182 = arith.mulf %181, %179 : vector<64x64xf32>
    %cst_68 = arith.constant dense<0.000000e+00> : vector<64xf32>
    %183 = vector.multi_reduction <add>, %182, %cst_68 [0] : vector<64x64xf32> to vector<64xf32>
    %184 = vector.shape_cast %183 : vector<64xf32> to vector<1x64xf32>
    %185 = arith.mulf %110, %179 : vector<64x64xf32>
    %186 = arith.addf %185, %145 : vector<64x64xf32>
    %187 = vector.extract_strided_slice %98 {offsets = [0, 2], sizes = [64, 1], strides = [1, 1]} : vector<64x8xf32> to vector<64x1xf32>
    %188 = vector.broadcast %187 : vector<64x1xf32> to vector<64x64xf32>
    %189 = arith.mulf %188, %186 : vector<64x64xf32>
    %cst_69 = arith.constant dense<0.000000e+00> : vector<64xf32>
    %190 = vector.multi_reduction <add>, %189, %cst_69 [0] : vector<64x64xf32> to vector<64xf32>
    %191 = vector.shape_cast %190 : vector<64xf32> to vector<1x64xf32>
    %192 = arith.mulf %114, %186 : vector<64x64xf32>
    %193 = arith.addf %192, %150 : vector<64x64xf32>
    %194 = vector.extract_strided_slice %98 {offsets = [0, 3], sizes = [64, 1], strides = [1, 1]} : vector<64x8xf32> to vector<64x1xf32>
    %195 = vector.broadcast %194 : vector<64x1xf32> to vector<64x64xf32>
    %196 = arith.mulf %195, %193 : vector<64x64xf32>
    %cst_70 = arith.constant dense<0.000000e+00> : vector<64xf32>
    %197 = vector.multi_reduction <add>, %196, %cst_70 [0] : vector<64x64xf32> to vector<64xf32>
    %198 = vector.shape_cast %197 : vector<64xf32> to vector<1x64xf32>
    %199 = arith.mulf %118, %193 : vector<64x64xf32>
    %200 = arith.addf %199, %155 : vector<64x64xf32>
    %201 = vector.extract_strided_slice %98 {offsets = [0, 4], sizes = [64, 1], strides = [1, 1]} : vector<64x8xf32> to vector<64x1xf32>
    %202 = vector.broadcast %201 : vector<64x1xf32> to vector<64x64xf32>
    %203 = arith.mulf %202, %200 : vector<64x64xf32>
    %cst_71 = arith.constant dense<0.000000e+00> : vector<64xf32>
    %204 = vector.multi_reduction <add>, %203, %cst_71 [0] : vector<64x64xf32> to vector<64xf32>
    %205 = vector.shape_cast %204 : vector<64xf32> to vector<1x64xf32>
    %206 = arith.mulf %122, %200 : vector<64x64xf32>
    %207 = arith.addf %206, %160 : vector<64x64xf32>
    %208 = vector.extract_strided_slice %98 {offsets = [0, 5], sizes = [64, 1], strides = [1, 1]} : vector<64x8xf32> to vector<64x1xf32>
    %209 = vector.broadcast %208 : vector<64x1xf32> to vector<64x64xf32>
    %210 = arith.mulf %209, %207 : vector<64x64xf32>
    %cst_72 = arith.constant dense<0.000000e+00> : vector<64xf32>
    %211 = vector.multi_reduction <add>, %210, %cst_72 [0] : vector<64x64xf32> to vector<64xf32>
    %212 = vector.shape_cast %211 : vector<64xf32> to vector<1x64xf32>
    %213 = arith.mulf %126, %207 : vector<64x64xf32>
    %214 = arith.addf %213, %165 : vector<64x64xf32>
    %215 = vector.extract_strided_slice %98 {offsets = [0, 6], sizes = [64, 1], strides = [1, 1]} : vector<64x8xf32> to vector<64x1xf32>
    %216 = vector.broadcast %215 : vector<64x1xf32> to vector<64x64xf32>
    %217 = arith.mulf %216, %214 : vector<64x64xf32>
    %cst_73 = arith.constant dense<0.000000e+00> : vector<64xf32>
    %218 = vector.multi_reduction <add>, %217, %cst_73 [0] : vector<64x64xf32> to vector<64xf32>
    %219 = vector.shape_cast %218 : vector<64xf32> to vector<1x64xf32>
    %220 = arith.mulf %130, %214 : vector<64x64xf32>
    %221 = arith.addf %220, %170 : vector<64x64xf32>
    %222 = vector.extract_strided_slice %98 {offsets = [0, 7], sizes = [64, 1], strides = [1, 1]} : vector<64x8xf32> to vector<64x1xf32>
    %223 = vector.broadcast %222 : vector<64x1xf32> to vector<64x64xf32>
    %224 = arith.mulf %223, %221 : vector<64x64xf32>
    %cst_74 = arith.constant dense<0.000000e+00> : vector<64xf32>
    %225 = vector.multi_reduction <add>, %224, %cst_74 [0] : vector<64x64xf32> to vector<64xf32>
    %226 = vector.shape_cast %225 : vector<64xf32> to vector<1x64xf32>
    %227 = tpu.concatenate %177, %184, %191, %198, %205, %212, %219, %226 in 0 : vector<1x64xf32>, vector<1x64xf32>, vector<1x64xf32>, vector<1x64xf32>, vector<1x64xf32>, vector<1x64xf32>, vector<1x64xf32>, vector<1x64xf32> -> vector<8x64xf32>
    %228 = arith.index_cast %89 : i32 to index
    %c0_75 = arith.constant 0 : index
    %229 = vector.load %arg23[%228, %c0_75] : memref<8x64xf32, #tpu.memory_space<vmem>>, vector<8x64xf32>
    tpu.vector_store %arg23[%228, %c0_75], %227 {strides = array<i32>} : memref<8x64xf32, #tpu.memory_space<vmem>>, vector<8x64xf32>,
    %c1_i32 = arith.constant 1 : i32
    %c0_76 = arith.constant 0 : index
    %c0_77 = arith.constant 0 : index
    %230 = vector.load %arg19[%c0_76, %c0_77] : memref<64x64xf32, #tpu.memory_space<vmem>>, vector<64x64xf32>
    tpu.vector_store %arg19[%c0_76, %c0_77], %221 {strides = array<i32>} : memref<64x64xf32, #tpu.memory_space<vmem>>, vector<64x64xf32>,
    %c0_78 = arith.constant 0 : index
    %c0_79 = arith.constant 0 : index
    %231 = vector.load %arg23[%c0_78, %c0_79] : memref<8x64xf32, #tpu.memory_space<vmem>>, vector<8x64xf32>
    %c0_80 = arith.constant 0 : index
    %c0_81 = arith.constant 0 : index
    %232 = vector.load %arg13[%c0_80, %c0_81] : memref<1x64xf32, #tpu.memory_space<vmem>>, vector<1x64xf32>
    %233 = vector.broadcast %232 : vector<1x64xf32> to vector<8x64xf32>
    %234 = arith.mulf %61, %233 : vector<8x64xf32>
    %235 = arith.addf %231, %234 : vector<8x64xf32>
    %cst_82 = arith.constant 0.000000e+00 : f32
    %236 = vector.broadcast %cst_82 : f32 to vector<8x64xf32>
    %237 = arith.subf %236, %25 : vector<8x64xf32>
    %238 = math.exp %237 : vector<8x64xf32>
    %cst_83 = arith.constant 1.000000e+00 : f32
    %239 = vector.broadcast %cst_83 : f32 to vector<8x64xf32>
    %240 = arith.addf %239, %238 : vector<8x64xf32>
    %241 = tpu.reciprocal %240 : vector<8x64xf32> -> vector<8x64xf32>
    %242 = arith.mulf %25, %241 : vector<8x64xf32>
    %243 = arith.mulf %235, %242 : vector<8x64xf32>
    %244 = arith.truncf %243 : vector<8x64xf32> to vector<8x64xbf16>
    %c0_84 = arith.constant 0 : index
    %c0_85 = arith.constant 0 : index
    %245 = vector.load %arg14[%c0_84, %c0_85] : memref<64x32xbf16, #tpu.memory_space<vmem>>, vector<64x32xbf16>
    %cst_86 = arith.constant dense<0.000000e+00> : vector<8x32xf32>
    %246 = tpu.matmul %244, %245, %cst_86 {dimension_numbers = #tpu.dot_dimension_numbers<[1], [0], [0], [1], [0, 0, 1, 1], [], []>} : vector<8x64xbf16>, vector<64x32xbf16>, vector<8x32xf32> -> vector<8x32xf32>
    %247 = arith.addf %246, %7 : vector<8x32xf32>
    %c0_87 = arith.constant 0 : index
    %c0_88 = arith.constant 0 : index
    %c0_89 = arith.constant 0 : index
    %248 = vector.load %arg15[%c0_87, %c0_88, %c0_89] : memref<1x8x32xf32, #tpu.memory_space<vmem>>, vector<1x8x32xf32>
    %249 = vector.shape_cast %248 : vector<1x8x32xf32> to vector<8x32xf32>
    %250 = vector.shape_cast %247 : vector<8x32xf32> to vector<1x8x32xf32>
    tpu.vector_store %arg15[%c0_87, %c0_88, %c0_89], %250 {strides = array<i32>} : memref<1x8x32xf32, #tpu.memory_space<vmem>>, vector<1x8x32xf32>,
    %c0_90 = arith.constant 0 : index
    %c0_91 = arith.constant 0 : index
    %c0_92 = arith.constant 0 : index
    %251 = vector.load %arg16[%c0_90, %c0_91, %c0_92] : memref<1x8x32xf32, #tpu.memory_space<vmem>>, vector<1x8x32xf32>
    %252 = vector.shape_cast %251 : vector<1x8x32xf32> to vector<8x32xf32>
    %253 = vector.shape_cast %7 : vector<8x32xf32> to vector<1x8x32xf32>
    tpu.vector_store %arg16[%c0_90, %c0_91, %c0_92], %253 {strides = array<i32>} : memref<1x8x32xf32, #tpu.memory_space<vmem>>, vector<1x8x32xf32>,
    return
  }
  func.func @transform_0(%arg0: i32, %arg1: i32) -> (i32, i32, i32) {
    %c0_i32 = arith.constant 0 : i32
    %c0_i32_0 = arith.constant 0 : i32
    return %arg0, %arg1, %c0_i32 : i32, i32, i32
  }
  func.func @transform_1(%arg0: i32, %arg1: i32) -> (i32, i32, i32) {
    %c0_i32 = arith.constant 0 : i32
    %c0_i32_0 = arith.constant 0 : i32
    return %arg0, %arg1, %c0_i32 : i32, i32, i32
  }
  func.func @transform_2(%arg0: i32, %arg1: i32) -> (i32, i32) {
    %c0_i32 = arith.constant 0 : i32
    %c0_i32_0 = arith.constant 0 : i32
    %c0_i32_1 = arith.constant 0 : i32
    return %c0_i32, %c0_i32_0 : i32, i32
  }
  func.func @transform_3(%arg0: i32, %arg1: i32) -> (i32, i32) {
    %c0_i32 = arith.constant 0 : i32
    %c0_i32_0 = arith.constant 0 : i32
    %c0_i32_1 = arith.constant 0 : i32
    return %c0_i32, %c0_i32_0 : i32, i32
  }
  func.func @transform_4(%arg0: i32, %arg1: i32) -> (i32, i32) {
    %c0_i32 = arith.constant 0 : i32
    %c0_i32_0 = arith.constant 0 : i32
    %c0_i32_1 = arith.constant 0 : i32
    return %c0_i32, %c0_i32_0 : i32, i32
  }
  func.func @transform_5(%arg0: i32, %arg1: i32) -> (i32, i32) {
    %c0_i32 = arith.constant 0 : i32
    %c0_i32_0 = arith.constant 0 : i32
    %c0_i32_1 = arith.constant 0 : i32
    return %c0_i32, %c0_i32_0 : i32, i32
  }
  func.func @transform_6(%arg0: i32, %arg1: i32) -> (i32, i32) {
    %c0_i32 = arith.constant 0 : i32
    %c0_i32_0 = arith.constant 0 : i32
    %c0_i32_1 = arith.constant 0 : i32
    return %c0_i32, %c0_i32_0 : i32, i32
  }
  func.func @transform_7(%arg0: i32, %arg1: i32) -> (i32, i32) {
    %c0_i32 = arith.constant 0 : i32
    %c0_i32_0 = arith.constant 0 : i32
    %c0_i32_1 = arith.constant 0 : i32
    return %c0_i32, %c0_i32_0 : i32, i32
  }
  func.func @transform_8(%arg0: i32, %arg1: i32) -> (i32, i32) {
    %c0_i32 = arith.constant 0 : i32
    %c0_i32_0 = arith.constant 0 : i32
    %c0_i32_1 = arith.constant 0 : i32
    return %c0_i32, %c0_i32_0 : i32, i32
  }
  func.func @transform_9(%arg0: i32, %arg1: i32) -> (i32, i32) {
    %c0_i32 = arith.constant 0 : i32
    %c0_i32_0 = arith.constant 0 : i32
    %c0_i32_1 = arith.constant 0 : i32
    return %c0_i32, %c0_i32_0 : i32, i32
  }
  func.func @transform_10(%arg0: i32, %arg1: i32) -> (i32, i32) {
    %c0_i32 = arith.constant 0 : i32
    %c0_i32_0 = arith.constant 0 : i32
    %c0_i32_1 = arith.constant 0 : i32
    return %c0_i32, %c0_i32_0 : i32, i32
  }
  func.func @transform_11(%arg0: i32, %arg1: i32) -> (i32, i32) {
    %c0_i32 = arith.constant 0 : i32
    %c0_i32_0 = arith.constant 0 : i32
    %c0_i32_1 = arith.constant 0 : i32
    return %c0_i32, %c0_i32_0 : i32, i32
  }
  func.func @transform_12(%arg0: i32, %arg1: i32) -> (i32, i32) {
    %c0_i32 = arith.constant 0 : i32
    %c0_i32_0 = arith.constant 0 : i32
    %c0_i32_1 = arith.constant 0 : i32
    return %c0_i32, %c0_i32_0 : i32, i32
  }
  func.func @transform_13(%arg0: i32, %arg1: i32) -> (i32, i32, i32) {
    %c0_i32 = arith.constant 0 : i32
    %c0_i32_0 = arith.constant 0 : i32
    return %arg0, %arg1, %c0_i32 : i32, i32, i32
  }
  func.func @transform_14(%arg0: i32, %arg1: i32) -> (i32, i32, i32) {
    %c0_i32 = arith.constant 0 : i32
    %c0_i32_0 = arith.constant 0 : i32
    return %arg0, %arg1, %c0_i32 : i32, i32, i32
  }
}

</mosaic_0001>

<llo_original>
// kernel: pure_mamba_forward.7
$region0: #{pure_mamba_forward.7}
  #allocation0 [shape = 'u32[]', space=smem, size = 0x4, offset = 0x4, fixed_abs, tag = 'smem constant byte address 0x4 - core index']
  #allocation1 [shape = 'u32[144,128]{1,0:T(1,128)}', space=vmem, size = 0x12000, scoped, tag = 'internal scratch']
  #allocation2 [shape = 'f32[11,64]{1,0:T(8,128)}', space=vmem, size = 0x2000, scoped, tag = 'scratch operand']
  #allocation3 [shape = 'f32[3,64]{1,0:T(4,128)}', space=vmem, size = 0x800, scoped, tag = 'scratch operand']
  #allocation4 [shape = 'f32[64,64]{1,0:T(8,128)}', space=vmem, size = 0x8000, scoped, tag = 'scratch operand']
  #allocation5 [shape = 'f32[8,64]{1,0:T(8,128)}', space=vmem, size = 0x1000, scoped, tag = 'scratch operand']
  #allocation6 [shape = 'f32[8,64]{1,0:T(8,128)}', space=vmem, size = 0x1000, scoped, tag = 'scratch operand']
  #allocation7 [shape = 'f32[8,128]{1,0:T(8,128)}', space=vmem, size = 0x1000, scoped, tag = 'scratch operand']
  #allocation8 [shape = 'f32[8,64]{1,0:T(8,128)}', space=vmem, size = 0x1000, scoped, tag = 'scratch operand']
  %s0 = inlined_call_operand.vmem [shape: f32[2,8,32], index: 0, kind: input, shape index: {}, may-alias: {0,13}]
  %s1 = inlined_call_operand.vmem [shape: f32[2,8,32], index: 1, kind: input, shape index: {}, may-alias: {1,14}]
  %s2 = inlined_call_operand.vmem [shape: f32[1,32], index: 2, kind: input, shape index: {}]
  %s3 = inlined_call_operand.vmem [shape: bf16[32,64], index: 3, kind: input, shape index: {}]
  %s4 = inlined_call_operand.vmem [shape: bf16[32,64], index: 4, kind: input, shape index: {}]
  %s5 = inlined_call_operand.vmem [shape: f32[4,64], index: 5, kind: input, shape index: {}]
  %s6 = inlined_call_operand.vmem [shape: f32[1,64], index: 6, kind: input, shape index: {}]
  %s7 = inlined_call_operand.vmem [shape: bf16[64,256], index: 7, kind: input, shape index: {}]
  %s8 = inlined_call_operand.vmem [shape: bf16[128,64], index: 8, kind: input, shape index: {}]
  %s9 = inlined_call_operand.vmem [shape: f32[1,64], index: 9, kind: input, shape index: {}]
  %s10 = inlined_call_operand.vmem [shape: f32[64,64], index: 10, kind: input, shape index: {}]
  %s11 = inlined_call_operand.vmem [shape: f32[1,64], index: 11, kind: input, shape index: {}]
  %s12 = inlined_call_operand.vmem [shape: bf16[64,32], index: 12, kind: input, shape index: {}]
  %s13 = inlined_call_operand.vmem [shape: f32[2,8,32], index: 13, kind: output, shape index: {0}, may-alias: {0,13}]
  %s14 = inlined_call_operand.vmem [shape: f32[2,8,32], index: 14, kind: output, shape index: {1}, may-alias: {1,14}]
  %15 = xla_tuple %s13, %s14
  %s16 = sld [smem:[#allocation0]]
  $region97: #{pure_mamba_forward.7} parent=0
    _
  %s18 = ssub.s32 1, %s16
  %s19 = scalar_select 0, %s18, %s16
  loop: start=0, step=1, limit=4
  $region2: #{pure_mamba_forward.7} parent=0 // loop_pre_header
    _
  $region3: #{pure_mamba_forward.7} parent=0 // loop_header
    %s21 = sphi 0, %s25
    %p22 = scmp.ge.s32.totalorder %s21, 4
    %s28 = sphi 0, %s40
    %s29 = sphi 0, %s36
    %s30 = sphi 0, %s28
    %s31 = sphi 0, %s29
    %s32 = sphi 0, %s30
    %s33 = sphi 0, %s31
    %s45 = sphi 0, %s47
    %s48 = sphi 0, %s45
    %s49 = sphi 0, %s48
    %s65 = sphi 0, %s49
    %s73 = sphi 0, %s75
    %s76 = sphi 0, %s73
    %s77 = sphi 0, %s76
    %s93 = sphi 0, %s77
    %s97 = sphi 0, %s97
    %s99 = sphi 0, %s97
    %s100 = sphi 0, %s99
    %s114 = sphi 0, %s100
    %s118 = sphi 0, %s118
    %s120 = sphi 0, %s118
    %s121 = sphi 0, %s120
    %s135 = sphi 0, %s121
    %s139 = sphi 0, %s139
    %s141 = sphi 0, %s139
    %s142 = sphi 0, %s141
    %s156 = sphi 0, %s142
    %s160 = sphi 0, %s160
    %s162 = sphi 0, %s160
    %s163 = sphi 0, %s162
    %s177 = sphi 0, %s163
    %s181 = sphi 0, %s181
    %s183 = sphi 0, %s181
    %s184 = sphi 0, %s183
    %s198 = sphi 0, %s184
    %s202 = sphi 0, %s202
    %s204 = sphi 0, %s202
    %s205 = sphi 0, %s204
    %s219 = sphi 0, %s205
    %s223 = sphi 0, %s223
    %s225 = sphi 0, %s223
    %s226 = sphi 0, %s225
    %s240 = sphi 0, %s226
    %s244 = sphi 0, %s244
    %s246 = sphi 0, %s244
    %s247 = sphi 0, %s246
    %s261 = sphi 0, %s247
    %s265 = sphi 0, %s265
    %s267 = sphi 0, %s265
    %s268 = sphi 0, %s267
    %s282 = sphi 0, %s268
    %s286 = sphi 0, %s286
    %s288 = sphi 0, %s286
    %s289 = sphi 0, %s288
    %s303 = sphi 0, %s289
    %s307 = sphi 0, %s307
    %s309 = sphi 0, %s307
    %s310 = sphi 0, %s309
    %s324 = sphi 0, %s310
    %s332 = sphi 0, %s334
    %s335 = sphi 0, %s332
    %s336 = sphi 0, %s335
    %s352 = sphi 0, %s336
    %s360 = sphi 0, %s362
    %s363 = sphi 0, %s360
    %s364 = sphi 0, %s363
    %s380 = sphi 0, %s364
  $region4: #{pure_mamba_forward.7} parent=0 // loop_header_branch
    %24 = sbr.rel (%p22) target = $region8
  $region5: #{pure_mamba_forward.7} parent=0 // loop_body
    %s26 = ssub.s32 %s21, 1
    %s27 = ssub.s32 %s21, 2
    %s34 = sadd.s32 1, %s29
    %p35 = scmp.ge.s32.totalorder %s34, 1
    %s36 = scalar_select %p35, 0, %s34
    %s37 = sadd.s32 1, %s28
    %s38 = scalar_select %p35, %s37, %s28
    %p39 = scmp.ge.s32.totalorder %s38, 2
    %s40 = scalar_select %p39, 0, %s38
    %s41 = ssub.s32 %s28, %s40
    %s42 = ssub.s32 %s29, %s36
    %s43 = sor.u32 %s41, %s42
    %p44 = scmp.eq.s32.totalorder %s43, 0
    %s46 = sadd.s32 %s45, 1
    %s47 = scalar_select %p44, %s45, %s46
    %p50 = pneg %p44
    %p51 = scmp.eq.s32.totalorder %s21, 1
    %p52 = por %p50, %p51
    %p53 = scmp.ne.s32.totalorder %s45, %s48
    %p54 = scmp.eq.s32.totalorder %s21, 0
    %p55 = por %p53, %p54
    %p56 = scmp.ne.s32.totalorder %s45, %s48
    %p57 = scmp.eq.s32.totalorder %s26, 1
    %p58 = por %p56, %p57
    %p59 = scmp.ne.s32.totalorder %s48, %s49
    %p60 = scmp.eq.s32.totalorder %s26, 0
    %p61 = por %p59, %p60
    %p62 = scmp.ne.s32.totalorder %s48, %s49
    %p63 = scmp.eq.s32.totalorder %s27, 1
    %p64 = por %p62, %p63
    %p66 = scmp.ne.s32.totalorder %s49, %s65
    %p67 = scmp.eq.s32.totalorder %s27, 0
    %p68 = por %p66, %p67
    %s69 = ssub.s32 %s28, %s40
    %s70 = ssub.s32 %s29, %s36
    %s71 = sor.u32 %s69, %s70
    %p72 = scmp.eq.s32.totalorder %s71, 0
    %s74 = sadd.s32 %s73, 1
    %s75 = scalar_select %p72, %s73, %s74
    %p78 = pneg %p72
    %p79 = scmp.eq.s32.totalorder %s21, 1
    %p80 = por %p78, %p79
    %p81 = scmp.ne.s32.totalorder %s73, %s76
    %p82 = scmp.eq.s32.totalorder %s21, 0
    %p83 = por %p81, %p82
    %p84 = scmp.ne.s32.totalorder %s73, %s76
    %p85 = scmp.eq.s32.totalorder %s26, 1
    %p86 = por %p84, %p85
    %p87 = scmp.ne.s32.totalorder %s76, %s77
    %p88 = scmp.eq.s32.totalorder %s26, 0
    %p89 = por %p87, %p88
    %p90 = scmp.ne.s32.totalorder %s76, %s77
    %p91 = scmp.eq.s32.totalorder %s27, 1
    %p92 = por %p90, %p91
    %p94 = scmp.ne.s32.totalorder %s77, %s93
    %p95 = scmp.eq.s32.totalorder %s27, 0
    %p96 = por %p94, %p95
    %s98 = sadd.s32 %s97, 1
    %p101 = scmp.eq.s32.totalorder %s21, 1
    %p102 = scmp.ne.s32.totalorder %s97, %s99
    %p103 = scmp.eq.s32.totalorder %s21, 0
    %p104 = por %p102, %p103
    %p105 = scmp.ne.s32.totalorder %s97, %s99
    %p106 = scmp.eq.s32.totalorder %s26, 1
    %p107 = por %p105, %p106
    %p108 = scmp.ne.s32.totalorder %s99, %s100
    %p109 = scmp.eq.s32.totalorder %s26, 0
    %p110 = por %p108, %p109
    %p111 = scmp.ne.s32.totalorder %s99, %s100
    %p112 = scmp.eq.s32.totalorder %s27, 1
    %p113 = por %p111, %p112
    %p115 = scmp.ne.s32.totalorder %s100, %s114
    %p116 = scmp.eq.s32.totalorder %s27, 0
    %p117 = por %p115, %p116
    %s119 = sadd.s32 %s118, 1
    %p122 = scmp.eq.s32.totalorder %s21, 1
    %p123 = scmp.ne.s32.totalorder %s118, %s120
    %p124 = scmp.eq.s32.totalorder %s21, 0
    %p125 = por %p123, %p124
    %p126 = scmp.ne.s32.totalorder %s118, %s120
    %p127 = scmp.eq.s32.totalorder %s26, 1
    %p128 = por %p126, %p127
    %p129 = scmp.ne.s32.totalorder %s120, %s121
    %p130 = scmp.eq.s32.totalorder %s26, 0
    %p131 = por %p129, %p130
    %p132 = scmp.ne.s32.totalorder %s120, %s121
    %p133 = scmp.eq.s32.totalorder %s27, 1
    %p134 = por %p132, %p133
    %p136 = scmp.ne.s32.totalorder %s121, %s135
    %p137 = scmp.eq.s32.totalorder %s27, 0
    %p138 = por %p136, %p137
    %s140 = sadd.s32 %s139, 1
    %p143 = scmp.eq.s32.totalorder %s21, 1
    %p144 = scmp.ne.s32.totalorder %s139, %s141
    %p145 = scmp.eq.s32.totalorder %s21, 0
    %p146 = por %p144, %p145
    %p147 = scmp.ne.s32.totalorder %s139, %s141
    %p148 = scmp.eq.s32.totalorder %s26, 1
    %p149 = por %p147, %p148
    %p150 = scmp.ne.s32.totalorder %s141, %s142
    %p151 = scmp.eq.s32.totalorder %s26, 0
    %p152 = por %p150, %p151
    %p153 = scmp.ne.s32.totalorder %s141, %s142
    %p154 = scmp.eq.s32.totalorder %s27, 1
    %p155 = por %p153, %p154
    %p157 = scmp.ne.s32.totalorder %s142, %s156
    %p158 = scmp.eq.s32.totalorder %s27, 0
    %p159 = por %p157, %p158
    %s161 = sadd.s32 %s160, 1
    %p164 = scmp.eq.s32.totalorder %s21, 1
    %p165 = scmp.ne.s32.totalorder %s160, %s162
    %p166 = scmp.eq.s32.totalorder %s21, 0
    %p167 = por %p165, %p166
    %p168 = scmp.ne.s32.totalorder %s160, %s162
    %p169 = scmp.eq.s32.totalorder %s26, 1
    %p170 = por %p168, %p169
    %p171 = scmp.ne.s32.totalorder %s162, %s163
    %p172 = scmp.eq.s32.totalorder %s26, 0
    %p173 = por %p171, %p172
    %p174 = scmp.ne.s32.totalorder %s162, %s163
    %p175 = scmp.eq.s32.totalorder %s27, 1
    %p176 = por %p174, %p175
    %p178 = scmp.ne.s32.totalorder %s163, %s177
    %p179 = scmp.eq.s32.totalorder %s27, 0
    %p180 = por %p178, %p179
    %s182 = sadd.s32 %s181, 1
    %p185 = scmp.eq.s32.totalorder %s21, 1
    %p186 = scmp.ne.s32.totalorder %s181, %s183
    %p187 = scmp.eq.s32.totalorder %s21, 0
    %p188 = por %p186, %p187
    %p189 = scmp.ne.s32.totalorder %s181, %s183
    %p190 = scmp.eq.s32.totalorder %s26, 1
    %p191 = por %p189, %p190
    %p192 = scmp.ne.s32.totalorder %s183, %s184
    %p193 = scmp.eq.s32.totalorder %s26, 0
    %p194 = por %p192, %p193
    %p195 = scmp.ne.s32.totalorder %s183, %s184
    %p196 = scmp.eq.s32.totalorder %s27, 1
    %p197 = por %p195, %p196
    %p199 = scmp.ne.s32.totalorder %s184, %s198
    %p200 = scmp.eq.s32.totalorder %s27, 0
    %p201 = por %p199, %p200
    %s203 = sadd.s32 %s202, 1
    %p206 = scmp.eq.s32.totalorder %s21, 1
    %p207 = scmp.ne.s32.totalorder %s202, %s204
    %p208 = scmp.eq.s32.totalorder %s21, 0
    %p209 = por %p207, %p208
    %p210 = scmp.ne.s32.totalorder %s202, %s204
    %p211 = scmp.eq.s32.totalorder %s26, 1
    %p212 = por %p210, %p211
    %p213 = scmp.ne.s32.totalorder %s204, %s205
    %p214 = scmp.eq.s32.totalorder %s26, 0
    %p215 = por %p213, %p214
    %p216 = scmp.ne.s32.totalorder %s204, %s205
    %p217 = scmp.eq.s32.totalorder %s27, 1
    %p218 = por %p216, %p217
    %p220 = scmp.ne.s32.totalorder %s205, %s219
    %p221 = scmp.eq.s32.totalorder %s27, 0
    %p222 = por %p220, %p221
    %s224 = sadd.s32 %s223, 1
    %p227 = scmp.eq.s32.totalorder %s21, 1
    %p228 = scmp.ne.s32.totalorder %s223, %s225
    %p229 = scmp.eq.s32.totalorder %s21, 0
    %p230 = por %p228, %p229
    %p231 = scmp.ne.s32.totalorder %s223, %s225
    %p232 = scmp.eq.s32.totalorder %s26, 1
    %p233 = por %p231, %p232
    %p234 = scmp.ne.s32.totalorder %s225, %s226
    %p235 = scmp.eq.s32.totalorder %s26, 0
    %p236 = por %p234, %p235
    %p237 = scmp.ne.s32.totalorder %s225, %s226
    %p238 = scmp.eq.s32.totalorder %s27, 1
    %p239 = por %p237, %p238
    %p241 = scmp.ne.s32.totalorder %s226, %s240
    %p242 = scmp.eq.s32.totalorder %s27, 0
    %p243 = por %p241, %p242
    %s245 = sadd.s32 %s244, 1
    %p248 = scmp.eq.s32.totalorder %s21, 1
    %p249 = scmp.ne.s32.totalorder %s244, %s246
    %p250 = scmp.eq.s32.totalorder %s21, 0
    %p251 = por %p249, %p250
    %p252 = scmp.ne.s32.totalorder %s244, %s246
    %p253 = scmp.eq.s32.totalorder %s26, 1
    %p254 = por %p252, %p253
    %p255 = scmp.ne.s32.totalorder %s246, %s247
    %p256 = scmp.eq.s32.totalorder %s26, 0
    %p257 = por %p255, %p256
    %p258 = scmp.ne.s32.totalorder %s246, %s247
    %p259 = scmp.eq.s32.totalorder %s27, 1
    %p260 = por %p258, %p259
    %p262 = scmp.ne.s32.totalorder %s247, %s261
    %p263 = scmp.eq.s32.totalorder %s27, 0
    %p264 = por %p262, %p263
    %s266 = sadd.s32 %s265, 1
    %p269 = scmp.eq.s32.totalorder %s21, 1
    %p270 = scmp.ne.s32.totalorder %s265, %s267
    %p271 = scmp.eq.s32.totalorder %s21, 0
    %p272 = por %p270, %p271
    %p273 = scmp.ne.s32.totalorder %s265, %s267
    %p274 = scmp.eq.s32.totalorder %s26, 1
    %p275 = por %p273, %p274
    %p276 = scmp.ne.s32.totalorder %s267, %s268
    %p277 = scmp.eq.s32.totalorder %s26, 0
    %p278 = por %p276, %p277
    %p279 = scmp.ne.s32.totalorder %s267, %s268
    %p280 = scmp.eq.s32.totalorder %s27, 1
    %p281 = por %p279, %p280
    %p283 = scmp.ne.s32.totalorder %s268, %s282
    %p284 = scmp.eq.s32.totalorder %s27, 0
    %p285 = por %p283, %p284
    %s287 = sadd.s32 %s286, 1
    %p290 = scmp.eq.s32.totalorder %s21, 1
    %p291 = scmp.ne.s32.totalorder %s286, %s288
    %p292 = scmp.eq.s32.totalorder %s21, 0
    %p293 = por %p291, %p292
    %p294 = scmp.ne.s32.totalorder %s286, %s288
    %p295 = scmp.eq.s32.totalorder %s26, 1
    %p296 = por %p294, %p295
    %p297 = scmp.ne.s32.totalorder %s288, %s289
    %p298 = scmp.eq.s32.totalorder %s26, 0
    %p299 = por %p297, %p298
    %p300 = scmp.ne.s32.totalorder %s288, %s289
    %p301 = scmp.eq.s32.totalorder %s27, 1
    %p302 = por %p300, %p301
    %p304 = scmp.ne.s32.totalorder %s289, %s303
    %p305 = scmp.eq.s32.totalorder %s27, 0
    %p306 = por %p304, %p305
    %s308 = sadd.s32 %s307, 1
    %p311 = scmp.eq.s32.totalorder %s21, 1
    %p312 = scmp.ne.s32.totalorder %s307, %s309
    %p313 = scmp.eq.s32.totalorder %s21, 0
    %p314 = por %p312, %p313
    %p315 = scmp.ne.s32.totalorder %s307, %s309
    %p316 = scmp.eq.s32.totalorder %s26, 1
    %p317 = por %p315, %p316
    %p318 = scmp.ne.s32.totalorder %s309, %s310
    %p319 = scmp.eq.s32.totalorder %s26, 0
    %p320 = por %p318, %p319
    %p321 = scmp.ne.s32.totalorder %s309, %s310
    %p322 = scmp.eq.s32.totalorder %s27, 1
    %p323 = por %p321, %p322
    %p325 = scmp.ne.s32.totalorder %s310, %s324
    %p326 = scmp.eq.s32.totalorder %s27, 0
    %p327 = por %p325, %p326
    %s328 = ssub.s32 %s28, %s40
    %s329 = ssub.s32 %s29, %s36
    %s330 = sor.u32 %s328, %s329
    %p331 = scmp.eq.s32.totalorder %s330, 0
    %s333 = sadd.s32 %s332, 1
    %s334 = scalar_select %p331, %s332, %s333
    %p337 = pneg %p331
    %p338 = scmp.eq.s32.totalorder %s21, 1
    %p339 = por %p337, %p338
    %p340 = scmp.ne.s32.totalorder %s332, %s335
    %p341 = scmp.eq.s32.totalorder %s21, 0
    %p342 = por %p340, %p341
    %p343 = scmp.ne.s32.totalorder %s332, %s335
    %p344 = scmp.eq.s32.totalorder %s26, 1
    %p345 = por %p343, %p344
    %p346 = scmp.ne.s32.totalorder %s335, %s336
    %p347 = scmp.eq.s32.totalorder %s26, 0
    %p348 = por %p346, %p347
    %p349 = scmp.ne.s32.totalorder %s335, %s336
    %p350 = scmp.eq.s32.totalorder %s27, 1
    %p351 = por %p349, %p350
    %p353 = scmp.ne.s32.totalorder %s336, %s352
    %p354 = scmp.eq.s32.totalorder %s27, 0
    %p355 = por %p353, %p354
    %s356 = ssub.s32 %s28, %s40
    %s357 = ssub.s32 %s29, %s36
    %s358 = sor.u32 %s356, %s357
    %p359 = scmp.eq.s32.totalorder %s358, 0
    %s361 = sadd.s32 %s360, 1
    %s362 = scalar_select %p359, %s360, %s361
    %p365 = pneg %p359
    %p366 = scmp.eq.s32.totalorder %s21, 1
    %p367 = por %p365, %p366
    %p368 = scmp.ne.s32.totalorder %s360, %s363
    %p369 = scmp.eq.s32.totalorder %s21, 0
    %p370 = por %p368, %p369
    %p371 = scmp.ne.s32.totalorder %s360, %s363
    %p372 = scmp.eq.s32.totalorder %s26, 1
    %p373 = por %p371, %p372
    %p374 = scmp.ne.s32.totalorder %s363, %s364
    %p375 = scmp.eq.s32.totalorder %s26, 0
    %p376 = por %p374, %p375
    %p377 = scmp.ne.s32.totalorder %s363, %s364
    %p378 = scmp.eq.s32.totalorder %s27, 1
    %p379 = por %p377, %p378
    %p381 = scmp.ne.s32.totalorder %s364, %s380
    %p382 = scmp.eq.s32.totalorder %s27, 0
    %p383 = por %p381, %p382
    %p384 = scmp.le.s32.totalorder 1, %s21
    %p385 = scmp.lt.s32.totalorder %s21, 3
    %p386 = pnand %p384, %p385
    %p387 = pneg %p386
    // Predicated region
    $region9: #{pure_mamba_forward.7} parent=5 // pred_check
      _
    $region10: #{pure_mamba_forward.7} parent=5 // pred_check_branch
      %389 = sbr.rel (%p386) target = $region12
    $region11: #{pure_mamba_forward.7} parent=5 // pred_region
      %s390 = ssub.s32 %s21, 1
      // Predicated region
      $region13: #{pure_mamba_forward.7} parent=11 // pred_check
        %p391 = pneg %p110
      $region14: #{pure_mamba_forward.7} parent=11 // pred_check_branch
        %393 = sbr.rel (%p391) target = $region16
      $region15: #{pure_mamba_forward.7} parent=11 // pred_region
        _
      $region16: #{pure_mamba_forward.7} parent=11 // pred_fallthru
        _
      // Predicated region
      $region17: #{pure_mamba_forward.7} parent=11 // pred_check
        %p394 = pneg %p131
      $region18: #{pure_mamba_forward.7} parent=11 // pred_check_branch
        %396 = sbr.rel (%p394) target = $region20
      $region19: #{pure_mamba_forward.7} parent=11 // pred_region
        _
      $region20: #{pure_mamba_forward.7} parent=11 // pred_fallthru
        _
      // Predicated region
      $region21: #{pure_mamba_forward.7} parent=11 // pred_check
        %p397 = pneg %p152
      $region22: #{pure_mamba_forward.7} parent=11 // pred_check_branch
        %399 = sbr.rel (%p397) target = $region24
      $region23: #{pure_mamba_forward.7} parent=11 // pred_region
        _
      $region24: #{pure_mamba_forward.7} parent=11 // pred_fallthru
        _
      // Predicated region
      $region25: #{pure_mamba_forward.7} parent=11 // pred_check
        %p400 = pneg %p173
      $region26: #{pure_mamba_forward.7} parent=11 // pred_check_branch
        %402 = sbr.rel (%p400) target = $region28
      $region27: #{pure_mamba_forward.7} parent=11 // pred_region
        _
      $region28: #{pure_mamba_forward.7} parent=11 // pred_fallthru
        _
      // Predicated region
      $region29: #{pure_mamba_forward.7} parent=11 // pred_check
        %p403 = pneg %p194
      $region30: #{pure_mamba_forward.7} parent=11 // pred_check_branch
        %405 = sbr.rel (%p403) target = $region32
      $region31: #{pure_mamba_forward.7} parent=11 // pred_region
        _
      $region32: #{pure_mamba_forward.7} parent=11 // pred_fallthru
        _
      // Predicated region
      $region33: #{pure_mamba_forward.7} parent=11 // pred_check
        %p406 = pneg %p215
      $region34: #{pure_mamba_forward.7} parent=11 // pred_check_branch
        %408 = sbr.rel (%p406) target = $region36
      $region35: #{pure_mamba_forward.7} parent=11 // pred_region
        _
      $region36: #{pure_mamba_forward.7} parent=11 // pred_fallthru
        _
      // Predicated region
      $region37: #{pure_mamba_forward.7} parent=11 // pred_check
        %p409 = pneg %p236
      $region38: #{pure_mamba_forward.7} parent=11 // pred_check_branch
        %411 = sbr.rel (%p409) target = $region40
      $region39: #{pure_mamba_forward.7} parent=11 // pred_region
        _
      $region40: #{pure_mamba_forward.7} parent=11 // pred_fallthru
        _
      // Predicated region
      $region41: #{pure_mamba_forward.7} parent=11 // pred_check
        %p412 = pneg %p257
      $region42: #{pure_mamba_forward.7} parent=11 // pred_check_branch
        %414 = sbr.rel (%p412) target = $region44
      $region43: #{pure_mamba_forward.7} parent=11 // pred_region
        _
      $region44: #{pure_mamba_forward.7} parent=11 // pred_fallthru
        _
      // Predicated region
      $region45: #{pure_mamba_forward.7} parent=11 // pred_check
        %p415 = pneg %p278
      $region46: #{pure_mamba_forward.7} parent=11 // pred_check_branch
        %417 = sbr.rel (%p415) target = $region48
      $region47: #{pure_mamba_forward.7} parent=11 // pred_region
        _
      $region48: #{pure_mamba_forward.7} parent=11 // pred_fallthru
        _
      // Predicated region
      $region49: #{pure_mamba_forward.7} parent=11 // pred_check
        %p418 = pneg %p299
      $region50: #{pure_mamba_forward.7} parent=11 // pred_check_branch
        %420 = sbr.rel (%p418) target = $region52
      $region51: #{pure_mamba_forward.7} parent=11 // pred_region
        _
      $region52: #{pure_mamba_forward.7} parent=11 // pred_fallthru
        _
      // Predicated region
      $region53: #{pure_mamba_forward.7} parent=11 // pred_check
        %p421 = pneg %p320
      $region54: #{pure_mamba_forward.7} parent=11 // pred_check_branch
        %423 = sbr.rel (%p421) target = $region56
      $region55: #{pure_mamba_forward.7} parent=11 // pred_region
        _
      $region56: #{pure_mamba_forward.7} parent=11 // pred_fallthru
        _
    $region12: #{pure_mamba_forward.7} parent=5 // pred_fallthru
      _
    %p424 = scmp.lt.s32.totalorder %s21, 2
    // Predicated region
    $region57: #{pure_mamba_forward.7} parent=5 // pred_check
      %p425 = pneg %p424
    $region58: #{pure_mamba_forward.7} parent=5 // pred_check_branch
      %427 = sbr.rel (%p425) target = $region60
    $region59: #{pure_mamba_forward.7} parent=5 // pred_region
      // Predicated region
      $region61: #{pure_mamba_forward.7} parent=59 // pred_check
        %p428 = pneg %p55
      $region62: #{pure_mamba_forward.7} parent=59 // pred_check_branch
        %430 = sbr.rel (%p428) target = $region64
      $region63: #{pure_mamba_forward.7} parent=59 // pred_region
        %p431 = scmp.lt.s32.totalorder %s28, 1
        %s432 = scalar_select %p431, %s28, 1
        %p433 = scmp.lt.s32.totalorder %s29, 0
        %s434 = scalar_select %p433, %s29, 0
        %s435 = sadd.s32 %s434, %s432
        %s436 = smul.addr %s435, 8
        %s437 = scalar_lea.vmem %s0, %s436
      $region64: #{pure_mamba_forward.7} parent=59 // pred_fallthru
        _
      // Predicated region
      $region65: #{pure_mamba_forward.7} parent=59 // pred_check
        %p438 = pneg %p83
      $region66: #{pure_mamba_forward.7} parent=59 // pred_check_branch
        %440 = sbr.rel (%p438) target = $region68
      $region67: #{pure_mamba_forward.7} parent=59 // pred_region
        %p441 = scmp.lt.s32.totalorder %s28, 1
        %s442 = scalar_select %p441, %s28, 1
        %p443 = scmp.lt.s32.totalorder %s29, 0
        %s444 = scalar_select %p443, %s29, 0
        %s445 = sadd.s32 %s444, %s442
        %s446 = smul.addr %s445, 8
        %s447 = scalar_lea.vmem %s1, %s446
      $region68: #{pure_mamba_forward.7} parent=59 // pred_fallthru
        _
    $region60: #{pure_mamba_forward.7} parent=5 // pred_fallthru
      _
    %p448 = scmp.le.s32.totalorder 1, %s21
    %p449 = scmp.lt.s32.totalorder %s21, 3
    %p450 = pnand %p448, %p449
    %p451 = pneg %p450
    // Predicated region
    $region69: #{pure_mamba_forward.7} parent=5 // pred_check
      _
    $region70: #{pure_mamba_forward.7} parent=5 // pred_check_branch
      %453 = sbr.rel (%p450) target = $region72
    $region71: #{pure_mamba_forward.7} parent=5 // pred_region
      %s454 = ssub.s32 %s21, 1
      %p455 = scmp.lt.s32.totalorder %s30, 1
      %s456 = scalar_select %p455, %s30, 1
      %p457 = scmp.lt.s32.totalorder %s31, 0
      %s458 = scalar_select %p457, %s31, 0
      %s459 = sadd.s32 %s458, %s456
      %s460 = smul.addr %s459, 8
      %s461 = scalar_lea.vmem %s0, %s460
      %p462 = pneg %p61
      %p463 = pneg %p58
      %p464 = scmp.lt.s32.totalorder %s30, 1
      %s465 = scalar_select %p464, %s30, 1
      %p466 = scmp.lt.s32.totalorder %s31, 0
      %s467 = scalar_select %p466, %s31, 0
      %s468 = sadd.s32 %s467, %s465
      %s469 = smul.addr %s468, 8
      %s470 = scalar_lea.vmem %s1, %s469
      %p471 = pneg %p89
      %p472 = pneg %p86
      %p473 = pneg %p110
      %p474 = pneg %p107
      %p475 = pneg %p131
      %p476 = pneg %p128
      %p477 = pneg %p152
      %p478 = pneg %p149
      %p479 = pneg %p173
      %p480 = pneg %p170
      %p481 = pneg %p194
      %p482 = pneg %p191
      %p483 = pneg %p215
      %p484 = pneg %p212
      %p485 = pneg %p236
      %p486 = pneg %p233
      %p487 = pneg %p257
      %p488 = pneg %p254
      %p489 = pneg %p278
      %p490 = pneg %p275
      %p491 = pneg %p299
      %p492 = pneg %p296
      %p493 = pneg %p320
      %p494 = pneg %p317
      %p495 = pneg %p348
      %p496 = pneg %p345
      %p497 = scmp.lt.s32.totalorder %s30, 1
      %s498 = scalar_select %p497, %s30, 1
      %p499 = scmp.lt.s32.totalorder %s31, 0
      %s500 = scalar_select %p499, %s31, 0
      %s501 = sadd.s32 %s500, %s498
      %s502 = smul.addr %s501, 8
      %s503 = scalar_lea.vmem %s13, %s502
      %p504 = pneg %p376
      %p505 = pneg %p373
      %p506 = scmp.lt.s32.totalorder %s30, 1
      %s507 = scalar_select %p506, %s30, 1
      %p508 = scmp.lt.s32.totalorder %s31, 0
      %s509 = scalar_select %p508, %s31, 0
      %s510 = sadd.s32 %s509, %s507
      %s511 = smul.addr %s510, 8
      %s512 = scalar_lea.vmem %s14, %s511
      %p513 = scmp.lt.s32.totalorder %s30, 1
      %s514 = scalar_select %p513, %s30, 1
      %p515 = scmp.lt.s32.totalorder %s31, 0
      %s516 = scalar_select %p515, %s31, 0
      %s517 = sadd.s32 %s516, %s514
      %s518 = smul.addr %s517, 8
      %s519 = scalar_lea.vmem %s0, %s518
      %p520 = scmp.lt.s32.totalorder %s30, 1
      %s521 = scalar_select %p520, %s30, 1
      %p522 = scmp.lt.s32.totalorder %s31, 0
      %s523 = scalar_select %p522, %s31, 0
      %s524 = sadd.s32 %s523, %s521
      %s525 = smul.addr %s524, 8
      %s526 = scalar_lea.vmem %s1, %s525
      %p527 = scmp.lt.s32.totalorder %s30, 1
      %s528 = scalar_select %p527, %s30, 1
      %p529 = scmp.lt.s32.totalorder %s31, 0
      %s530 = scalar_select %p529, %s31, 0
      %s531 = sadd.s32 %s530, %s528
      %s532 = smul.addr %s531, 8
      %s533 = scalar_lea.vmem %s13, %s532
      %p534 = scmp.lt.s32.totalorder %s30, 1
      %s535 = scalar_select %p534, %s30, 1
      %p536 = scmp.lt.s32.totalorder %s31, 0
      %s537 = scalar_select %p536, %s31, 0
      %s538 = sadd.s32 %s537, %s535
      %s539 = smul.addr %s538, 8
      %s540 = scalar_lea.vmem %s14, %s539
      %p542 = scmp.eq.s32.totalorder %s31, 0
      // Predicated region
      $region73: #{pure_mamba_forward.7} parent=71 // pred_check
        %p543 = pneg %p542
      $region74: #{pure_mamba_forward.7} parent=71 // pred_check_branch
        %545 = sbr.rel (%p543) target = $region76
      $region75: #{pure_mamba_forward.7} parent=71 // pred_region
        %vm546 = vcmask 523264
        %547 = vst.msk [vmem:[#allocation4] sm:$0xff] %vm546, 0.0
        %548 = vst.msk [vmem:[#allocation4 + $0x8] sm:$0xff] %vm546, 0.0
        %549 = vst.msk [vmem:[#allocation4 + $0x10] sm:$0xff] %vm546, 0.0
        %550 = vst.msk [vmem:[#allocation4 + $0x18] sm:$0xff] %vm546, 0.0
        %551 = vst.msk [vmem:[#allocation4 + $0x20] sm:$0xff] %vm546, 0.0
        %552 = vst.msk [vmem:[#allocation4 + $0x28] sm:$0xff] %vm546, 0.0
        %553 = vst.msk [vmem:[#allocation4 + $0x30] sm:$0xff] %vm546, 0.0
        %554 = vst.msk [vmem:[#allocation4 + $0x38] sm:$0xff] %vm546, 0.0
        %vm555 = vcmask 518144
        %556 = vst.msk [vmem:[#allocation3] sm:$0x7] %vm555, 0.0
      $region76: #{pure_mamba_forward.7} parent=71 // pred_fallthru
        _
      %v557 = vld [vmem:[%s519] sm:$0xff]
      %v558 = vld [vmem:[%s526] sm:$0xff]
      %v559 = vadd.f32 %v557, %v558
      %v560 = vmul.f32 %v559, %v559
      %vm561 = vcmask 261120
      %v562 = vsel %vm561, %v560, 0.0
      %563 = vadd.xlane.f32.xlu0 %v562
      %v564 = vpop.xlane.xlu0 %563
      %v565 = vrcp.pop 32.0
      %v566 = vmul.f32 %v564, %v565
      %v567 = vadd.f32 %v566, 1e-05
      %v568 = vrsqrt.pop %v567
      %v569 = vmul.f32 %v559, %v568
      %v570 = vld [vmem:[%s2] sm:$0x1]
      %v572 = vlaneseq
      %v573 = vshrl.u32 %v572, 7
      %v574 = vsub.s32 0, %v573
      %v575 = vrot.slane %v570, %v574
      %v577 = vmul.f32 %v569, %v575
      %v578 = vpack.c.bf16 %v577, %v577
      %v579 = vld [vmem:[%s3] sm:$0xf]
      %v580 = vld [vmem:[%s3 + $0x4] sm:$0xf]
      %v581 = vld [vmem:[%s3 + $0x8] sm:$0xf]
      %v582 = vld [vmem:[%s3 + $0xc] sm:$0xf]
      %v587 = vunpack.c.l.b16 %v579
      %v588 = vunpack.c.l.b16 %v580
      %v589 = vunpack.c.l.b16 %v581
      %v590 = vunpack.c.l.b16 %v582
      %v591 = vpack.c.b16 %v588, %v587
      %v592 = vpack.c.b16 %v590, %v589
      %v596 = vsel %vm561, %v578, 0
      %598 = vmatprep.subr.bf16.mxu0 0
      %599 = vmatpush1.bf16.msra.mxu0 %v591
      %600 = vmatprep.subr.bf16.mxu0 0
      %601 = vmatpush1.bf16.msra.mxu0 %v592
      %602 = vmatprep.subr.bf16.mxu0 0
      %603 = vmatpush1.bf16.msra.mxu0 0
      %604 = vmatprep.subr.bf16.mxu0 0
      %605 = vmatpush1.bf16.msra.mxu0 0
      %606 = vmatprep.subr.bf16.mxu0 0
      %607 = vmatpush1.bf16.msra.mxu0 0
      %608 = vmatprep.subr.bf16.mxu0 0
      %609 = vmatpush1.bf16.msra.mxu0 0
      %610 = vmatprep.subr.bf16.mxu0 0
      %611 = vmatpush1.bf16.msra.mxu0 0
      %612 = vmatprep.subr.bf16.mxu0 0
      %613 = vmatpush1.bf16.msra.mxu0 0
      %614 = vmatprep.subr.bf16.mxu0 0
      %615 = vmatpush1.bf16.msra.mxu0 0
      %616 = vmatprep.subr.bf16.mxu0 0
      %617 = vmatpush1.bf16.msra.mxu0 0
      %618 = vmatprep.subr.bf16.mxu0 0
      %619 = vmatpush1.bf16.msra.mxu0 0
      %620 = vmatprep.subr.bf16.mxu0 0
      %621 = vmatpush1.bf16.msra.mxu0 0
      %622 = vmatprep.subr.bf16.mxu0 0
      %623 = vmatpush1.bf16.msra.mxu0 0
      %624 = vmatprep.subr.bf16.mxu0 0
      %625 = vmatpush1.bf16.msra.mxu0 0
      %626 = vmatprep.subr.bf16.mxu0 0
      %627 = vmatpush1.bf16.msra.mxu0 0
      %628 = vmatprep.subr.bf16.mxu0 0
      %629 = vmatpush1.bf16.msra.mxu0 0
      %630 = vmatprep.mubr.bf16.mxu0 0
      %631 = vmatmul.mubr.bf16.gmra.mrb[0].mxu0 %v596
      %v632 = vpop.f32.mrb[0].mxu0
      %v633 = vadd.f32 0.0, %v632
      %v634 = vpop.f32.mrb[0].mxu0
      %v635 = vpop.f32.mrb[0].mxu0
      %v636 = vpop.f32.mrb[0].mxu0
      %637 = vdwg.mxu0
      %v638 = vld [vmem:[%s4] sm:$0xf]
      %v639 = vld [vmem:[%s4 + $0x4] sm:$0xf]
      %v640 = vld [vmem:[%s4 + $0x8] sm:$0xf]
      %v641 = vld [vmem:[%s4 + $0xc] sm:$0xf]
      %v646 = vunpack.c.l.b16 %v638
      %v647 = vunpack.c.l.b16 %v639
      %v648 = vunpack.c.l.b16 %v640
      %v649 = vunpack.c.l.b16 %v641
      %v650 = vpack.c.b16 %v647, %v646
      %v651 = vpack.c.b16 %v649, %v648
      %654 = vmatprep.subr.bf16.mxu0 0
      %655 = vmatpush1.bf16.msra.mxu0 %v650
      %656 = vmatprep.subr.bf16.mxu0 0
      %657 = vmatpush1.bf16.msra.mxu0 %v651
      %658 = vmatprep.subr.bf16.mxu0 0
      %659 = vmatpush1.bf16.msra.mxu0 0
      %660 = vmatprep.subr.bf16.mxu0 0
      %661 = vmatpush1.bf16.msra.mxu0 0
      %662 = vmatprep.subr.bf16.mxu0 0
      %663 = vmatpush1.bf16.msra.mxu0 0
      %664 = vmatprep.subr.bf16.mxu0 0
      %665 = vmatpush1.bf16.msra.mxu0 0
      %666 = vmatprep.subr.bf16.mxu0 0
      %667 = vmatpush1.bf16.msra.mxu0 0
      %668 = vmatprep.subr.bf16.mxu0 0
      %669 = vmatpush1.bf16.msra.mxu0 0
      %670 = vmatprep.subr.bf16.mxu0 0
      %671 = vmatpush1.bf16.msra.mxu0 0
      %672 = vmatprep.subr.bf16.mxu0 0
      %673 = vmatpush1.bf16.msra.mxu0 0
      %674 = vmatprep.subr.bf16.mxu0 0
      %675 = vmatpush1.bf16.msra.mxu0 0
      %676 = vmatprep.subr.bf16.mxu0 0
      %677 = vmatpush1.bf16.msra.mxu0 0
      %678 = vmatprep.subr.bf16.mxu0 0
      %679 = vmatpush1.bf16.msra.mxu0 0
      %680 = vmatprep.subr.bf16.mxu0 0
      %681 = vmatpush1.bf16.msra.mxu0 0
      %682 = vmatprep.subr.bf16.mxu0 0
      %683 = vmatpush1.bf16.msra.mxu0 0
      %684 = vmatprep.subr.bf16.mxu0 0
      %685 = vmatpush1.bf16.msra.mxu0 0
      %686 = vmatprep.mubr.bf16.mxu0 0
      %687 = vmatmul.mubr.bf16.gmra.mrb[0].mxu0 %v596
      %v688 = vpop.f32.mrb[0].mxu0
      %v689 = vadd.f32 0.0, %v688
      %v690 = vpop.f32.mrb[0].mxu0
      %v691 = vpop.f32.mrb[0].mxu0
      %v692 = vpop.f32.mrb[0].mxu0
      %693 = vdwg.mxu0
      %v694 = vld [vmem:[#allocation3] sm:$0x7]
      %vm695 = vcmask 518144
      %696 = vst.msk [vmem:[#allocation2] sm:$0x7] %vm695, %v694
      %vm697 = vcmask 523264
      %698 = vst.msk [vmem:[#allocation2 + $0x3] sm:$0xff] %vm697, %v633
      %vm699 = vcmask 523269
      %700 = vst.msk [vmem:[#allocation3 - $0x5] sm:$0xe0] %vm699, %v633
      %v701 = vld [vmem:[#allocation2] sm:$0xff]
      %v702 = vld [vmem:[%s5] sm:$0x1]
      %v703 = vlaneseq
      %v704 = vshrl.u32 %v703, 7
      %v705 = vsub.s32 0, %v704
      %v706 = vrot.slane %v702, %v705
      %v707 = vmul.f32 %v701, %v706
      %v708 = vadd.f32 %v707, 0.0
      %v709 = vld [vmem:[#allocation2 + $0x1] sm:$0xff]
      %v710 = vld [vmem:[%s5 + $0x1] sm:$0x1]
      %v711 = vlaneseq
      %v712 = vshrl.u32 %v711, 7
      %v713 = vsub.s32 0, %v712
      %v714 = vrot.slane %v710, %v713
      %v715 = vmul.f32 %v709, %v714
      %v716 = vadd.f32 %v708, %v715
      %v717 = vld [vmem:[#allocation2 + $0x2] sm:$0xff]
      %v718 = vld [vmem:[%s5 + $0x2] sm:$0x1]
      %v719 = vlaneseq
      %v720 = vshrl.u32 %v719, 7
      %v721 = vsub.s32 0, %v720
      %v722 = vrot.slane %v718, %v721
      %v723 = vmul.f32 %v717, %v722
      %v724 = vadd.f32 %v716, %v723
      %v725 = vld [vmem:[#allocation2 + $0x3] sm:$0xff]
      %v726 = vld [vmem:[%s5 + $0x3] sm:$0x1]
      %v727 = vlaneseq
      %v728 = vshrl.u32 %v727, 7
      %v729 = vsub.s32 0, %v728
      %v730 = vrot.slane %v726, %v729
      %v731 = vmul.f32 %v725, %v730
      %v732 = vadd.f32 %v724, %v731
      %v733 = vld [vmem:[%s6] sm:$0x1]
      %v735 = vlaneseq
      %v736 = vshrl.u32 %v735, 7
      %v737 = vsub.s32 0, %v736
      %v738 = vrot.slane %v733, %v737
      %v740 = vadd.f32 %v732, %v738
      %v741 = vsub.f32 0.0, %v740
      %v742 = vmul.f32 %v741, 1.442695
      %v743 = vpow.pop %v742
      %v744 = vadd.f32 %v743, 1.0
      %v745 = vrcp.pop %v744
      %v746 = vmul.f32 %v740, %v745
      %v747 = vpack.c.bf16 %v746, %v746
      %v748 = vld [vmem:[%s7] sm:$0xff]
      %v749 = vld [vmem:[%s7 + $0x8] sm:$0xff]
      %v750 = vld [vmem:[%s7 + $0x10] sm:$0xff]
      %v751 = vld [vmem:[%s7 + $0x18] sm:$0xff]
      %v752 = vld [vmem:[%s7 + $0x20] sm:$0xff]
      %v753 = vld [vmem:[%s7 + $0x28] sm:$0xff]
      %v754 = vld [vmem:[%s7 + $0x30] sm:$0xff]
      %v755 = vld [vmem:[%s7 + $0x38] sm:$0xff]
      %v764 = vunpack.c.l.b16 %v748
      %v765 = vunpack.c.h.b16 %v748
      %v766 = vunpack.c.l.b16 %v749
      %v767 = vunpack.c.h.b16 %v749
      %v768 = vunpack.c.l.b16 %v750
      %v769 = vunpack.c.h.b16 %v750
      %v770 = vunpack.c.l.b16 %v751
      %v771 = vunpack.c.h.b16 %v751
      %v772 = vunpack.c.l.b16 %v752
      %v773 = vunpack.c.h.b16 %v752
      %v774 = vunpack.c.l.b16 %v753
      %v775 = vunpack.c.h.b16 %v753
      %v776 = vunpack.c.l.b16 %v754
      %v777 = vunpack.c.h.b16 %v754
      %v778 = vunpack.c.l.b16 %v755
      %v779 = vunpack.c.h.b16 %v755
      %v780 = vpack.c.b16 %v766, %v764
      %v781 = vpack.c.b16 %v767, %v765
      %v782 = vpack.c.b16 %v770, %v768
      %v783 = vpack.c.b16 %v771, %v769
      %v784 = vpack.c.b16 %v774, %v772
      %v785 = vpack.c.b16 %v775, %v773
      %v786 = vpack.c.b16 %v778, %v776
      %v787 = vpack.c.b16 %v779, %v777
      %v797 = vsel %vm697, %v747, 0
      %799 = vmatprep.subr.bf16.mxu0 %v781
      %800 = vmatpush1.bf16.msra.mxu0 %v780
      %801 = vmatprep.subr.bf16.mxu0 %v783
      %802 = vmatpush1.bf16.msra.mxu0 %v782
      %803 = vmatprep.subr.bf16.mxu0 %v785
      %804 = vmatpush1.bf16.msra.mxu0 %v784
      %805 = vmatprep.subr.bf16.mxu0 %v787
      %806 = vmatpush1.bf16.msra.mxu0 %v786
      %807 = vmatprep.subr.bf16.mxu0 0
      %808 = vmatpush1.bf16.msra.mxu0 0
      %809 = vmatprep.subr.bf16.mxu0 0
      %810 = vmatpush1.bf16.msra.mxu0 0
      %811 = vmatprep.subr.bf16.mxu0 0
      %812 = vmatpush1.bf16.msra.mxu0 0
      %813 = vmatprep.subr.bf16.mxu0 0
      %814 = vmatpush1.bf16.msra.mxu0 0
      %815 = vmatprep.subr.bf16.mxu0 0
      %816 = vmatpush1.bf16.msra.mxu0 0
      %817 = vmatprep.subr.bf16.mxu0 0
      %818 = vmatpush1.bf16.msra.mxu0 0
      %819 = vmatprep.subr.bf16.mxu0 0
      %820 = vmatpush1.bf16.msra.mxu0 0
      %821 = vmatprep.subr.bf16.mxu0 0
      %822 = vmatpush1.bf16.msra.mxu0 0
      %823 = vmatprep.subr.bf16.mxu0 0
      %824 = vmatpush1.bf16.msra.mxu0 0
      %825 = vmatprep.subr.bf16.mxu0 0
      %826 = vmatpush1.bf16.msra.mxu0 0
      %827 = vmatprep.subr.bf16.mxu0 0
      %828 = vmatpush1.bf16.msra.mxu0 0
      %829 = vmatprep.subr.bf16.mxu0 0
      %830 = vmatpush1.bf16.msra.mxu0 0
      %831 = vmatprep.mubr.bf16.mxu0 0
      %832 = vmatmul.mubr.bf16.gmra.mrb[0].mxu0 %v797
      %v833 = vpop.f32.mrb[0].mxu0
      %v834 = vadd.f32 0.0, %v833
      %v835 = vpop.f32.mrb[0].mxu0
      %v836 = vadd.f32 0.0, %v835
      %v837 = vpop.f32.mrb[0].mxu0
      %v838 = vpop.f32.mrb[0].mxu0
      %839 = vdwg.mxu0
      %v840 = vpack.c.bf16 %v834, %v834
      %v841 = vld [vmem:[%s8] sm:$0xf]
      %v842 = vld [vmem:[%s8 + $0x4] sm:$0xf]
      %v843 = vld [vmem:[%s8 + $0x8] sm:$0xf]
      %v844 = vld [vmem:[%s8 + $0xc] sm:$0xf]
      %v845 = vld [vmem:[%s8 + $0x10] sm:$0xf]
      %v846 = vld [vmem:[%s8 + $0x14] sm:$0xf]
      %v847 = vld [vmem:[%s8 + $0x18] sm:$0xf]
      %v848 = vld [vmem:[%s8 + $0x1c] sm:$0xf]
      %v849 = vld [vmem:[%s8 + $0x20] sm:$0xf]
      %v850 = vld [vmem:[%s8 + $0x24] sm:$0xf]
      %v851 = vld [vmem:[%s8 + $0x28] sm:$0xf]
      %v852 = vld [vmem:[%s8 + $0x2c] sm:$0xf]
      %v853 = vld [vmem:[%s8 + $0x30] sm:$0xf]
      %v854 = vld [vmem:[%s8 + $0x34] sm:$0xf]
      %v855 = vld [vmem:[%s8 + $0x38] sm:$0xf]
      %v856 = vld [vmem:[%s8 + $0x3c] sm:$0xf]
      %v857 = vld [vmem:[%s9] sm:$0x1]
      %v859 = vlaneseq
      %v860 = vshrl.u32 %v859, 7
      %v861 = vsub.s32 0, %v860
      %v862 = vrot.slane %v857, %v861
      %v880 = vunpack.c.l.b16 %v841
      %v881 = vunpack.c.l.b16 %v842
      %v882 = vunpack.c.l.b16 %v843
      %v883 = vunpack.c.l.b16 %v844
      %v884 = vunpack.c.l.b16 %v845
      %v885 = vunpack.c.l.b16 %v846
      %v886 = vunpack.c.l.b16 %v847
      %v887 = vunpack.c.l.b16 %v848
      %v888 = vunpack.c.l.b16 %v849
      %v889 = vunpack.c.l.b16 %v850
      %v890 = vunpack.c.l.b16 %v851
      %v891 = vunpack.c.l.b16 %v852
      %v892 = vunpack.c.l.b16 %v853
      %v893 = vunpack.c.l.b16 %v854
      %v894 = vunpack.c.l.b16 %v855
      %v895 = vunpack.c.l.b16 %v856
      %v896 = vpack.c.b16 %v881, %v880
      %v897 = vpack.c.b16 %v883, %v882
      %v898 = vpack.c.b16 %v885, %v884
      %v899 = vpack.c.b16 %v887, %v886
      %v900 = vpack.c.b16 %v889, %v888
      %v901 = vpack.c.b16 %v891, %v890
      %v902 = vpack.c.b16 %v893, %v892
      %v903 = vpack.c.b16 %v895, %v894
      %912 = vmatprep.subr.bf16.mxu0 0
      %913 = vmatpush1.bf16.msra.mxu0 %v896
      %914 = vmatprep.subr.bf16.mxu0 0
      %915 = vmatpush1.bf16.msra.mxu0 %v897
      %916 = vmatprep.subr.bf16.mxu0 0
      %917 = vmatpush1.bf16.msra.mxu0 %v898
      %918 = vmatprep.subr.bf16.mxu0 0
      %919 = vmatpush1.bf16.msra.mxu0 %v899
      %920 = vmatprep.subr.bf16.mxu0 0
      %921 = vmatpush1.bf16.msra.mxu0 %v900
      %922 = vmatprep.subr.bf16.mxu0 0
      %923 = vmatpush1.bf16.msra.mxu0 %v901
      %924 = vmatprep.subr.bf16.mxu0 0
      %925 = vmatpush1.bf16.msra.mxu0 %v902
      %926 = vmatprep.subr.bf16.mxu0 0
      %927 = vmatpush1.bf16.msra.mxu0 %v903
      %928 = vmatprep.subr.bf16.mxu0 0
      %929 = vmatpush1.bf16.msra.mxu0 0
      %930 = vmatprep.subr.bf16.mxu0 0
      %931 = vmatpush1.bf16.msra.mxu0 0
      %932 = vmatprep.subr.bf16.mxu0 0
      %933 = vmatpush1.bf16.msra.mxu0 0
      %934 = vmatprep.subr.bf16.mxu0 0
      %935 = vmatpush1.bf16.msra.mxu0 0
      %936 = vmatprep.subr.bf16.mxu0 0
      %937 = vmatpush1.bf16.msra.mxu0 0
      %938 = vmatprep.subr.bf16.mxu0 0
      %939 = vmatpush1.bf16.msra.mxu0 0
      %940 = vmatprep.subr.bf16.mxu0 0
      %941 = vmatpush1.bf16.msra.mxu0 0
      %942 = vmatprep.subr.bf16.mxu0 0
      %943 = vmatpush1.bf16.msra.mxu0 0
      %944 = vmatprep.mubr.bf16.mxu0 0
      %945 = vmatmul.mubr.bf16.gmra.mrb[0].mxu0 %v840
      %v946 = vpop.f32.mrb[0].mxu0
      %v947 = vadd.f32 %v862, %v946
      %v948 = vpop.f32.mrb[0].mxu0
      %v949 = vpop.f32.mrb[0].mxu0
      %v950 = vpop.f32.mrb[0].mxu0
      %951 = vdwg.mxu0
      %vm952 = vcmp.gt.f32.partialorder %v947, 20.0
      %v953 = vmin.f32 %v947, 20.0
      %v954 = vmul.f32 %v953, 1.442695
      %v955 = vpow.pop %v954
      %v956 = vadd.f32 %v955, 1.0
      %v957 = vlog2.pop %v956
      %v958 = vmul.f32 %v957, 0.6931472
      %v959 = vsel %vm952, %v947, %v958
      %960 = vst.msk [vmem:[#allocation5] sm:$0xff] %vm697, %v959
      %v961 = vmul.f32 %v959, %v746
      %962 = vst.msk [vmem:[#allocation6] sm:$0xff] %vm697, %v961
      %963 = vst [vmem:[#allocation7] sm:$0xff] %v836
      %v964 = vld [vmem:[%s10] sm:$0xff]
      %v965 = vld [vmem:[%s10 + $0x8] sm:$0xff]
      %v966 = vld [vmem:[%s10 + $0x10] sm:$0xff]
      %v967 = vld [vmem:[%s10 + $0x18] sm:$0xff]
      %v968 = vld [vmem:[%s10 + $0x20] sm:$0xff]
      %v969 = vld [vmem:[%s10 + $0x28] sm:$0xff]
      %v970 = vld [vmem:[%s10 + $0x30] sm:$0xff]
      %v971 = vld [vmem:[%s10 + $0x38] sm:$0xff]
      %v972 = vld [vmem:[#allocation4] sm:$0xff]
      %v973 = vld [vmem:[#allocation4 + $0x8] sm:$0xff]
      %v974 = vld [vmem:[#allocation4 + $0x10] sm:$0xff]
      %v975 = vld [vmem:[#allocation4 + $0x18] sm:$0xff]
      %v976 = vld [vmem:[#allocation4 + $0x20] sm:$0xff]
      %v977 = vld [vmem:[#allocation4 + $0x28] sm:$0xff]
      %v978 = vld [vmem:[#allocation4 + $0x30] sm:$0xff]
      %v979 = vld [vmem:[#allocation4 + $0x38] sm:$0xff]
      %v980 = vld [vmem:[#allocation5] sm:$0xff]
      %v981 = vld [vmem:[#allocation6] sm:$0xff]
      %v982 = vld [vmem:[#allocation7] sm:$0xff]
      %983 = vxpose.xlu0.b32.start [1/16] %v982, 128
      %984 = vxpose.xlu0.b32.cont [2/16] 0.0, 128
      %985 = vxpose.xlu0.b32.cont [3/16] 0.0, 128
      %986 = vxpose.xlu0.b32.cont [4/16] 0.0, 128
      %987 = vxpose.xlu0.b32.cont [5/16] 0.0, 128
      %988 = vxpose.xlu0.b32.cont [6/16] 0.0, 128
      %989 = vxpose.xlu0.b32.cont [7/16] 0.0, 128
      %990 = vxpose.xlu0.b32.cont [8/16] 0.0, 128
      %991 = vxpose.xlu0.b32.cont [9/16] 0.0, 128
      %992 = vxpose.xlu0.b32.cont [10/16] 0.0, 128
      %993 = vxpose.xlu0.b32.cont [11/16] 0.0, 128
      %994 = vxpose.xlu0.b32.cont [12/16] 0.0, 128
      %995 = vxpose.xlu0.b32.cont [13/16] 0.0, 128
      %996 = vxpose.xlu0.b32.cont [14/16] 0.0, 128
      %997 = vxpose.xlu0.b32.cont [15/16] 0.0, 128
      %998 = vxpose.xlu0.b32.end [16/16] 0.0, 128
      %v999 = vpop.trf.xlu0
      %v1000 = vpop.trf.xlu0
      %v1001 = vpop.trf.xlu0
      %v1002 = vpop.trf.xlu0
      %v1003 = vpop.trf.xlu0
      %v1004 = vpop.trf.xlu0
      %v1005 = vpop.trf.xlu0
      %v1006 = vpop.trf.xlu0
      %v1007 = vpop.trf.xlu0
      %v1008 = vpop.trf.xlu0
      %v1009 = vpop.trf.xlu0
      %v1010 = vpop.trf.xlu0
      %v1011 = vpop.trf.xlu0
      %v1012 = vpop.trf.xlu0
      %v1013 = vpop.trf.xlu0
      %v1014 = vpop.trf.xlu0
      %v1015 = vlaneseq
      %v1016 = vshrl.u32 %v1015, 7
      %v1017 = vsub.s32 0, %v1016
      %v1018 = vrot.slane %v980, %v1017
      %v1019 = vmul.f32 %v964, %v1018
      %v1020 = vmul.f32 %v965, %v1018
      %v1021 = vmul.f32 %v966, %v1018
      %v1022 = vmul.f32 %v967, %v1018
      %v1023 = vmul.f32 %v968, %v1018
      %v1024 = vmul.f32 %v969, %v1018
      %v1025 = vmul.f32 %v970, %v1018
      %v1026 = vmul.f32 %v971, %v1018
      %v1027 = vmul.f32 %v1019, 1.442695
      %v1028 = vpow.pop %v1027
      %v1029 = vmul.f32 %v1020, 1.442695
      %v1030 = vpow.pop %v1029
      %v1031 = vmul.f32 %v1021, 1.442695
      %v1032 = vpow.pop %v1031
      %v1033 = vmul.f32 %v1022, 1.442695
      %v1034 = vpow.pop %v1033
      %v1035 = vmul.f32 %v1023, 1.442695
      %v1036 = vpow.pop %v1035
      %v1037 = vmul.f32 %v1024, 1.442695
      %v1038 = vpow.pop %v1037
      %v1039 = vmul.f32 %v1025, 1.442695
      %v1040 = vpow.pop %v1039
      %v1041 = vmul.f32 %v1026, 1.442695
      %v1042 = vpow.pop %v1041
      %v1043 = vlaneseq
      %v1044 = vshrl.u32 %v1043, 7
      %v1045 = vsub.s32 1, %v1044
      %v1046 = vrot.slane %v980, %v1045
      %v1047 = vmul.f32 %v964, %v1046
      %v1048 = vmul.f32 %v965, %v1046
      %v1049 = vmul.f32 %v966, %v1046
      %v1050 = vmul.f32 %v967, %v1046
      %v1051 = vmul.f32 %v968, %v1046
      %v1052 = vmul.f32 %v969, %v1046
      %v1053 = vmul.f32 %v970, %v1046
      %v1054 = vmul.f32 %v971, %v1046
      %v1055 = vmul.f32 %v1047, 1.442695
      %v1056 = vpow.pop %v1055
      %v1057 = vmul.f32 %v1048, 1.442695
      %v1058 = vpow.pop %v1057
      %v1059 = vmul.f32 %v1049, 1.442695
      %v1060 = vpow.pop %v1059
      %v1061 = vmul.f32 %v1050, 1.442695
      %v1062 = vpow.pop %v1061
      %v1063 = vmul.f32 %v1051, 1.442695
      %v1064 = vpow.pop %v1063
      %v1065 = vmul.f32 %v1052, 1.442695
      %v1066 = vpow.pop %v1065
      %v1067 = vmul.f32 %v1053, 1.442695
      %v1068 = vpow.pop %v1067
      %v1069 = vmul.f32 %v1054, 1.442695
      %v1070 = vpow.pop %v1069
      %v1071 = vlaneseq
      %v1072 = vshrl.u32 %v1071, 7
      %v1073 = vsub.s32 2, %v1072
      %v1074 = vrot.slane %v980, %v1073
      %v1075 = vmul.f32 %v964, %v1074
      %v1076 = vmul.f32 %v965, %v1074
      %v1077 = vmul.f32 %v966, %v1074
      %v1078 = vmul.f32 %v967, %v1074
      %v1079 = vmul.f32 %v968, %v1074
      %v1080 = vmul.f32 %v969, %v1074
      %v1081 = vmul.f32 %v970, %v1074
      %v1082 = vmul.f32 %v971, %v1074
      %v1083 = vmul.f32 %v1075, 1.442695
      %v1084 = vpow.pop %v1083
      %v1085 = vmul.f32 %v1076, 1.442695
      %v1086 = vpow.pop %v1085
      %v1087 = vmul.f32 %v1077, 1.442695
      %v1088 = vpow.pop %v1087
      %v1089 = vmul.f32 %v1078, 1.442695
      %v1090 = vpow.pop %v1089
      %v1091 = vmul.f32 %v1079, 1.442695
      %v1092 = vpow.pop %v1091
      %v1093 = vmul.f32 %v1080, 1.442695
      %v1094 = vpow.pop %v1093
      %v1095 = vmul.f32 %v1081, 1.442695
      %v1096 = vpow.pop %v1095
      %v1097 = vmul.f32 %v1082, 1.442695
      %v1098 = vpow.pop %v1097
      %v1099 = vlaneseq
      %v1100 = vshrl.u32 %v1099, 7
      %v1101 = vsub.s32 3, %v1100
      %v1102 = vrot.slane %v980, %v1101
      %v1103 = vmul.f32 %v964, %v1102
      %v1104 = vmul.f32 %v965, %v1102
      %v1105 = vmul.f32 %v966, %v1102
      %v1106 = vmul.f32 %v967, %v1102
      %v1107 = vmul.f32 %v968, %v1102
      %v1108 = vmul.f32 %v969, %v1102
      %v1109 = vmul.f32 %v970, %v1102
      %v1110 = vmul.f32 %v971, %v1102
      %v1111 = vmul.f32 %v1103, 1.442695
      %v1112 = vpow.pop %v1111
      %v1113 = vmul.f32 %v1104, 1.442695
      %v1114 = vpow.pop %v1113
      %v1115 = vmul.f32 %v1105, 1.442695
      %v1116 = vpow.pop %v1115
      %v1117 = vmul.f32 %v1106, 1.442695
      %v1118 = vpow.pop %v1117
      %v1119 = vmul.f32 %v1107, 1.442695
      %v1120 = vpow.pop %v1119
      %v1121 = vmul.f32 %v1108, 1.442695
      %v1122 = vpow.pop %v1121
      %v1123 = vmul.f32 %v1109, 1.442695
      %v1124 = vpow.pop %v1123
      %v1125 = vmul.f32 %v1110, 1.442695
      %v1126 = vpow.pop %v1125
      %v1127 = vlaneseq
      %v1128 = vshrl.u32 %v1127, 7
      %v1129 = vsub.s32 4, %v1128
      %v1130 = vrot.slane %v980, %v1129
      %v1131 = vmul.f32 %v964, %v1130
      %v1132 = vmul.f32 %v965, %v1130
      %v1133 = vmul.f32 %v966, %v1130
      %v1134 = vmul.f32 %v967, %v1130
      %v1135 = vmul.f32 %v968, %v1130
      %v1136 = vmul.f32 %v969, %v1130
      %v1137 = vmul.f32 %v970, %v1130
      %v1138 = vmul.f32 %v971, %v1130
      %v1139 = vmul.f32 %v1131, 1.442695
      %v1140 = vpow.pop %v1139
      %v1141 = vmul.f32 %v1132, 1.442695
      %v1142 = vpow.pop %v1141
      %v1143 = vmul.f32 %v1133, 1.442695
      %v1144 = vpow.pop %v1143
      %v1145 = vmul.f32 %v1134, 1.442695
      %v1146 = vpow.pop %v1145
      %v1147 = vmul.f32 %v1135, 1.442695
      %v1148 = vpow.pop %v1147
      %v1149 = vmul.f32 %v1136, 1.442695
      %v1150 = vpow.pop %v1149
      %v1151 = vmul.f32 %v1137, 1.442695
      %v1152 = vpow.pop %v1151
      %v1153 = vmul.f32 %v1138, 1.442695
      %v1154 = vpow.pop %v1153
      %v1155 = vlaneseq
      %v1156 = vshrl.u32 %v1155, 7
      %v1157 = vsub.s32 5, %v1156
      %v1158 = vrot.slane %v980, %v1157
      %v1159 = vmul.f32 %v964, %v1158
      %v1160 = vmul.f32 %v965, %v1158
      %v1161 = vmul.f32 %v966, %v1158
      %v1162 = vmul.f32 %v967, %v1158
      %v1163 = vmul.f32 %v968, %v1158
      %v1164 = vmul.f32 %v969, %v1158
      %v1165 = vmul.f32 %v970, %v1158
      %v1166 = vmul.f32 %v971, %v1158
      %v1167 = vmul.f32 %v1159, 1.442695
      %v1168 = vpow.pop %v1167
      %v1169 = vmul.f32 %v1160, 1.442695
      %v1170 = vpow.pop %v1169
      %v1171 = vmul.f32 %v1161, 1.442695
      %v1172 = vpow.pop %v1171
      %v1173 = vmul.f32 %v1162, 1.442695
      %v1174 = vpow.pop %v1173
      %v1175 = vmul.f32 %v1163, 1.442695
      %v1176 = vpow.pop %v1175
      %v1177 = vmul.f32 %v1164, 1.442695
      %v1178 = vpow.pop %v1177
      %v1179 = vmul.f32 %v1165, 1.442695
      %v1180 = vpow.pop %v1179
      %v1181 = vmul.f32 %v1166, 1.442695
      %v1182 = vpow.pop %v1181
      %v1183 = vlaneseq
      %v1184 = vshrl.u32 %v1183, 7
      %v1185 = vsub.s32 6, %v1184
      %v1186 = vrot.slane %v980, %v1185
      %v1187 = vmul.f32 %v964, %v1186
      %v1188 = vmul.f32 %v965, %v1186
      %v1189 = vmul.f32 %v966, %v1186
      %v1190 = vmul.f32 %v967, %v1186
      %v1191 = vmul.f32 %v968, %v1186
      %v1192 = vmul.f32 %v969, %v1186
      %v1193 = vmul.f32 %v970, %v1186
      %v1194 = vmul.f32 %v971, %v1186
      %v1195 = vmul.f32 %v1187, 1.442695
      %v1196 = vpow.pop %v1195
      %v1197 = vmul.f32 %v1188, 1.442695
      %v1198 = vpow.pop %v1197
      %v1199 = vmul.f32 %v1189, 1.442695
      %v1200 = vpow.pop %v1199
      %v1201 = vmul.f32 %v1190, 1.442695
      %v1202 = vpow.pop %v1201
      %v1203 = vmul.f32 %v1191, 1.442695
      %v1204 = vpow.pop %v1203
      %v1205 = vmul.f32 %v1192, 1.442695
      %v1206 = vpow.pop %v1205
      %v1207 = vmul.f32 %v1193, 1.442695
      %v1208 = vpow.pop %v1207
      %v1209 = vmul.f32 %v1194, 1.442695
      %v1210 = vpow.pop %v1209
      %v1211 = vlaneseq
      %v1212 = vshrl.u32 %v1211, 7
      %v1213 = vsub.s32 7, %v1212
      %v1214 = vrot.slane %v980, %v1213
      %v1215 = vmul.f32 %v964, %v1214
      %v1216 = vmul.f32 %v965, %v1214
      %v1217 = vmul.f32 %v966, %v1214
      %v1218 = vmul.f32 %v967, %v1214
      %v1219 = vmul.f32 %v968, %v1214
      %v1220 = vmul.f32 %v969, %v1214
      %v1221 = vmul.f32 %v970, %v1214
      %v1222 = vmul.f32 %v971, %v1214
      %v1223 = vmul.f32 %v1215, 1.442695
      %v1224 = vpow.pop %v1223
      %v1225 = vmul.f32 %v1216, 1.442695
      %v1226 = vpow.pop %v1225
      %v1227 = vmul.f32 %v1217, 1.442695
      %v1228 = vpow.pop %v1227
      %v1229 = vmul.f32 %v1218, 1.442695
      %v1230 = vpow.pop %v1229
      %v1231 = vmul.f32 %v1219, 1.442695
      %v1232 = vpow.pop %v1231
      %v1233 = vmul.f32 %v1220, 1.442695
      %v1234 = vpow.pop %v1233
      %v1235 = vmul.f32 %v1221, 1.442695
      %v1236 = vpow.pop %v1235
      %v1237 = vmul.f32 %v1222, 1.442695
      %v1238 = vpow.pop %v1237
      %1240 = vset.pattern.permute.xlu0 0
      %1241 = vperm.xlu0 %1240, %v999
      %v1242 = vpop.permute.xlu0 %1241
      %1245 = vset.pattern.permute.xlu0 0
      %1246 = vperm.xlu0 %1245, %v1000
      %v1247 = vpop.permute.xlu0 %1246
      %1250 = vset.pattern.permute.xlu0 0
      %1251 = vperm.xlu0 %1250, %v1001
      %v1252 = vpop.permute.xlu0 %1251
      %1255 = vset.pattern.permute.xlu0 0
      %1256 = vperm.xlu0 %1255, %v1002
      %v1257 = vpop.permute.xlu0 %1256
      %1260 = vset.pattern.permute.xlu0 0
      %1261 = vperm.xlu0 %1260, %v1003
      %v1262 = vpop.permute.xlu0 %1261
      %1265 = vset.pattern.permute.xlu0 0
      %1266 = vperm.xlu0 %1265, %v1004
      %v1267 = vpop.permute.xlu0 %1266
      %1270 = vset.pattern.permute.xlu0 0
      %1271 = vperm.xlu0 %1270, %v1005
      %v1272 = vpop.permute.xlu0 %1271
      %1275 = vset.pattern.permute.xlu0 0
      %1276 = vperm.xlu0 %1275, %v1006
      %v1277 = vpop.permute.xlu0 %1276
      %v1279 = vlaneseq
      %v1280 = vshrl.u32 %v1279, 7
      %v1281 = vsub.s32 0, %v1280
      %v1282 = vrot.slane %v981, %v1281
      %v1283 = vmul.f32 %v1242, %v1282
      %v1284 = vmul.f32 %v1247, %v1282
      %v1285 = vmul.f32 %v1252, %v1282
      %v1286 = vmul.f32 %v1257, %v1282
      %v1287 = vmul.f32 %v1262, %v1282
      %v1288 = vmul.f32 %v1267, %v1282
      %v1289 = vmul.f32 %v1272, %v1282
      %v1290 = vmul.f32 %v1277, %v1282
      %1291 = vset.pattern.permute.xlu0 1
      %1292 = vperm.xlu0 %1291, %v999
      %v1293 = vpop.permute.xlu0 %1292
      %1295 = vset.pattern.permute.xlu0 1
      %1296 = vperm.xlu0 %1295, %v1000
      %v1297 = vpop.permute.xlu0 %1296
      %1299 = vset.pattern.permute.xlu0 1
      %1300 = vperm.xlu0 %1299, %v1001
      %v1301 = vpop.permute.xlu0 %1300
      %1303 = vset.pattern.permute.xlu0 1
      %1304 = vperm.xlu0 %1303, %v1002
      %v1305 = vpop.permute.xlu0 %1304
      %1307 = vset.pattern.permute.xlu0 1
      %1308 = vperm.xlu0 %1307, %v1003
      %v1309 = vpop.permute.xlu0 %1308
      %1311 = vset.pattern.permute.xlu0 1
      %1312 = vperm.xlu0 %1311, %v1004
      %v1313 = vpop.permute.xlu0 %1312
      %1315 = vset.pattern.permute.xlu0 1
      %1316 = vperm.xlu0 %1315, %v1005
      %v1317 = vpop.permute.xlu0 %1316
      %1319 = vset.pattern.permute.xlu0 1
      %1320 = vperm.xlu0 %1319, %v1006
      %v1321 = vpop.permute.xlu0 %1320
      %v1323 = vlaneseq
      %v1324 = vshrl.u32 %v1323, 7
      %v1325 = vsub.s32 1, %v1324
      %v1326 = vrot.slane %v981, %v1325
      %v1327 = vmul.f32 %v1293, %v1326
      %v1328 = vmul.f32 %v1297, %v1326
      %v1329 = vmul.f32 %v1301, %v1326
      %v1330 = vmul.f32 %v1305, %v1326
      %v1331 = vmul.f32 %v1309, %v1326
      %v1332 = vmul.f32 %v1313, %v1326
      %v1333 = vmul.f32 %v1317, %v1326
      %v1334 = vmul.f32 %v1321, %v1326
      %1335 = vset.pattern.permute.xlu0 2
      %1336 = vperm.xlu0 %1335, %v999
      %v1337 = vpop.permute.xlu0 %1336
      %1339 = vset.pattern.permute.xlu0 2
      %1340 = vperm.xlu0 %1339, %v1000
      %v1341 = vpop.permute.xlu0 %1340
      %1343 = vset.pattern.permute.xlu0 2
      %1344 = vperm.xlu0 %1343, %v1001
      %v1345 = vpop.permute.xlu0 %1344
      %1347 = vset.pattern.permute.xlu0 2
      %1348 = vperm.xlu0 %1347, %v1002
      %v1349 = vpop.permute.xlu0 %1348
      %1351 = vset.pattern.permute.xlu0 2
      %1352 = vperm.xlu0 %1351, %v1003
      %v1353 = vpop.permute.xlu0 %1352
      %1355 = vset.pattern.permute.xlu0 2
      %1356 = vperm.xlu0 %1355, %v1004
      %v1357 = vpop.permute.xlu0 %1356
      %1359 = vset.pattern.permute.xlu0 2
      %1360 = vperm.xlu0 %1359, %v1005
      %v1361 = vpop.permute.xlu0 %1360
      %1363 = vset.pattern.permute.xlu0 2
      %1364 = vperm.xlu0 %1363, %v1006
      %v1365 = vpop.permute.xlu0 %1364
      %v1367 = vlaneseq
      %v1368 = vshrl.u32 %v1367, 7
      %v1369 = vsub.s32 2, %v1368
      %v1370 = vrot.slane %v981, %v1369
      %v1371 = vmul.f32 %v1337, %v1370
      %v1372 = vmul.f32 %v1341, %v1370
      %v1373 = vmul.f32 %v1345, %v1370
      %v1374 = vmul.f32 %v1349, %v1370
      %v1375 = vmul.f32 %v1353, %v1370
      %v1376 = vmul.f32 %v1357, %v1370
      %v1377 = vmul.f32 %v1361, %v1370
      %v1378 = vmul.f32 %v1365, %v1370
      %1379 = vset.pattern.permute.xlu0 3
      %1380 = vperm.xlu0 %1379, %v999
      %v1381 = vpop.permute.xlu0 %1380
      %1383 = vset.pattern.permute.xlu0 3
      %1384 = vperm.xlu0 %1383, %v1000
      %v1385 = vpop.permute.xlu0 %1384
      %1387 = vset.pattern.permute.xlu0 3
      %1388 = vperm.xlu0 %1387, %v1001
      %v1389 = vpop.permute.xlu0 %1388
      %1391 = vset.pattern.permute.xlu0 3
      %1392 = vperm.xlu0 %1391, %v1002
      %v1393 = vpop.permute.xlu0 %1392
      %1395 = vset.pattern.permute.xlu0 3
      %1396 = vperm.xlu0 %1395, %v1003
      %v1397 = vpop.permute.xlu0 %1396
      %1399 = vset.pattern.permute.xlu0 3
      %1400 = vperm.xlu0 %1399, %v1004
      %v1401 = vpop.permute.xlu0 %1400
      %1403 = vset.pattern.permute.xlu0 3
      %1404 = vperm.xlu0 %1403, %v1005
      %v1405 = vpop.permute.xlu0 %1404
      %1407 = vset.pattern.permute.xlu0 3
      %1408 = vperm.xlu0 %1407, %v1006
      %v1409 = vpop.permute.xlu0 %1408
      %v1411 = vlaneseq
      %v1412 = vshrl.u32 %v1411, 7
      %v1413 = vsub.s32 3, %v1412
      %v1414 = vrot.slane %v981, %v1413
      %v1415 = vmul.f32 %v1381, %v1414
      %v1416 = vmul.f32 %v1385, %v1414
      %v1417 = vmul.f32 %v1389, %v1414
      %v1418 = vmul.f32 %v1393, %v1414
      %v1419 = vmul.f32 %v1397, %v1414
      %v1420 = vmul.f32 %v1401, %v1414
      %v1421 = vmul.f32 %v1405, %v1414
      %v1422 = vmul.f32 %v1409, %v1414
      %1423 = vset.pattern.permute.xlu0 4
      %1424 = vperm.xlu0 %1423, %v999
      %v1425 = vpop.permute.xlu0 %1424
      %1427 = vset.pattern.permute.xlu0 4
      %1428 = vperm.xlu0 %1427, %v1000
      %v1429 = vpop.permute.xlu0 %1428
      %1431 = vset.pattern.permute.xlu0 4
      %1432 = vperm.xlu0 %1431, %v1001
      %v1433 = vpop.permute.xlu0 %1432
      %1435 = vset.pattern.permute.xlu0 4
      %1436 = vperm.xlu0 %1435, %v1002
      %v1437 = vpop.permute.xlu0 %1436
      %1439 = vset.pattern.permute.xlu0 4
      %1440 = vperm.xlu0 %1439, %v1003
      %v1441 = vpop.permute.xlu0 %1440
      %1443 = vset.pattern.permute.xlu0 4
      %1444 = vperm.xlu0 %1443, %v1004
      %v1445 = vpop.permute.xlu0 %1444
      %1447 = vset.pattern.permute.xlu0 4
      %1448 = vperm.xlu0 %1447, %v1005
      %v1449 = vpop.permute.xlu0 %1448
      %1451 = vset.pattern.permute.xlu0 4
      %1452 = vperm.xlu0 %1451, %v1006
      %v1453 = vpop.permute.xlu0 %1452
      %v1455 = vlaneseq
      %v1456 = vshrl.u32 %v1455, 7
      %v1457 = vsub.s32 4, %v1456
      %v1458 = vrot.slane %v981, %v1457
      %v1459 = vmul.f32 %v1425, %v1458
      %v1460 = vmul.f32 %v1429, %v1458
      %v1461 = vmul.f32 %v1433, %v1458
      %v1462 = vmul.f32 %v1437, %v1458
      %v1463 = vmul.f32 %v1441, %v1458
      %v1464 = vmul.f32 %v1445, %v1458
      %v1465 = vmul.f32 %v1449, %v1458
      %v1466 = vmul.f32 %v1453, %v1458
      %1467 = vset.pattern.permute.xlu0 5
      %1468 = vperm.xlu0 %1467, %v999
      %v1469 = vpop.permute.xlu0 %1468
      %1471 = vset.pattern.permute.xlu0 5
      %1472 = vperm.xlu0 %1471, %v1000
      %v1473 = vpop.permute.xlu0 %1472
      %1475 = vset.pattern.permute.xlu0 5
      %1476 = vperm.xlu0 %1475, %v1001
      %v1477 = vpop.permute.xlu0 %1476
      %1479 = vset.pattern.permute.xlu0 5
      %1480 = vperm.xlu0 %1479, %v1002
      %v1481 = vpop.permute.xlu0 %1480
      %1483 = vset.pattern.permute.xlu0 5
      %1484 = vperm.xlu0 %1483, %v1003
      %v1485 = vpop.permute.xlu0 %1484
      %1487 = vset.pattern.permute.xlu0 5
      %1488 = vperm.xlu0 %1487, %v1004
      %v1489 = vpop.permute.xlu0 %1488
      %1491 = vset.pattern.permute.xlu0 5
      %1492 = vperm.xlu0 %1491, %v1005
      %v1493 = vpop.permute.xlu0 %1492
      %1495 = vset.pattern.permute.xlu0 5
      %1496 = vperm.xlu0 %1495, %v1006
      %v1497 = vpop.permute.xlu0 %1496
      %v1499 = vlaneseq
      %v1500 = vshrl.u32 %v1499, 7
      %v1501 = vsub.s32 5, %v1500
      %v1502 = vrot.slane %v981, %v1501
      %v1503 = vmul.f32 %v1469, %v1502
      %v1504 = vmul.f32 %v1473, %v1502
      %v1505 = vmul.f32 %v1477, %v1502
      %v1506 = vmul.f32 %v1481, %v1502
      %v1507 = vmul.f32 %v1485, %v1502
      %v1508 = vmul.f32 %v1489, %v1502
      %v1509 = vmul.f32 %v1493, %v1502
      %v1510 = vmul.f32 %v1497, %v1502
      %1511 = vset.pattern.permute.xlu0 6
      %1512 = vperm.xlu0 %1511, %v999
      %v1513 = vpop.permute.xlu0 %1512
      %1515 = vset.pattern.permute.xlu0 6
      %1516 = vperm.xlu0 %1515, %v1000
      %v1517 = vpop.permute.xlu0 %1516
      %1519 = vset.pattern.permute.xlu0 6
      %1520 = vperm.xlu0 %1519, %v1001
      %v1521 = vpop.permute.xlu0 %1520
      %1523 = vset.pattern.permute.xlu0 6
      %1524 = vperm.xlu0 %1523, %v1002
      %v1525 = vpop.permute.xlu0 %1524
      %1527 = vset.pattern.permute.xlu0 6
      %1528 = vperm.xlu0 %1527, %v1003
      %v1529 = vpop.permute.xlu0 %1528
      %1531 = vset.pattern.permute.xlu0 6
      %1532 = vperm.xlu0 %1531, %v1004
      %v1533 = vpop.permute.xlu0 %1532
      %1535 = vset.pattern.permute.xlu0 6
      %1536 = vperm.xlu0 %1535, %v1005
      %v1537 = vpop.permute.xlu0 %1536
      %1539 = vset.pattern.permute.xlu0 6
      %1540 = vperm.xlu0 %1539, %v1006
      %v1541 = vpop.permute.xlu0 %1540
      %v1543 = vlaneseq
      %v1544 = vshrl.u32 %v1543, 7
      %v1545 = vsub.s32 6, %v1544
      %v1546 = vrot.slane %v981, %v1545
      %v1547 = vmul.f32 %v1513, %v1546
      %v1548 = vmul.f32 %v1517, %v1546
      %v1549 = vmul.f32 %v1521, %v1546
      %v1550 = vmul.f32 %v1525, %v1546
      %v1551 = vmul.f32 %v1529, %v1546
      %v1552 = vmul.f32 %v1533, %v1546
      %v1553 = vmul.f32 %v1537, %v1546
      %v1554 = vmul.f32 %v1541, %v1546
      %1555 = vset.pattern.permute.xlu0 7
      %1556 = vperm.xlu0 %1555, %v999
      %v1557 = vpop.permute.xlu0 %1556
      %1559 = vset.pattern.permute.xlu0 7
      %1560 = vperm.xlu0 %1559, %v1000
      %v1561 = vpop.permute.xlu0 %1560
      %1563 = vset.pattern.permute.xlu0 7
      %1564 = vperm.xlu0 %1563, %v1001
      %v1565 = vpop.permute.xlu0 %1564
      %1567 = vset.pattern.permute.xlu0 7
      %1568 = vperm.xlu0 %1567, %v1002
      %v1569 = vpop.permute.xlu0 %1568
      %1571 = vset.pattern.permute.xlu0 7
      %1572 = vperm.xlu0 %1571, %v1003
      %v1573 = vpop.permute.xlu0 %1572
      %1575 = vset.pattern.permute.xlu0 7
      %1576 = vperm.xlu0 %1575, %v1004
      %v1577 = vpop.permute.xlu0 %1576
      %1579 = vset.pattern.permute.xlu0 7
      %1580 = vperm.xlu0 %1579, %v1005
      %v1581 = vpop.permute.xlu0 %1580
      %1583 = vset.pattern.permute.xlu0 7
      %1584 = vperm.xlu0 %1583, %v1006
      %v1585 = vpop.permute.xlu0 %1584
      %v1587 = vlaneseq
      %v1588 = vshrl.u32 %v1587, 7
      %v1589 = vsub.s32 7, %v1588
      %v1590 = vrot.slane %v981, %v1589
      %v1591 = vmul.f32 %v1557, %v1590
      %v1592 = vmul.f32 %v1561, %v1590
      %v1593 = vmul.f32 %v1565, %v1590
      %v1594 = vmul.f32 %v1569, %v1590
      %v1595 = vmul.f32 %v1573, %v1590
      %v1596 = vmul.f32 %v1577, %v1590
      %v1597 = vmul.f32 %v1581, %v1590
      %v1598 = vmul.f32 %v1585, %v1590
      %v1599 = vmul.f32 %v1028, %v972
      %v1600 = vmul.f32 %v1030, %v973
      %v1601 = vmul.f32 %v1032, %v974
      %v1602 = vmul.f32 %v1034, %v975
      %v1603 = vmul.f32 %v1036, %v976
      %v1604 = vmul.f32 %v1038, %v977
      %v1605 = vmul.f32 %v1040, %v978
      %v1606 = vmul.f32 %v1042, %v979
      %v1607 = vadd.f32 %v1599, %v1283
      %v1608 = vadd.f32 %v1600, %v1284
      %v1609 = vadd.f32 %v1601, %v1285
      %v1610 = vadd.f32 %v1602, %v1286
      %v1611 = vadd.f32 %v1603, %v1287
      %v1612 = vadd.f32 %v1604, %v1288
      %v1613 = vadd.f32 %v1605, %v1289
      %v1614 = vadd.f32 %v1606, %v1290
      %1616 = vset.pattern.permute.xlu0 0
      %1617 = vperm.xlu0 %1616, %v1007
      %v1618 = vpop.permute.xlu0 %1617
      %1621 = vset.pattern.permute.xlu0 0
      %1622 = vperm.xlu0 %1621, %v1008
      %v1623 = vpop.permute.xlu0 %1622
      %1626 = vset.pattern.permute.xlu0 0
      %1627 = vperm.xlu0 %1626, %v1009
      %v1628 = vpop.permute.xlu0 %1627
      %1631 = vset.pattern.permute.xlu0 0
      %1632 = vperm.xlu0 %1631, %v1010
      %v1633 = vpop.permute.xlu0 %1632
      %1636 = vset.pattern.permute.xlu0 0
      %1637 = vperm.xlu0 %1636, %v1011
      %v1638 = vpop.permute.xlu0 %1637
      %1641 = vset.pattern.permute.xlu0 0
      %1642 = vperm.xlu0 %1641, %v1012
      %v1643 = vpop.permute.xlu0 %1642
      %1646 = vset.pattern.permute.xlu0 0
      %1647 = vperm.xlu0 %1646, %v1013
      %v1648 = vpop.permute.xlu0 %1647
      %1651 = vset.pattern.permute.xlu0 0
      %1652 = vperm.xlu0 %1651, %v1014
      %v1653 = vpop.permute.xlu0 %1652
      %v1655 = vmul.f32 %v1618, %v1607
      %v1656 = vmul.f32 %v1623, %v1608
      %v1657 = vmul.f32 %v1628, %v1609
      %v1658 = vmul.f32 %v1633, %v1610
      %v1659 = vmul.f32 %v1638, %v1611
      %v1660 = vmul.f32 %v1643, %v1612
      %v1661 = vmul.f32 %v1648, %v1613
      %v1662 = vmul.f32 %v1653, %v1614
      %v1663 = vsel %vm697, %v1655, 0.0
      %v1664 = vsel %vm697, %v1656, 0.0
      %v1665 = vadd.f32 %v1663, %v1664
      %v1666 = vsel %vm697, %v1657, 0.0
      %v1667 = vadd.f32 %v1665, %v1666
      %v1668 = vsel %vm697, %v1658, 0.0
      %v1669 = vadd.f32 %v1667, %v1668
      %v1670 = vsel %vm697, %v1659, 0.0
      %v1671 = vadd.f32 %v1669, %v1670
      %v1672 = vsel %vm697, %v1660, 0.0
      %v1673 = vadd.f32 %v1671, %v1672
      %v1674 = vsel %vm697, %v1661, 0.0
      %v1675 = vadd.f32 %v1673, %v1674
      %v1676 = vsel %vm697, %v1662, 0.0
      %v1677 = vadd.f32 %v1675, %v1676
      %v1678 = vrot.slane %v1677, 4
      %v1679 = vadd.f32 %v1677, %v1678
      %v1680 = vrot.slane %v1679, 2
      %v1681 = vadd.f32 %v1679, %v1680
      %v1682 = vrot.slane %v1681, 1
      %v1683 = vadd.f32 %v1681, %v1682
      %v1684 = vmul.f32 %v1056, %v1607
      %v1685 = vmul.f32 %v1058, %v1608
      %v1686 = vmul.f32 %v1060, %v1609
      %v1687 = vmul.f32 %v1062, %v1610
      %v1688 = vmul.f32 %v1064, %v1611
      %v1689 = vmul.f32 %v1066, %v1612
      %v1690 = vmul.f32 %v1068, %v1613
      %v1691 = vmul.f32 %v1070, %v1614
      %v1692 = vadd.f32 %v1684, %v1327
      %v1693 = vadd.f32 %v1685, %v1328
      %v1694 = vadd.f32 %v1686, %v1329
      %v1695 = vadd.f32 %v1687, %v1330
      %v1696 = vadd.f32 %v1688, %v1331
      %v1697 = vadd.f32 %v1689, %v1332
      %v1698 = vadd.f32 %v1690, %v1333
      %v1699 = vadd.f32 %v1691, %v1334
      %1700 = vset.pattern.permute.xlu0 1
      %1701 = vperm.xlu0 %1700, %v1007
      %v1702 = vpop.permute.xlu0 %1701
      %1704 = vset.pattern.permute.xlu0 1
      %1705 = vperm.xlu0 %1704, %v1008
      %v1706 = vpop.permute.xlu0 %1705
      %1708 = vset.pattern.permute.xlu0 1
      %1709 = vperm.xlu0 %1708, %v1009
      %v1710 = vpop.permute.xlu0 %1709
      %1712 = vset.pattern.permute.xlu0 1
      %1713 = vperm.xlu0 %1712, %v1010
      %v1714 = vpop.permute.xlu0 %1713
      %1716 = vset.pattern.permute.xlu0 1
      %1717 = vperm.xlu0 %1716, %v1011
      %v1718 = vpop.permute.xlu0 %1717
      %1720 = vset.pattern.permute.xlu0 1
      %1721 = vperm.xlu0 %1720, %v1012
      %v1722 = vpop.permute.xlu0 %1721
      %1724 = vset.pattern.permute.xlu0 1
      %1725 = vperm.xlu0 %1724, %v1013
      %v1726 = vpop.permute.xlu0 %1725
      %1728 = vset.pattern.permute.xlu0 1
      %1729 = vperm.xlu0 %1728, %v1014
      %v1730 = vpop.permute.xlu0 %1729
      %v1732 = vmul.f32 %v1702, %v1692
      %v1733 = vmul.f32 %v1706, %v1693
      %v1734 = vmul.f32 %v1710, %v1694
      %v1735 = vmul.f32 %v1714, %v1695
      %v1736 = vmul.f32 %v1718, %v1696
      %v1737 = vmul.f32 %v1722, %v1697
      %v1738 = vmul.f32 %v1726, %v1698
      %v1739 = vmul.f32 %v1730, %v1699
      %v1740 = vsel %vm697, %v1732, 0.0
      %v1741 = vsel %vm697, %v1733, 0.0
      %v1742 = vadd.f32 %v1740, %v1741
      %v1743 = vsel %vm697, %v1734, 0.0
      %v1744 = vadd.f32 %v1742, %v1743
      %v1745 = vsel %vm697, %v1735, 0.0
      %v1746 = vadd.f32 %v1744, %v1745
      %v1747 = vsel %vm697, %v1736, 0.0
      %v1748 = vadd.f32 %v1746, %v1747
      %v1749 = vsel %vm697, %v1737, 0.0
      %v1750 = vadd.f32 %v1748, %v1749
      %v1751 = vsel %vm697, %v1738, 0.0
      %v1752 = vadd.f32 %v1750, %v1751
      %v1753 = vsel %vm697, %v1739, 0.0
      %v1754 = vadd.f32 %v1752, %v1753
      %v1755 = vrot.slane %v1754, 4
      %v1756 = vadd.f32 %v1754, %v1755
      %v1757 = vrot.slane %v1756, 2
      %v1758 = vadd.f32 %v1756, %v1757
      %v1759 = vrot.slane %v1758, 1
      %v1760 = vadd.f32 %v1758, %v1759
      %v1761 = vmul.f32 %v1084, %v1692
      %v1762 = vmul.f32 %v1086, %v1693
      %v1763 = vmul.f32 %v1088, %v1694
      %v1764 = vmul.f32 %v1090, %v1695
      %v1765 = vmul.f32 %v1092, %v1696
      %v1766 = vmul.f32 %v1094, %v1697
      %v1767 = vmul.f32 %v1096, %v1698
      %v1768 = vmul.f32 %v1098, %v1699
      %v1769 = vadd.f32 %v1761, %v1371
      %v1770 = vadd.f32 %v1762, %v1372
      %v1771 = vadd.f32 %v1763, %v1373
      %v1772 = vadd.f32 %v1764, %v1374
      %v1773 = vadd.f32 %v1765, %v1375
      %v1774 = vadd.f32 %v1766, %v1376
      %v1775 = vadd.f32 %v1767, %v1377
      %v1776 = vadd.f32 %v1768, %v1378
      %1777 = vset.pattern.permute.xlu0 2
      %1778 = vperm.xlu0 %1777, %v1007
      %v1779 = vpop.permute.xlu0 %1778
      %1781 = vset.pattern.permute.xlu0 2
      %1782 = vperm.xlu0 %1781, %v1008
      %v1783 = vpop.permute.xlu0 %1782
      %1785 = vset.pattern.permute.xlu0 2
      %1786 = vperm.xlu0 %1785, %v1009
      %v1787 = vpop.permute.xlu0 %1786
      %1789 = vset.pattern.permute.xlu0 2
      %1790 = vperm.xlu0 %1789, %v1010
      %v1791 = vpop.permute.xlu0 %1790
      %1793 = vset.pattern.permute.xlu0 2
      %1794 = vperm.xlu0 %1793, %v1011
      %v1795 = vpop.permute.xlu0 %1794
      %1797 = vset.pattern.permute.xlu0 2
      %1798 = vperm.xlu0 %1797, %v1012
      %v1799 = vpop.permute.xlu0 %1798
      %1801 = vset.pattern.permute.xlu0 2
      %1802 = vperm.xlu0 %1801, %v1013
      %v1803 = vpop.permute.xlu0 %1802
      %1805 = vset.pattern.permute.xlu0 2
      %1806 = vperm.xlu0 %1805, %v1014
      %v1807 = vpop.permute.xlu0 %1806
      %v1809 = vmul.f32 %v1779, %v1769
      %v1810 = vmul.f32 %v1783, %v1770
      %v1811 = vmul.f32 %v1787, %v1771
      %v1812 = vmul.f32 %v1791, %v1772
      %v1813 = vmul.f32 %v1795, %v1773
      %v1814 = vmul.f32 %v1799, %v1774
      %v1815 = vmul.f32 %v1803, %v1775
      %v1816 = vmul.f32 %v1807, %v1776
      %v1817 = vsel %vm697, %v1809, 0.0
      %v1818 = vsel %vm697, %v1810, 0.0
      %v1819 = vadd.f32 %v1817, %v1818
      %v1820 = vsel %vm697, %v1811, 0.0
      %v1821 = vadd.f32 %v1819, %v1820
      %v1822 = vsel %vm697, %v1812, 0.0
      %v1823 = vadd.f32 %v1821, %v1822
      %v1824 = vsel %vm697, %v1813, 0.0
      %v1825 = vadd.f32 %v1823, %v1824
      %v1826 = vsel %vm697, %v1814, 0.0
      %v1827 = vadd.f32 %v1825, %v1826
      %v1828 = vsel %vm697, %v1815, 0.0
      %v1829 = vadd.f32 %v1827, %v1828
      %v1830 = vsel %vm697, %v1816, 0.0
      %v1831 = vadd.f32 %v1829, %v1830
      %v1832 = vrot.slane %v1831, 4
      %v1833 = vadd.f32 %v1831, %v1832
      %v1834 = vrot.slane %v1833, 2
      %v1835 = vadd.f32 %v1833, %v1834
      %v1836 = vrot.slane %v1835, 1
      %v1837 = vadd.f32 %v1835, %v1836
      %v1838 = vmul.f32 %v1112, %v1769
      %v1839 = vmul.f32 %v1114, %v1770
      %v1840 = vmul.f32 %v1116, %v1771
      %v1841 = vmul.f32 %v1118, %v1772
      %v1842 = vmul.f32 %v1120, %v1773
      %v1843 = vmul.f32 %v1122, %v1774
      %v1844 = vmul.f32 %v1124, %v1775
      %v1845 = vmul.f32 %v1126, %v1776
      %v1846 = vadd.f32 %v1838, %v1415
      %v1847 = vadd.f32 %v1839, %v1416
      %v1848 = vadd.f32 %v1840, %v1417
      %v1849 = vadd.f32 %v1841, %v1418
      %v1850 = vadd.f32 %v1842, %v1419
      %v1851 = vadd.f32 %v1843, %v1420
      %v1852 = vadd.f32 %v1844, %v1421
      %v1853 = vadd.f32 %v1845, %v1422
      %1854 = vset.pattern.permute.xlu0 3
      %1855 = vperm.xlu0 %1854, %v1007
      %v1856 = vpop.permute.xlu0 %1855
      %1858 = vset.pattern.permute.xlu0 3
      %1859 = vperm.xlu0 %1858, %v1008
      %v1860 = vpop.permute.xlu0 %1859
      %1862 = vset.pattern.permute.xlu0 3
      %1863 = vperm.xlu0 %1862, %v1009
      %v1864 = vpop.permute.xlu0 %1863
      %1866 = vset.pattern.permute.xlu0 3
      %1867 = vperm.xlu0 %1866, %v1010
      %v1868 = vpop.permute.xlu0 %1867
      %1870 = vset.pattern.permute.xlu0 3
      %1871 = vperm.xlu0 %1870, %v1011
      %v1872 = vpop.permute.xlu0 %1871
      %1874 = vset.pattern.permute.xlu0 3
      %1875 = vperm.xlu0 %1874, %v1012
      %v1876 = vpop.permute.xlu0 %1875
      %1878 = vset.pattern.permute.xlu0 3
      %1879 = vperm.xlu0 %1878, %v1013
      %v1880 = vpop.permute.xlu0 %1879
      %1882 = vset.pattern.permute.xlu0 3
      %1883 = vperm.xlu0 %1882, %v1014
      %v1884 = vpop.permute.xlu0 %1883
      %v1886 = vmul.f32 %v1856, %v1846
      %v1887 = vmul.f32 %v1860, %v1847
      %v1888 = vmul.f32 %v1864, %v1848
      %v1889 = vmul.f32 %v1868, %v1849
      %v1890 = vmul.f32 %v1872, %v1850
      %v1891 = vmul.f32 %v1876, %v1851
      %v1892 = vmul.f32 %v1880, %v1852
      %v1893 = vmul.f32 %v1884, %v1853
      %v1894 = vsel %vm697, %v1886, 0.0
      %v1895 = vsel %vm697, %v1887, 0.0
      %v1896 = vadd.f32 %v1894, %v1895
      %v1897 = vsel %vm697, %v1888, 0.0
      %v1898 = vadd.f32 %v1896, %v1897
      %v1899 = vsel %vm697, %v1889, 0.0
      %v1900 = vadd.f32 %v1898, %v1899
      %v1901 = vsel %vm697, %v1890, 0.0
      %v1902 = vadd.f32 %v1900, %v1901
      %v1903 = vsel %vm697, %v1891, 0.0
      %v1904 = vadd.f32 %v1902, %v1903
      %v1905 = vsel %vm697, %v1892, 0.0
      %v1906 = vadd.f32 %v1904, %v1905
      %v1907 = vsel %vm697, %v1893, 0.0
      %v1908 = vadd.f32 %v1906, %v1907
      %v1909 = vrot.slane %v1908, 4
      %v1910 = vadd.f32 %v1908, %v1909
      %v1911 = vrot.slane %v1910, 2
      %v1912 = vadd.f32 %v1910, %v1911
      %v1913 = vrot.slane %v1912, 1
      %v1914 = vadd.f32 %v1912, %v1913
      %v1915 = vmul.f32 %v1140, %v1846
      %v1916 = vmul.f32 %v1142, %v1847
      %v1917 = vmul.f32 %v1144, %v1848
      %v1918 = vmul.f32 %v1146, %v1849
      %v1919 = vmul.f32 %v1148, %v1850
      %v1920 = vmul.f32 %v1150, %v1851
      %v1921 = vmul.f32 %v1152, %v1852
      %v1922 = vmul.f32 %v1154, %v1853
      %v1923 = vadd.f32 %v1915, %v1459
      %v1924 = vadd.f32 %v1916, %v1460
      %v1925 = vadd.f32 %v1917, %v1461
      %v1926 = vadd.f32 %v1918, %v1462
      %v1927 = vadd.f32 %v1919, %v1463
      %v1928 = vadd.f32 %v1920, %v1464
      %v1929 = vadd.f32 %v1921, %v1465
      %v1930 = vadd.f32 %v1922, %v1466
      %1931 = vset.pattern.permute.xlu0 4
      %1932 = vperm.xlu0 %1931, %v1007
      %v1933 = vpop.permute.xlu0 %1932
      %1935 = vset.pattern.permute.xlu0 4
      %1936 = vperm.xlu0 %1935, %v1008
      %v1937 = vpop.permute.xlu0 %1936
      %1939 = vset.pattern.permute.xlu0 4
      %1940 = vperm.xlu0 %1939, %v1009
      %v1941 = vpop.permute.xlu0 %1940
      %1943 = vset.pattern.permute.xlu0 4
      %1944 = vperm.xlu0 %1943, %v1010
      %v1945 = vpop.permute.xlu0 %1944
      %1947 = vset.pattern.permute.xlu0 4
      %1948 = vperm.xlu0 %1947, %v1011
      %v1949 = vpop.permute.xlu0 %1948
      %1951 = vset.pattern.permute.xlu0 4
      %1952 = vperm.xlu0 %1951, %v1012
      %v1953 = vpop.permute.xlu0 %1952
      %1955 = vset.pattern.permute.xlu0 4
      %1956 = vperm.xlu0 %1955, %v1013
      %v1957 = vpop.permute.xlu0 %1956
      %1959 = vset.pattern.permute.xlu0 4
      %1960 = vperm.xlu0 %1959, %v1014
      %v1961 = vpop.permute.xlu0 %1960
      %v1963 = vmul.f32 %v1933, %v1923
      %v1964 = vmul.f32 %v1937, %v1924
      %v1965 = vmul.f32 %v1941, %v1925
      %v1966 = vmul.f32 %v1945, %v1926
      %v1967 = vmul.f32 %v1949, %v1927
      %v1968 = vmul.f32 %v1953, %v1928
      %v1969 = vmul.f32 %v1957, %v1929
      %v1970 = vmul.f32 %v1961, %v1930
      %v1971 = vsel %vm697, %v1963, 0.0
      %v1972 = vsel %vm697, %v1964, 0.0
      %v1973 = vadd.f32 %v1971, %v1972
      %v1974 = vsel %vm697, %v1965, 0.0
      %v1975 = vadd.f32 %v1973, %v1974
      %v1976 = vsel %vm697, %v1966, 0.0
      %v1977 = vadd.f32 %v1975, %v1976
      %v1978 = vsel %vm697, %v1967, 0.0
      %v1979 = vadd.f32 %v1977, %v1978
      %v1980 = vsel %vm697, %v1968, 0.0
      %v1981 = vadd.f32 %v1979, %v1980
      %v1982 = vsel %vm697, %v1969, 0.0
      %v1983 = vadd.f32 %v1981, %v1982
      %v1984 = vsel %vm697, %v1970, 0.0
      %v1985 = vadd.f32 %v1983, %v1984
      %v1986 = vrot.slane %v1985, 4
      %v1987 = vadd.f32 %v1985, %v1986
      %v1988 = vrot.slane %v1987, 2
      %v1989 = vadd.f32 %v1987, %v1988
      %v1990 = vrot.slane %v1989, 1
      %v1991 = vadd.f32 %v1989, %v1990
      %v1992 = vmul.f32 %v1168, %v1923
      %v1993 = vmul.f32 %v1170, %v1924
      %v1994 = vmul.f32 %v1172, %v1925
      %v1995 = vmul.f32 %v1174, %v1926
      %v1996 = vmul.f32 %v1176, %v1927
      %v1997 = vmul.f32 %v1178, %v1928
      %v1998 = vmul.f32 %v1180, %v1929
      %v1999 = vmul.f32 %v1182, %v1930
      %v2000 = vadd.f32 %v1992, %v1503
      %v2001 = vadd.f32 %v1993, %v1504
      %v2002 = vadd.f32 %v1994, %v1505
      %v2003 = vadd.f32 %v1995, %v1506
      %v2004 = vadd.f32 %v1996, %v1507
      %v2005 = vadd.f32 %v1997, %v1508
      %v2006 = vadd.f32 %v1998, %v1509
      %v2007 = vadd.f32 %v1999, %v1510
      %2008 = vset.pattern.permute.xlu0 5
      %2009 = vperm.xlu0 %2008, %v1007
      %v2010 = vpop.permute.xlu0 %2009
      %2012 = vset.pattern.permute.xlu0 5
      %2013 = vperm.xlu0 %2012, %v1008
      %v2014 = vpop.permute.xlu0 %2013
      %2016 = vset.pattern.permute.xlu0 5
      %2017 = vperm.xlu0 %2016, %v1009
      %v2018 = vpop.permute.xlu0 %2017
      %2020 = vset.pattern.permute.xlu0 5
      %2021 = vperm.xlu0 %2020, %v1010
      %v2022 = vpop.permute.xlu0 %2021
      %2024 = vset.pattern.permute.xlu0 5
      %2025 = vperm.xlu0 %2024, %v1011
      %v2026 = vpop.permute.xlu0 %2025
      %2028 = vset.pattern.permute.xlu0 5
      %2029 = vperm.xlu0 %2028, %v1012
      %v2030 = vpop.permute.xlu0 %2029
      %2032 = vset.pattern.permute.xlu0 5
      %2033 = vperm.xlu0 %2032, %v1013
      %v2034 = vpop.permute.xlu0 %2033
      %2036 = vset.pattern.permute.xlu0 5
      %2037 = vperm.xlu0 %2036, %v1014
      %v2038 = vpop.permute.xlu0 %2037
      %v2040 = vmul.f32 %v2010, %v2000
      %v2041 = vmul.f32 %v2014, %v2001
      %v2042 = vmul.f32 %v2018, %v2002
      %v2043 = vmul.f32 %v2022, %v2003
      %v2044 = vmul.f32 %v2026, %v2004
      %v2045 = vmul.f32 %v2030, %v2005
      %v2046 = vmul.f32 %v2034, %v2006
      %v2047 = vmul.f32 %v2038, %v2007
      %v2048 = vsel %vm697, %v2040, 0.0
      %v2049 = vsel %vm697, %v2041, 0.0
      %v2050 = vadd.f32 %v2048, %v2049
      %v2051 = vsel %vm697, %v2042, 0.0
      %v2052 = vadd.f32 %v2050, %v2051
      %v2053 = vsel %vm697, %v2043, 0.0
      %v2054 = vadd.f32 %v2052, %v2053
      %v2055 = vsel %vm697, %v2044, 0.0
      %v2056 = vadd.f32 %v2054, %v2055
      %v2057 = vsel %vm697, %v2045, 0.0
      %v2058 = vadd.f32 %v2056, %v2057
      %v2059 = vsel %vm697, %v2046, 0.0
      %v2060 = vadd.f32 %v2058, %v2059
      %v2061 = vsel %vm697, %v2047, 0.0
      %v2062 = vadd.f32 %v2060, %v2061
      %v2063 = vrot.slane %v2062, 4
      %v2064 = vadd.f32 %v2062, %v2063
      %v2065 = vrot.slane %v2064, 2
      %v2066 = vadd.f32 %v2064, %v2065
      %v2067 = vrot.slane %v2066, 1
      %v2068 = vadd.f32 %v2066, %v2067
      %v2069 = vmul.f32 %v1196, %v2000
      %v2070 = vmul.f32 %v1198, %v2001
      %v2071 = vmul.f32 %v1200, %v2002
      %v2072 = vmul.f32 %v1202, %v2003
      %v2073 = vmul.f32 %v1204, %v2004
      %v2074 = vmul.f32 %v1206, %v2005
      %v2075 = vmul.f32 %v1208, %v2006
      %v2076 = vmul.f32 %v1210, %v2007
      %v2077 = vadd.f32 %v2069, %v1547
      %v2078 = vadd.f32 %v2070, %v1548
      %v2079 = vadd.f32 %v2071, %v1549
      %v2080 = vadd.f32 %v2072, %v1550
      %v2081 = vadd.f32 %v2073, %v1551
      %v2082 = vadd.f32 %v2074, %v1552
      %v2083 = vadd.f32 %v2075, %v1553
      %v2084 = vadd.f32 %v2076, %v1554
      %2085 = vset.pattern.permute.xlu0 6
      %2086 = vperm.xlu0 %2085, %v1007
      %v2087 = vpop.permute.xlu0 %2086
      %2089 = vset.pattern.permute.xlu0 6
      %2090 = vperm.xlu0 %2089, %v1008
      %v2091 = vpop.permute.xlu0 %2090
      %2093 = vset.pattern.permute.xlu0 6
      %2094 = vperm.xlu0 %2093, %v1009
      %v2095 = vpop.permute.xlu0 %2094
      %2097 = vset.pattern.permute.xlu0 6
      %2098 = vperm.xlu0 %2097, %v1010
      %v2099 = vpop.permute.xlu0 %2098
      %2101 = vset.pattern.permute.xlu0 6
      %2102 = vperm.xlu0 %2101, %v1011
      %v2103 = vpop.permute.xlu0 %2102
      %2105 = vset.pattern.permute.xlu0 6
      %2106 = vperm.xlu0 %2105, %v1012
      %v2107 = vpop.permute.xlu0 %2106
      %2109 = vset.pattern.permute.xlu0 6
      %2110 = vperm.xlu0 %2109, %v1013
      %v2111 = vpop.permute.xlu0 %2110
      %2113 = vset.pattern.permute.xlu0 6
      %2114 = vperm.xlu0 %2113, %v1014
      %v2115 = vpop.permute.xlu0 %2114
      %v2117 = vmul.f32 %v2087, %v2077
      %v2118 = vmul.f32 %v2091, %v2078
      %v2119 = vmul.f32 %v2095, %v2079
      %v2120 = vmul.f32 %v2099, %v2080
      %v2121 = vmul.f32 %v2103, %v2081
      %v2122 = vmul.f32 %v2107, %v2082
      %v2123 = vmul.f32 %v2111, %v2083
      %v2124 = vmul.f32 %v2115, %v2084
      %v2125 = vsel %vm697, %v2117, 0.0
      %v2126 = vsel %vm697, %v2118, 0.0
      %v2127 = vadd.f32 %v2125, %v2126
      %v2128 = vsel %vm697, %v2119, 0.0
      %v2129 = vadd.f32 %v2127, %v2128
      %v2130 = vsel %vm697, %v2120, 0.0
      %v2131 = vadd.f32 %v2129, %v2130
      %v2132 = vsel %vm697, %v2121, 0.0
      %v2133 = vadd.f32 %v2131, %v2132
      %v2134 = vsel %vm697, %v2122, 0.0
      %v2135 = vadd.f32 %v2133, %v2134
      %v2136 = vsel %vm697, %v2123, 0.0
      %v2137 = vadd.f32 %v2135, %v2136
      %v2138 = vsel %vm697, %v2124, 0.0
      %v2139 = vadd.f32 %v2137, %v2138
      %v2140 = vrot.slane %v2139, 4
      %v2141 = vadd.f32 %v2139, %v2140
      %v2142 = vrot.slane %v2141, 2
      %v2143 = vadd.f32 %v2141, %v2142
      %v2144 = vrot.slane %v2143, 1
      %v2145 = vadd.f32 %v2143, %v2144
      %v2146 = vmul.f32 %v1224, %v2077
      %v2147 = vmul.f32 %v1226, %v2078
      %v2148 = vmul.f32 %v1228, %v2079
      %v2149 = vmul.f32 %v1230, %v2080
      %v2150 = vmul.f32 %v1232, %v2081
      %v2151 = vmul.f32 %v1234, %v2082
      %v2152 = vmul.f32 %v1236, %v2083
      %v2153 = vmul.f32 %v1238, %v2084
      %v2154 = vadd.f32 %v2146, %v1591
      %v2155 = vadd.f32 %v2147, %v1592
      %v2156 = vadd.f32 %v2148, %v1593
      %v2157 = vadd.f32 %v2149, %v1594
      %v2158 = vadd.f32 %v2150, %v1595
      %v2159 = vadd.f32 %v2151, %v1596
      %v2160 = vadd.f32 %v2152, %v1597
      %v2161 = vadd.f32 %v2153, %v1598
      %2162 = vset.pattern.permute.xlu0 7
      %2163 = vperm.xlu0 %2162, %v1007
      %v2164 = vpop.permute.xlu0 %2163
      %2166 = vset.pattern.permute.xlu0 7
      %2167 = vperm.xlu0 %2166, %v1008
      %v2168 = vpop.permute.xlu0 %2167
      %2170 = vset.pattern.permute.xlu0 7
      %2171 = vperm.xlu0 %2170, %v1009
      %v2172 = vpop.permute.xlu0 %2171
      %2174 = vset.pattern.permute.xlu0 7
      %2175 = vperm.xlu0 %2174, %v1010
      %v2176 = vpop.permute.xlu0 %2175
      %2178 = vset.pattern.permute.xlu0 7
      %2179 = vperm.xlu0 %2178, %v1011
      %v2180 = vpop.permute.xlu0 %2179
      %2182 = vset.pattern.permute.xlu0 7
      %2183 = vperm.xlu0 %2182, %v1012
      %v2184 = vpop.permute.xlu0 %2183
      %2186 = vset.pattern.permute.xlu0 7
      %2187 = vperm.xlu0 %2186, %v1013
      %v2188 = vpop.permute.xlu0 %2187
      %2190 = vset.pattern.permute.xlu0 7
      %2191 = vperm.xlu0 %2190, %v1014
      %v2192 = vpop.permute.xlu0 %2191
      %v2194 = vmul.f32 %v2164, %v2154
      %v2195 = vmul.f32 %v2168, %v2155
      %v2196 = vmul.f32 %v2172, %v2156
      %v2197 = vmul.f32 %v2176, %v2157
      %v2198 = vmul.f32 %v2180, %v2158
      %v2199 = vmul.f32 %v2184, %v2159
      %v2200 = vmul.f32 %v2188, %v2160
      %v2201 = vmul.f32 %v2192, %v2161
      %v2202 = vsel %vm697, %v2194, 0.0
      %v2203 = vsel %vm697, %v2195, 0.0
      %v2204 = vadd.f32 %v2202, %v2203
      %v2205 = vsel %vm697, %v2196, 0.0
      %v2206 = vadd.f32 %v2204, %v2205
      %v2207 = vsel %vm697, %v2197, 0.0
      %v2208 = vadd.f32 %v2206, %v2207
      %v2209 = vsel %vm697, %v2198, 0.0
      %v2210 = vadd.f32 %v2208, %v2209
      %v2211 = vsel %vm697, %v2199, 0.0
      %v2212 = vadd.f32 %v2210, %v2211
      %v2213 = vsel %vm697, %v2200, 0.0
      %v2214 = vadd.f32 %v2212, %v2213
      %v2215 = vsel %vm697, %v2201, 0.0
      %v2216 = vadd.f32 %v2214, %v2215
      %v2217 = vrot.slane %v2216, 4
      %v2218 = vadd.f32 %v2216, %v2217
      %v2219 = vrot.slane %v2218, 2
      %v2220 = vadd.f32 %v2218, %v2219
      %v2221 = vrot.slane %v2220, 1
      %v2222 = vadd.f32 %v2220, %v2221
      %vm2223 = vcmask 1040384
      %v2224 = vsel %vm2223, %v1683, %v1760
      %vm2225 = vcmask 1041408
      %v2226 = vsel %vm2225, %v2224, %v1837
      %vm2227 = vcmask 1042432
      %v2228 = vsel %vm2227, %v2226, %v1914
      %vm2229 = vcmask 1043456
      %v2230 = vsel %vm2229, %v2228, %v1991
      %vm2231 = vcmask 1044480
      %v2232 = vsel %vm2231, %v2230, %v2068
      %vm2233 = vcmask 1045504
      %v2234 = vsel %vm2233, %v2232, %v2145
      %vm2235 = vcmask 1046528
      %v2236 = vsel %vm2235, %v2234, %v2222
      %2237 = vst.msk [vmem:[#allocation8] sm:$0xff] %vm697, %v2236
      %2238 = vst.msk [vmem:[#allocation4] sm:$0xff] %vm697, %v2154
      %2239 = vst.msk [vmem:[#allocation4 + $0x8] sm:$0xff] %vm697, %v2155
      %2240 = vst.msk [vmem:[#allocation4 + $0x10] sm:$0xff] %vm697, %v2156
      %2241 = vst.msk [vmem:[#allocation4 + $0x18] sm:$0xff] %vm697, %v2157
      %2242 = vst.msk [vmem:[#allocation4 + $0x20] sm:$0xff] %vm697, %v2158
      %2243 = vst.msk [vmem:[#allocation4 + $0x28] sm:$0xff] %vm697, %v2159
      %2244 = vst.msk [vmem:[#allocation4 + $0x30] sm:$0xff] %vm697, %v2160
      %2245 = vst.msk [vmem:[#allocation4 + $0x38] sm:$0xff] %vm697, %v2161
      %v2246 = vld [vmem:[#allocation8] sm:$0xff]
      %v2247 = vld [vmem:[%s11] sm:$0x1]
      %v2249 = vlaneseq
      %v2250 = vshrl.u32 %v2249, 7
      %v2251 = vsub.s32 0, %v2250
      %v2252 = vrot.slane %v2247, %v2251
      %v2254 = vmul.f32 %v746, %v2252
      %v2255 = vadd.f32 %v2246, %v2254
      %v2256 = vsub.f32 0.0, %v689
      %v2257 = vmul.f32 %v2256, 1.442695
      %v2258 = vpow.pop %v2257
      %v2259 = vadd.f32 %v2258, 1.0
      %v2260 = vrcp.pop %v2259
      %v2261 = vmul.f32 %v689, %v2260
      %v2262 = vmul.f32 %v2255, %v2261
      %v2263 = vpack.c.bf16 %v2262, %v2262
      %v2264 = vld [vmem:[%s12] sm:$0xf]
      %v2265 = vld [vmem:[%s12 + $0x4] sm:$0xf]
      %v2266 = vld [vmem:[%s12 + $0x8] sm:$0xf]
      %v2267 = vld [vmem:[%s12 + $0xc] sm:$0xf]
      %v2268 = vld [vmem:[%s12 + $0x10] sm:$0xf]
      %v2269 = vld [vmem:[%s12 + $0x14] sm:$0xf]
      %v2270 = vld [vmem:[%s12 + $0x18] sm:$0xf]
      %v2271 = vld [vmem:[%s12 + $0x1c] sm:$0xf]
      %v2280 = vunpack.c.l.b16 %v2264
      %v2281 = vunpack.c.l.b16 %v2265
      %v2282 = vunpack.c.l.b16 %v2266
      %v2283 = vunpack.c.l.b16 %v2267
      %v2284 = vunpack.c.l.b16 %v2268
      %v2285 = vunpack.c.l.b16 %v2269
      %v2286 = vunpack.c.l.b16 %v2270
      %v2287 = vunpack.c.l.b16 %v2271
      %v2288 = vpack.c.b16 %v2281, %v2280
      %v2289 = vpack.c.b16 %v2283, %v2282
      %v2290 = vpack.c.b16 %v2285, %v2284
      %v2291 = vpack.c.b16 %v2287, %v2286
      %v2297 = vsel %vm697, %v2263, 0
      %2299 = vmatprep.subr.bf16.mxu0 0
      %2300 = vmatpush1.bf16.msra.mxu0 %v2288
      %2301 = vmatprep.subr.bf16.mxu0 0
      %2302 = vmatpush1.bf16.msra.mxu0 %v2289
      %2303 = vmatprep.subr.bf16.mxu0 0
      %2304 = vmatpush1.bf16.msra.mxu0 %v2290
      %2305 = vmatprep.subr.bf16.mxu0 0
      %2306 = vmatpush1.bf16.msra.mxu0 %v2291
      %2307 = vmatprep.subr.bf16.mxu0 0
      %2308 = vmatpush1.bf16.msra.mxu0 0
      %2309 = vmatprep.subr.bf16.mxu0 0
      %2310 = vmatpush1.bf16.msra.mxu0 0
      %2311 = vmatprep.subr.bf16.mxu0 0
      %2312 = vmatpush1.bf16.msra.mxu0 0
      %2313 = vmatprep.subr.bf16.mxu0 0
      %2314 = vmatpush1.bf16.msra.mxu0 0
      %2315 = vmatprep.subr.bf16.mxu0 0
      %2316 = vmatpush1.bf16.msra.mxu0 0
      %2317 = vmatprep.subr.bf16.mxu0 0
      %2318 = vmatpush1.bf16.msra.mxu0 0
      %2319 = vmatprep.subr.bf16.mxu0 0
      %2320 = vmatpush1.bf16.msra.mxu0 0
      %2321 = vmatprep.subr.bf16.mxu0 0
      %2322 = vmatpush1.bf16.msra.mxu0 0
      %2323 = vmatprep.subr.bf16.mxu0 0
      %2324 = vmatpush1.bf16.msra.mxu0 0
      %2325 = vmatprep.subr.bf16.mxu0 0
      %2326 = vmatpush1.bf16.msra.mxu0 0
      %2327 = vmatprep.subr.bf16.mxu0 0
      %2328 = vmatpush1.bf16.msra.mxu0 0
      %2329 = vmatprep.subr.bf16.mxu0 0
      %2330 = vmatpush1.bf16.msra.mxu0 0
      %2331 = vmatprep.mubr.bf16.mxu0 0
      %2332 = vmatmul.mubr.bf16.gmra.mrb[0].mxu0 %v2297
      %v2333 = vpop.f32.mrb[0].mxu0
      %v2334 = vadd.f32 %v559, %v2333
      %v2335 = vpop.f32.mrb[0].mxu0
      %v2336 = vpop.f32.mrb[0].mxu0
      %v2337 = vpop.f32.mrb[0].mxu0
      %2338 = vdwg.mxu0
      %2339 = vst.msk [vmem:[%s533] sm:$0xff] %vm561, %v2334
      %2340 = vst.msk [vmem:[%s540] sm:$0xff] %vm561, %v559
      %p2341 = scmp.lt.s32.totalorder %s30, 1
      %s2342 = scalar_select %p2341, %s30, 1
      %p2343 = scmp.lt.s32.totalorder %s31, 0
      %s2344 = scalar_select %p2343, %s31, 0
      %s2345 = sadd.s32 %s2344, %s2342
      %s2346 = smul.addr %s2345, 8
      %s2347 = scalar_lea.vmem %s13, %s2346
      %p2348 = scmp.lt.s32.totalorder %s30, 1
      %s2349 = scalar_select %p2348, %s30, 1
      %p2350 = scmp.lt.s32.totalorder %s31, 0
      %s2351 = scalar_select %p2350, %s31, 0
      %s2352 = sadd.s32 %s2351, %s2349
      %s2353 = smul.addr %s2352, 8
      %s2354 = scalar_lea.vmem %s14, %s2353
      // Predicated region
      $region77: #{pure_mamba_forward.7} parent=71 // pred_check
        %p2355 = pneg %p345
      $region78: #{pure_mamba_forward.7} parent=71 // pred_check_branch
        %2357 = sbr.rel (%p2355) target = $region80
      $region79: #{pure_mamba_forward.7} parent=71 // pred_region
        _
      $region80: #{pure_mamba_forward.7} parent=71 // pred_fallthru
        _
      // Predicated region
      $region81: #{pure_mamba_forward.7} parent=71 // pred_check
        %p2358 = pneg %p373
      $region82: #{pure_mamba_forward.7} parent=71 // pred_check_branch
        %2360 = sbr.rel (%p2358) target = $region84
      $region83: #{pure_mamba_forward.7} parent=71 // pred_region
        _
      $region84: #{pure_mamba_forward.7} parent=71 // pred_fallthru
        _
    $region72: #{pure_mamba_forward.7} parent=5 // pred_fallthru
      _
    %p2361 = scmp.le.s32.totalorder 2, %s21
    // Predicated region
    $region85: #{pure_mamba_forward.7} parent=5 // pred_check
      %p2362 = pneg %p2361
    $region86: #{pure_mamba_forward.7} parent=5 // pred_check_branch
      %2364 = sbr.rel (%p2362) target = $region88
    $region87: #{pure_mamba_forward.7} parent=5 // pred_region
      %s2365 = ssub.s32 %s21, 2
      // Predicated region
      $region89: #{pure_mamba_forward.7} parent=87 // pred_check
        %p2366 = pneg %p351
      $region90: #{pure_mamba_forward.7} parent=87 // pred_check_branch
        %2368 = sbr.rel (%p2366) target = $region92
      $region91: #{pure_mamba_forward.7} parent=87 // pred_region
        %p2369 = scmp.lt.s32.totalorder %s32, 1
        %s2370 = scalar_select %p2369, %s32, 1
        %p2371 = scmp.lt.s32.totalorder %s33, 0
        %s2372 = scalar_select %p2371, %s33, 0
        %s2373 = sadd.s32 %s2372, %s2370
        %s2374 = smul.addr %s2373, 8
        %s2375 = scalar_lea.vmem %s13, %s2374
      $region92: #{pure_mamba_forward.7} parent=87 // pred_fallthru
        _
      // Predicated region
      $region93: #{pure_mamba_forward.7} parent=87 // pred_check
        %p2376 = pneg %p379
      $region94: #{pure_mamba_forward.7} parent=87 // pred_check_branch
        %2378 = sbr.rel (%p2376) target = $region96
      $region95: #{pure_mamba_forward.7} parent=87 // pred_region
        %p2379 = scmp.lt.s32.totalorder %s32, 1
        %s2380 = scalar_select %p2379, %s32, 1
        %p2381 = scmp.lt.s32.totalorder %s33, 0
        %s2382 = scalar_select %p2381, %s33, 0
        %s2383 = sadd.s32 %s2382, %s2380
        %s2384 = smul.addr %s2383, 8
        %s2385 = scalar_lea.vmem %s14, %s2384
      $region96: #{pure_mamba_forward.7} parent=87 // pred_fallthru
        _
    $region88: #{pure_mamba_forward.7} parent=5 // pred_fallthru
      _
  $region6: #{pure_mamba_forward.7} parent=0 // loop_footer
    %s25 = sadd.s32 1, %s21
  $region7: #{pure_mamba_forward.7} parent=0 // loop_footer_branch
    %20 = sbr.rel target = $region3
  $region8: #{pure_mamba_forward.7} parent=0 // loop_exit
    _

// kernel: pure_mamba_forward.4
$region0: #{pure_mamba_forward.4}
  #allocation0 [shape = 'u32[]', space=smem, size = 0x4, offset = 0x4, fixed_abs, tag = 'smem constant byte address 0x4 - core index']
  #allocation1 [shape = 'u32[144,128]{1,0:T(1,128)}', space=vmem, size = 0x12000, scoped, tag = 'internal scratch']
  #allocation2 [shape = 'f32[11,64]{1,0:T(8,128)}', space=vmem, size = 0x2000, scoped, tag = 'scratch operand']
  #allocation3 [shape = 'f32[3,64]{1,0:T(4,128)}', space=vmem, size = 0x800, scoped, tag = 'scratch operand']
  #allocation4 [shape = 'f32[64,64]{1,0:T(8,128)}', space=vmem, size = 0x8000, scoped, tag = 'scratch operand']
  #allocation5 [shape = 'f32[8,64]{1,0:T(8,128)}', space=vmem, size = 0x1000, scoped, tag = 'scratch operand']
  #allocation6 [shape = 'f32[8,64]{1,0:T(8,128)}', space=vmem, size = 0x1000, scoped, tag = 'scratch operand']
  #allocation7 [shape = 'f32[8,128]{1,0:T(8,128)}', space=vmem, size = 0x1000, scoped, tag = 'scratch operand']
  #allocation8 [shape = 'f32[8,64]{1,0:T(8,128)}', space=vmem, size = 0x1000, scoped, tag = 'scratch operand']
  %s0 = inlined_call_operand.vmem [shape: f32[2,8,32], index: 0, kind: input, shape index: {}, may-alias: {0,13}]
  %s1 = inlined_call_operand.vmem [shape: f32[2,8,32], index: 1, kind: input, shape index: {}, may-alias: {1,14}]
  %s2 = inlined_call_operand.vmem [shape: f32[1,32], index: 2, kind: input, shape index: {}]
  %s3 = inlined_call_operand.vmem [shape: bf16[32,64], index: 3, kind: input, shape index: {}]
  %s4 = inlined_call_operand.vmem [shape: bf16[32,64], index: 4, kind: input, shape index: {}]
  %s5 = inlined_call_operand.vmem [shape: f32[4,64], index: 5, kind: input, shape index: {}]
  %s6 = inlined_call_operand.vmem [shape: f32[1,64], index: 6, kind: input, shape index: {}]
  %s7 = inlined_call_operand.vmem [shape: bf16[64,256], index: 7, kind: input, shape index: {}]
  %s8 = inlined_call_operand.vmem [shape: bf16[128,64], index: 8, kind: input, shape index: {}]
  %s9 = inlined_call_operand.vmem [shape: f32[1,64], index: 9, kind: input, shape index: {}]
  %s10 = inlined_call_operand.vmem [shape: f32[64,64], index: 10, kind: input, shape index: {}]
  %s11 = inlined_call_operand.vmem [shape: f32[1,64], index: 11, kind: input, shape index: {}]
  %s12 = inlined_call_operand.vmem [shape: bf16[64,32], index: 12, kind: input, shape index: {}]
  %s13 = inlined_call_operand.vmem [shape: f32[2,8,32], index: 13, kind: output, shape index: {0}, may-alias: {0,13}]
  %s14 = inlined_call_operand.vmem [shape: f32[2,8,32], index: 14, kind: output, shape index: {1}, may-alias: {1,14}]
  %15 = xla_tuple %s13, %s14
  %s16 = sld [smem:[#allocation0]]
  $region97: #{pure_mamba_forward.4} parent=0
    _
  %s18 = ssub.s32 1, %s16
  %s19 = scalar_select 0, %s18, %s16
  loop: start=0, step=1, limit=4
  $region2: #{pure_mamba_forward.4} parent=0 // loop_pre_header
    _
  $region3: #{pure_mamba_forward.4} parent=0 // loop_header
    %s21 = sphi 0, %s25
    %p22 = scmp.ge.s32.totalorder %s21, 4
    %s28 = sphi 0, %s40
    %s29 = sphi 0, %s36
    %s30 = sphi 0, %s28
    %s31 = sphi 0, %s29
    %s32 = sphi 0, %s30
    %s33 = sphi 0, %s31
    %s45 = sphi 0, %s47
    %s48 = sphi 0, %s45
    %s49 = sphi 0, %s48
    %s65 = sphi 0, %s49
    %s73 = sphi 0, %s75
    %s76 = sphi 0, %s73
    %s77 = sphi 0, %s76
    %s93 = sphi 0, %s77
    %s97 = sphi 0, %s97
    %s99 = sphi 0, %s97
    %s100 = sphi 0, %s99
    %s114 = sphi 0, %s100
    %s118 = sphi 0, %s118
    %s120 = sphi 0, %s118
    %s121 = sphi 0, %s120
    %s135 = sphi 0, %s121
    %s139 = sphi 0, %s139
    %s141 = sphi 0, %s139
    %s142 = sphi 0, %s141
    %s156 = sphi 0, %s142
    %s160 = sphi 0, %s160
    %s162 = sphi 0, %s160
    %s163 = sphi 0, %s162
    %s177 = sphi 0, %s163
    %s181 = sphi 0, %s181
    %s183 = sphi 0, %s181
    %s184 = sphi 0, %s183
    %s198 = sphi 0, %s184
    %s202 = sphi 0, %s202
    %s204 = sphi 0, %s202
    %s205 = sphi 0, %s204
    %s219 = sphi 0, %s205
    %s223 = sphi 0, %s223
    %s225 = sphi 0, %s223
    %s226 = sphi 0, %s225
    %s240 = sphi 0, %s226
    %s244 = sphi 0, %s244
    %s246 = sphi 0, %s244
    %s247 = sphi 0, %s246
    %s261 = sphi 0, %s247
    %s265 = sphi 0, %s265
    %s267 = sphi 0, %s265
    %s268 = sphi 0, %s267
    %s282 = sphi 0, %s268
    %s286 = sphi 0, %s286
    %s288 = sphi 0, %s286
    %s289 = sphi 0, %s288
    %s303 = sphi 0, %s289
    %s307 = sphi 0, %s307
    %s309 = sphi 0, %s307
    %s310 = sphi 0, %s309
    %s324 = sphi 0, %s310
    %s332 = sphi 0, %s334
    %s335 = sphi 0, %s332
    %s336 = sphi 0, %s335
    %s352 = sphi 0, %s336
    %s360 = sphi 0, %s362
    %s363 = sphi 0, %s360
    %s364 = sphi 0, %s363
    %s380 = sphi 0, %s364
  $region4: #{pure_mamba_forward.4} parent=0 // loop_header_branch
    %24 = sbr.rel (%p22) target = $region8
  $region5: #{pure_mamba_forward.4} parent=0 // loop_body
    %s26 = ssub.s32 %s21, 1
    %s27 = ssub.s32 %s21, 2
    %s34 = sadd.s32 1, %s29
    %p35 = scmp.ge.s32.totalorder %s34, 1
    %s36 = scalar_select %p35, 0, %s34
    %s37 = sadd.s32 1, %s28
    %s38 = scalar_select %p35, %s37, %s28
    %p39 = scmp.ge.s32.totalorder %s38, 2
    %s40 = scalar_select %p39, 0, %s38
    %s41 = ssub.s32 %s28, %s40
    %s42 = ssub.s32 %s29, %s36
    %s43 = sor.u32 %s41, %s42
    %p44 = scmp.eq.s32.totalorder %s43, 0
    %s46 = sadd.s32 %s45, 1
    %s47 = scalar_select %p44, %s45, %s46
    %p50 = pneg %p44
    %p51 = scmp.eq.s32.totalorder %s21, 1
    %p52 = por %p50, %p51
    %p53 = scmp.ne.s32.totalorder %s45, %s48
    %p54 = scmp.eq.s32.totalorder %s21, 0
    %p55 = por %p53, %p54
    %p56 = scmp.ne.s32.totalorder %s45, %s48
    %p57 = scmp.eq.s32.totalorder %s26, 1
    %p58 = por %p56, %p57
    %p59 = scmp.ne.s32.totalorder %s48, %s49
    %p60 = scmp.eq.s32.totalorder %s26, 0
    %p61 = por %p59, %p60
    %p62 = scmp.ne.s32.totalorder %s48, %s49
    %p63 = scmp.eq.s32.totalorder %s27, 1
    %p64 = por %p62, %p63
    %p66 = scmp.ne.s32.totalorder %s49, %s65
    %p67 = scmp.eq.s32.totalorder %s27, 0
    %p68 = por %p66, %p67
    %s69 = ssub.s32 %s28, %s40
    %s70 = ssub.s32 %s29, %s36
    %s71 = sor.u32 %s69, %s70
    %p72 = scmp.eq.s32.totalorder %s71, 0
    %s74 = sadd.s32 %s73, 1
    %s75 = scalar_select %p72, %s73, %s74
    %p78 = pneg %p72
    %p79 = scmp.eq.s32.totalorder %s21, 1
    %p80 = por %p78, %p79
    %p81 = scmp.ne.s32.totalorder %s73, %s76
    %p82 = scmp.eq.s32.totalorder %s21, 0
    %p83 = por %p81, %p82
    %p84 = scmp.ne.s32.totalorder %s73, %s76
    %p85 = scmp.eq.s32.totalorder %s26, 1
    %p86 = por %p84, %p85
    %p87 = scmp.ne.s32.totalorder %s76, %s77
    %p88 = scmp.eq.s32.totalorder %s26, 0
    %p89 = por %p87, %p88
    %p90 = scmp.ne.s32.totalorder %s76, %s77
    %p91 = scmp.eq.s32.totalorder %s27, 1
    %p92 = por %p90, %p91
    %p94 = scmp.ne.s32.totalorder %s77, %s93
    %p95 = scmp.eq.s32.totalorder %s27, 0
    %p96 = por %p94, %p95
    %s98 = sadd.s32 %s97, 1
    %p101 = scmp.eq.s32.totalorder %s21, 1
    %p102 = scmp.ne.s32.totalorder %s97, %s99
    %p103 = scmp.eq.s32.totalorder %s21, 0
    %p104 = por %p102, %p103
    %p105 = scmp.ne.s32.totalorder %s97, %s99
    %p106 = scmp.eq.s32.totalorder %s26, 1
    %p107 = por %p105, %p106
    %p108 = scmp.ne.s32.totalorder %s99, %s100
    %p109 = scmp.eq.s32.totalorder %s26, 0
    %p110 = por %p108, %p109
    %p111 = scmp.ne.s32.totalorder %s99, %s100
    %p112 = scmp.eq.s32.totalorder %s27, 1
    %p113 = por %p111, %p112
    %p115 = scmp.ne.s32.totalorder %s100, %s114
    %p116 = scmp.eq.s32.totalorder %s27, 0
    %p117 = por %p115, %p116
    %s119 = sadd.s32 %s118, 1
    %p122 = scmp.eq.s32.totalorder %s21, 1
    %p123 = scmp.ne.s32.totalorder %s118, %s120
    %p124 = scmp.eq.s32.totalorder %s21, 0
    %p125 = por %p123, %p124
    %p126 = scmp.ne.s32.totalorder %s118, %s120
    %p127 = scmp.eq.s32.totalorder %s26, 1
    %p128 = por %p126, %p127
    %p129 = scmp.ne.s32.totalorder %s120, %s121
    %p130 = scmp.eq.s32.totalorder %s26, 0
    %p131 = por %p129, %p130
    %p132 = scmp.ne.s32.totalorder %s120, %s121
    %p133 = scmp.eq.s32.totalorder %s27, 1
    %p134 = por %p132, %p133
    %p136 = scmp.ne.s32.totalorder %s121, %s135
    %p137 = scmp.eq.s32.totalorder %s27, 0
    %p138 = por %p136, %p137
    %s140 = sadd.s32 %s139, 1
    %p143 = scmp.eq.s32.totalorder %s21, 1
    %p144 = scmp.ne.s32.totalorder %s139, %s141
    %p145 = scmp.eq.s32.totalorder %s21, 0
    %p146 = por %p144, %p145
    %p147 = scmp.ne.s32.totalorder %s139, %s141
    %p148 = scmp.eq.s32.totalorder %s26, 1
    %p149 = por %p147, %p148
    %p150 = scmp.ne.s32.totalorder %s141, %s142
    %p151 = scmp.eq.s32.totalorder %s26, 0
    %p152 = por %p150, %p151
    %p153 = scmp.ne.s32.totalorder %s141, %s142
    %p154 = scmp.eq.s32.totalorder %s27, 1
    %p155 = por %p153, %p154
    %p157 = scmp.ne.s32.totalorder %s142, %s156
    %p158 = scmp.eq.s32.totalorder %s27, 0
    %p159 = por %p157, %p158
    %s161 = sadd.s32 %s160, 1
    %p164 = scmp.eq.s32.totalorder %s21, 1
    %p165 = scmp.ne.s32.totalorder %s160, %s162
    %p166 = scmp.eq.s32.totalorder %s21, 0
    %p167 = por %p165, %p166
    %p168 = scmp.ne.s32.totalorder %s160, %s162
    %p169 = scmp.eq.s32.totalorder %s26, 1
    %p170 = por %p168, %p169
    %p171 = scmp.ne.s32.totalorder %s162, %s163
    %p172 = scmp.eq.s32.totalorder %s26, 0
    %p173 = por %p171, %p172
    %p174 = scmp.ne.s32.totalorder %s162, %s163
    %p175 = scmp.eq.s32.totalorder %s27, 1
    %p176 = por %p174, %p175
    %p178 = scmp.ne.s32.totalorder %s163, %s177
    %p179 = scmp.eq.s32.totalorder %s27, 0
    %p180 = por %p178, %p179
    %s182 = sadd.s32 %s181, 1
    %p185 = scmp.eq.s32.totalorder %s21, 1
    %p186 = scmp.ne.s32.totalorder %s181, %s183
    %p187 = scmp.eq.s32.totalorder %s21, 0
    %p188 = por %p186, %p187
    %p189 = scmp.ne.s32.totalorder %s181, %s183
    %p190 = scmp.eq.s32.totalorder %s26, 1
    %p191 = por %p189, %p190
    %p192 = scmp.ne.s32.totalorder %s183, %s184
    %p193 = scmp.eq.s32.totalorder %s26, 0
    %p194 = por %p192, %p193
    %p195 = scmp.ne.s32.totalorder %s183, %s184
    %p196 = scmp.eq.s32.totalorder %s27, 1
    %p197 = por %p195, %p196
    %p199 = scmp.ne.s32.totalorder %s184, %s198
    %p200 = scmp.eq.s32.totalorder %s27, 0
    %p201 = por %p199, %p200
    %s203 = sadd.s32 %s202, 1
    %p206 = scmp.eq.s32.totalorder %s21, 1
    %p207 = scmp.ne.s32.totalorder %s202, %s204
    %p208 = scmp.eq.s32.totalorder %s21, 0
    %p209 = por %p207, %p208
    %p210 = scmp.ne.s32.totalorder %s202, %s204
    %p211 = scmp.eq.s32.totalorder %s26, 1
    %p212 = por %p210, %p211
    %p213 = scmp.ne.s32.totalorder %s204, %s205
    %p214 = scmp.eq.s32.totalorder %s26, 0
    %p215 = por %p213, %p214
    %p216 = scmp.ne.s32.totalorder %s204, %s205
    %p217 = scmp.eq.s32.totalorder %s27, 1
    %p218 = por %p216, %p217
    %p220 = scmp.ne.s32.totalorder %s205, %s219
    %p221 = scmp.eq.s32.totalorder %s27, 0
    %p222 = por %p220, %p221
    %s224 = sadd.s32 %s223, 1
    %p227 = scmp.eq.s32.totalorder %s21, 1
    %p228 = scmp.ne.s32.totalorder %s223, %s225
    %p229 = scmp.eq.s32.totalorder %s21, 0
    %p230 = por %p228, %p229
    %p231 = scmp.ne.s32.totalorder %s223, %s225
    %p232 = scmp.eq.s32.totalorder %s26, 1
    %p233 = por %p231, %p232
    %p234 = scmp.ne.s32.totalorder %s225, %s226
    %p235 = scmp.eq.s32.totalorder %s26, 0
    %p236 = por %p234, %p235
    %p237 = scmp.ne.s32.totalorder %s225, %s226
    %p238 = scmp.eq.s32.totalorder %s27, 1
    %p239 = por %p237, %p238
    %p241 = scmp.ne.s32.totalorder %s226, %s240
    %p242 = scmp.eq.s32.totalorder %s27, 0
    %p243 = por %p241, %p242
    %s245 = sadd.s32 %s244, 1
    %p248 = scmp.eq.s32.totalorder %s21, 1
    %p249 = scmp.ne.s32.totalorder %s244, %s246
    %p250 = scmp.eq.s32.totalorder %s21, 0
    %p251 = por %p249, %p250
    %p252 = scmp.ne.s32.totalorder %s244, %s246
    %p253 = scmp.eq.s32.totalorder %s26, 1
    %p254 = por %p252, %p253
    %p255 = scmp.ne.s32.totalorder %s246, %s247
    %p256 = scmp.eq.s32.totalorder %s26, 0
    %p257 = por %p255, %p256
    %p258 = scmp.ne.s32.totalorder %s246, %s247
    %p259 = scmp.eq.s32.totalorder %s27, 1
    %p260 = por %p258, %p259
    %p262 = scmp.ne.s32.totalorder %s247, %s261
    %p263 = scmp.eq.s32.totalorder %s27, 0
    %p264 = por %p262, %p263
    %s266 = sadd.s32 %s265, 1
    %p269 = scmp.eq.s32.totalorder %s21, 1
    %p270 = scmp.ne.s32.totalorder %s265, %s267
    %p271 = scmp.eq.s32.totalorder %s21, 0
    %p272 = por %p270, %p271
    %p273 = scmp.ne.s32.totalorder %s265, %s267
    %p274 = scmp.eq.s32.totalorder %s26, 1
    %p275 = por %p273, %p274
    %p276 = scmp.ne.s32.totalorder %s267, %s268
    %p277 = scmp.eq.s32.totalorder %s26, 0
    %p278 = por %p276, %p277
    %p279 = scmp.ne.s32.totalorder %s267, %s268
    %p280 = scmp.eq.s32.totalorder %s27, 1
    %p281 = por %p279, %p280
    %p283 = scmp.ne.s32.totalorder %s268, %s282
    %p284 = scmp.eq.s32.totalorder %s27, 0
    %p285 = por %p283, %p284
    %s287 = sadd.s32 %s286, 1
    %p290 = scmp.eq.s32.totalorder %s21, 1
    %p291 = scmp.ne.s32.totalorder %s286, %s288
    %p292 = scmp.eq.s32.totalorder %s21, 0
    %p293 = por %p291, %p292
    %p294 = scmp.ne.s32.totalorder %s286, %s288
    %p295 = scmp.eq.s32.totalorder %s26, 1
    %p296 = por %p294, %p295
    %p297 = scmp.ne.s32.totalorder %s288, %s289
    %p298 = scmp.eq.s32.totalorder %s26, 0
    %p299 = por %p297, %p298
    %p300 = scmp.ne.s32.totalorder %s288, %s289
    %p301 = scmp.eq.s32.totalorder %s27, 1
    %p302 = por %p300, %p301
    %p304 = scmp.ne.s32.totalorder %s289, %s303
    %p305 = scmp.eq.s32.totalorder %s27, 0
    %p306 = por %p304, %p305
    %s308 = sadd.s32 %s307, 1
    %p311 = scmp.eq.s32.totalorder %s21, 1
    %p312 = scmp.ne.s32.totalorder %s307, %s309
    %p313 = scmp.eq.s32.totalorder %s21, 0
    %p314 = por %p312, %p313
    %p315 = scmp.ne.s32.totalorder %s307, %s309
    %p316 = scmp.eq.s32.totalorder %s26, 1
    %p317 = por %p315, %p316
    %p318 = scmp.ne.s32.totalorder %s309, %s310
    %p319 = scmp.eq.s32.totalorder %s26, 0
    %p320 = por %p318, %p319
    %p321 = scmp.ne.s32.totalorder %s309, %s310
    %p322 = scmp.eq.s32.totalorder %s27, 1
    %p323 = por %p321, %p322
    %p325 = scmp.ne.s32.totalorder %s310, %s324
    %p326 = scmp.eq.s32.totalorder %s27, 0
    %p327 = por %p325, %p326
    %s328 = ssub.s32 %s28, %s40
    %s329 = ssub.s32 %s29, %s36
    %s330 = sor.u32 %s328, %s329
    %p331 = scmp.eq.s32.totalorder %s330, 0
    %s333 = sadd.s32 %s332, 1
    %s334 = scalar_select %p331, %s332, %s333
    %p337 = pneg %p331
    %p338 = scmp.eq.s32.totalorder %s21, 1
    %p339 = por %p337, %p338
    %p340 = scmp.ne.s32.totalorder %s332, %s335
    %p341 = scmp.eq.s32.totalorder %s21, 0
    %p342 = por %p340, %p341
    %p343 = scmp.ne.s32.totalorder %s332, %s335
    %p344 = scmp.eq.s32.totalorder %s26, 1
    %p345 = por %p343, %p344
    %p346 = scmp.ne.s32.totalorder %s335, %s336
    %p347 = scmp.eq.s32.totalorder %s26, 0
    %p348 = por %p346, %p347
    %p349 = scmp.ne.s32.totalorder %s335, %s336
    %p350 = scmp.eq.s32.totalorder %s27, 1
    %p351 = por %p349, %p350
    %p353 = scmp.ne.s32.totalorder %s336, %s352
    %p354 = scmp.eq.s32.totalorder %s27, 0
    %p355 = por %p353, %p354
    %s356 = ssub.s32 %s28, %s40
    %s357 = ssub.s32 %s29, %s36
    %s358 = sor.u32 %s356, %s357
    %p359 = scmp.eq.s32.totalorder %s358, 0
    %s361 = sadd.s32 %s360, 1
    %s362 = scalar_select %p359, %s360, %s361
    %p365 = pneg %p359
    %p366 = scmp.eq.s32.totalorder %s21, 1
    %p367 = por %p365, %p366
    %p368 = scmp.ne.s32.totalorder %s360, %s363
    %p369 = scmp.eq.s32.totalorder %s21, 0
    %p370 = por %p368, %p369
    %p371 = scmp.ne.s32.totalorder %s360, %s363
    %p372 = scmp.eq.s32.totalorder %s26, 1
    %p373 = por %p371, %p372
    %p374 = scmp.ne.s32.totalorder %s363, %s364
    %p375 = scmp.eq.s32.totalorder %s26, 0
    %p376 = por %p374, %p375
    %p377 = scmp.ne.s32.totalorder %s363, %s364
    %p378 = scmp.eq.s32.totalorder %s27, 1
    %p379 = por %p377, %p378
    %p381 = scmp.ne.s32.totalorder %s364, %s380
    %p382 = scmp.eq.s32.totalorder %s27, 0
    %p383 = por %p381, %p382
    %p384 = scmp.le.s32.totalorder 1, %s21
    %p385 = scmp.lt.s32.totalorder %s21, 3
    %p386 = pnand %p384, %p385
    %p387 = pneg %p386
    // Predicated region
    $region9: #{pure_mamba_forward.4} parent=5 // pred_check
      _
    $region10: #{pure_mamba_forward.4} parent=5 // pred_check_branch
      %389 = sbr.rel (%p386) target = $region12
    $region11: #{pure_mamba_forward.4} parent=5 // pred_region
      %s390 = ssub.s32 %s21, 1
      // Predicated region
      $region13: #{pure_mamba_forward.4} parent=11 // pred_check
        %p391 = pneg %p110
      $region14: #{pure_mamba_forward.4} parent=11 // pred_check_branch
        %393 = sbr.rel (%p391) target = $region16
      $region15: #{pure_mamba_forward.4} parent=11 // pred_region
        _
      $region16: #{pure_mamba_forward.4} parent=11 // pred_fallthru
        _
      // Predicated region
      $region17: #{pure_mamba_forward.4} parent=11 // pred_check
        %p394 = pneg %p131
      $region18: #{pure_mamba_forward.4} parent=11 // pred_check_branch
        %396 = sbr.rel (%p394) target = $region20
      $region19: #{pure_mamba_forward.4} parent=11 // pred_region
        _
      $region20: #{pure_mamba_forward.4} parent=11 // pred_fallthru
        _
      // Predicated region
      $region21: #{pure_mamba_forward.4} parent=11 // pred_check
        %p397 = pneg %p152
      $region22: #{pure_mamba_forward.4} parent=11 // pred_check_branch
        %399 = sbr.rel (%p397) target = $region24
      $region23: #{pure_mamba_forward.4} parent=11 // pred_region
        _
      $region24: #{pure_mamba_forward.4} parent=11 // pred_fallthru
        _
      // Predicated region
      $region25: #{pure_mamba_forward.4} parent=11 // pred_check
        %p400 = pneg %p173
      $region26: #{pure_mamba_forward.4} parent=11 // pred_check_branch
        %402 = sbr.rel (%p400) target = $region28
      $region27: #{pure_mamba_forward.4} parent=11 // pred_region
        _
      $region28: #{pure_mamba_forward.4} parent=11 // pred_fallthru
        _
      // Predicated region
      $region29: #{pure_mamba_forward.4} parent=11 // pred_check
        %p403 = pneg %p194
      $region30: #{pure_mamba_forward.4} parent=11 // pred_check_branch
        %405 = sbr.rel (%p403) target = $region32
      $region31: #{pure_mamba_forward.4} parent=11 // pred_region
        _
      $region32: #{pure_mamba_forward.4} parent=11 // pred_fallthru
        _
      // Predicated region
      $region33: #{pure_mamba_forward.4} parent=11 // pred_check
        %p406 = pneg %p215
      $region34: #{pure_mamba_forward.4} parent=11 // pred_check_branch
        %408 = sbr.rel (%p406) target = $region36
      $region35: #{pure_mamba_forward.4} parent=11 // pred_region
        _
      $region36: #{pure_mamba_forward.4} parent=11 // pred_fallthru
        _
      // Predicated region
      $region37: #{pure_mamba_forward.4} parent=11 // pred_check
        %p409 = pneg %p236
      $region38: #{pure_mamba_forward.4} parent=11 // pred_check_branch
        %411 = sbr.rel (%p409) target = $region40
      $region39: #{pure_mamba_forward.4} parent=11 // pred_region
        _
      $region40: #{pure_mamba_forward.4} parent=11 // pred_fallthru
        _
      // Predicated region
      $region41: #{pure_mamba_forward.4} parent=11 // pred_check
        %p412 = pneg %p257
      $region42: #{pure_mamba_forward.4} parent=11 // pred_check_branch
        %414 = sbr.rel (%p412) target = $region44
      $region43: #{pure_mamba_forward.4} parent=11 // pred_region
        _
      $region44: #{pure_mamba_forward.4} parent=11 // pred_fallthru
        _
      // Predicated region
      $region45: #{pure_mamba_forward.4} parent=11 // pred_check
        %p415 = pneg %p278
      $region46: #{pure_mamba_forward.4} parent=11 // pred_check_branch
        %417 = sbr.rel (%p415) target = $region48
      $region47: #{pure_mamba_forward.4} parent=11 // pred_region
        _
      $region48: #{pure_mamba_forward.4} parent=11 // pred_fallthru
        _
      // Predicated region
      $region49: #{pure_mamba_forward.4} parent=11 // pred_check
        %p418 = pneg %p299
      $region50: #{pure_mamba_forward.4} parent=11 // pred_check_branch
        %420 = sbr.rel (%p418) target = $region52
      $region51: #{pure_mamba_forward.4} parent=11 // pred_region
        _
      $region52: #{pure_mamba_forward.4} parent=11 // pred_fallthru
        _
      // Predicated region
      $region53: #{pure_mamba_forward.4} parent=11 // pred_check
        %p421 = pneg %p320
      $region54: #{pure_mamba_forward.4} parent=11 // pred_check_branch
        %423 = sbr.rel (%p421) target = $region56
      $region55: #{pure_mamba_forward.4} parent=11 // pred_region
        _
      $region56: #{pure_mamba_forward.4} parent=11 // pred_fallthru
        _
    $region12: #{pure_mamba_forward.4} parent=5 // pred_fallthru
      _
    %p424 = scmp.lt.s32.totalorder %s21, 2
    // Predicated region
    $region57: #{pure_mamba_forward.4} parent=5 // pred_check
      %p425 = pneg %p424
    $region58: #{pure_mamba_forward.4} parent=5 // pred_check_branch
      %427 = sbr.rel (%p425) target = $region60
    $region59: #{pure_mamba_forward.4} parent=5 // pred_region
      // Predicated region
      $region61: #{pure_mamba_forward.4} parent=59 // pred_check
        %p428 = pneg %p55
      $region62: #{pure_mamba_forward.4} parent=59 // pred_check_branch
        %430 = sbr.rel (%p428) target = $region64
      $region63: #{pure_mamba_forward.4} parent=59 // pred_region
        %p431 = scmp.lt.s32.totalorder %s28, 1
        %s432 = scalar_select %p431, %s28, 1
        %p433 = scmp.lt.s32.totalorder %s29, 0
        %s434 = scalar_select %p433, %s29, 0
        %s435 = sadd.s32 %s434, %s432
        %s436 = smul.addr %s435, 8
        %s437 = scalar_lea.vmem %s0, %s436
      $region64: #{pure_mamba_forward.4} parent=59 // pred_fallthru
        _
      // Predicated region
      $region65: #{pure_mamba_forward.4} parent=59 // pred_check
        %p438 = pneg %p83
      $region66: #{pure_mamba_forward.4} parent=59 // pred_check_branch
        %440 = sbr.rel (%p438) target = $region68
      $region67: #{pure_mamba_forward.4} parent=59 // pred_region
        %p441 = scmp.lt.s32.totalorder %s28, 1
        %s442 = scalar_select %p441, %s28, 1
        %p443 = scmp.lt.s32.totalorder %s29, 0
        %s444 = scalar_select %p443, %s29, 0
        %s445 = sadd.s32 %s444, %s442
        %s446 = smul.addr %s445, 8
        %s447 = scalar_lea.vmem %s1, %s446
      $region68: #{pure_mamba_forward.4} parent=59 // pred_fallthru
        _
    $region60: #{pure_mamba_forward.4} parent=5 // pred_fallthru
      _
    %p448 = scmp.le.s32.totalorder 1, %s21
    %p449 = scmp.lt.s32.totalorder %s21, 3
    %p450 = pnand %p448, %p449
    %p451 = pneg %p450
    // Predicated region
    $region69: #{pure_mamba_forward.4} parent=5 // pred_check
      _
    $region70: #{pure_mamba_forward.4} parent=5 // pred_check_branch
      %453 = sbr.rel (%p450) target = $region72
    $region71: #{pure_mamba_forward.4} parent=5 // pred_region
      %s454 = ssub.s32 %s21, 1
      %p455 = scmp.lt.s32.totalorder %s30, 1
      %s456 = scalar_select %p455, %s30, 1
      %p457 = scmp.lt.s32.totalorder %s31, 0
      %s458 = scalar_select %p457, %s31, 0
      %s459 = sadd.s32 %s458, %s456
      %s460 = smul.addr %s459, 8
      %s461 = scalar_lea.vmem %s0, %s460
      %p462 = pneg %p61
      %p463 = pneg %p58
      %p464 = scmp.lt.s32.totalorder %s30, 1
      %s465 = scalar_select %p464, %s30, 1
      %p466 = scmp.lt.s32.totalorder %s31, 0
      %s467 = scalar_select %p466, %s31, 0
      %s468 = sadd.s32 %s467, %s465
      %s469 = smul.addr %s468, 8
      %s470 = scalar_lea.vmem %s1, %s469
      %p471 = pneg %p89
      %p472 = pneg %p86
      %p473 = pneg %p110
      %p474 = pneg %p107
      %p475 = pneg %p131
      %p476 = pneg %p128
      %p477 = pneg %p152
      %p478 = pneg %p149
      %p479 = pneg %p173
      %p480 = pneg %p170
      %p481 = pneg %p194
      %p482 = pneg %p191
      %p483 = pneg %p215
      %p484 = pneg %p212
      %p485 = pneg %p236
      %p486 = pneg %p233
      %p487 = pneg %p257
      %p488 = pneg %p254
      %p489 = pneg %p278
      %p490 = pneg %p275
      %p491 = pneg %p299
      %p492 = pneg %p296
      %p493 = pneg %p320
      %p494 = pneg %p317
      %p495 = pneg %p348
      %p496 = pneg %p345
      %p497 = scmp.lt.s32.totalorder %s30, 1
      %s498 = scalar_select %p497, %s30, 1
      %p499 = scmp.lt.s32.totalorder %s31, 0
      %s500 = scalar_select %p499, %s31, 0
      %s501 = sadd.s32 %s500, %s498
      %s502 = smul.addr %s501, 8
      %s503 = scalar_lea.vmem %s13, %s502
      %p504 = pneg %p376
      %p505 = pneg %p373
      %p506 = scmp.lt.s32.totalorder %s30, 1
      %s507 = scalar_select %p506, %s30, 1
      %p508 = scmp.lt.s32.totalorder %s31, 0
      %s509 = scalar_select %p508, %s31, 0
      %s510 = sadd.s32 %s509, %s507
      %s511 = smul.addr %s510, 8
      %s512 = scalar_lea.vmem %s14, %s511
      %p513 = scmp.lt.s32.totalorder %s30, 1
      %s514 = scalar_select %p513, %s30, 1
      %p515 = scmp.lt.s32.totalorder %s31, 0
      %s516 = scalar_select %p515, %s31, 0
      %s517 = sadd.s32 %s516, %s514
      %s518 = smul.addr %s517, 8
      %s519 = scalar_lea.vmem %s0, %s518
      %p520 = scmp.lt.s32.totalorder %s30, 1
      %s521 = scalar_select %p520, %s30, 1
      %p522 = scmp.lt.s32.totalorder %s31, 0
      %s523 = scalar_select %p522, %s31, 0
      %s524 = sadd.s32 %s523, %s521
      %s525 = smul.addr %s524, 8
      %s526 = scalar_lea.vmem %s1, %s525
      %p527 = scmp.lt.s32.totalorder %s30, 1
      %s528 = scalar_select %p527, %s30, 1
      %p529 = scmp.lt.s32.totalorder %s31, 0
      %s530 = scalar_select %p529, %s31, 0
      %s531 = sadd.s32 %s530, %s528
      %s532 = smul.addr %s531, 8
      %s533 = scalar_lea.vmem %s13, %s532
      %p534 = scmp.lt.s32.totalorder %s30, 1
      %s535 = scalar_select %p534, %s30, 1
      %p536 = scmp.lt.s32.totalorder %s31, 0
      %s537 = scalar_select %p536, %s31, 0
      %s538 = sadd.s32 %s537, %s535
      %s539 = smul.addr %s538, 8
      %s540 = scalar_lea.vmem %s14, %s539
      %p542 = scmp.eq.s32.totalorder %s31, 0
      // Predicated region
      $region73: #{pure_mamba_forward.4} parent=71 // pred_check
        %p543 = pneg %p542
      $region74: #{pure_mamba_forward.4} parent=71 // pred_check_branch
        %545 = sbr.rel (%p543) target = $region76
      $region75: #{pure_mamba_forward.4} parent=71 // pred_region
        %vm546 = vcmask 523264
        %547 = vst.msk [vmem:[#allocation4] sm:$0xff] %vm546, 0.0
        %548 = vst.msk [vmem:[#allocation4 + $0x8] sm:$0xff] %vm546, 0.0
        %549 = vst.msk [vmem:[#allocation4 + $0x10] sm:$0xff] %vm546, 0.0
        %550 = vst.msk [vmem:[#allocation4 + $0x18] sm:$0xff] %vm546, 0.0
        %551 = vst.msk [vmem:[#allocation4 + $0x20] sm:$0xff] %vm546, 0.0
        %552 = vst.msk [vmem:[#allocation4 + $0x28] sm:$0xff] %vm546, 0.0
        %553 = vst.msk [vmem:[#allocation4 + $0x30] sm:$0xff] %vm546, 0.0
        %554 = vst.msk [vmem:[#allocation4 + $0x38] sm:$0xff] %vm546, 0.0
        %vm555 = vcmask 518144
        %556 = vst.msk [vmem:[#allocation3] sm:$0x7] %vm555, 0.0
      $region76: #{pure_mamba_forward.4} parent=71 // pred_fallthru
        _
      %v557 = vld [vmem:[%s519] sm:$0xff]
      %v558 = vld [vmem:[%s526] sm:$0xff]
      %v559 = vadd.f32 %v557, %v558
      %v560 = vmul.f32 %v559, %v559
      %vm561 = vcmask 261120
      %v562 = vsel %vm561, %v560, 0.0
      %563 = vadd.xlane.f32.xlu0 %v562
      %v564 = vpop.xlane.xlu0 %563
      %v565 = vrcp.pop 32.0
      %v566 = vmul.f32 %v564, %v565
      %v567 = vadd.f32 %v566, 1e-05
      %v568 = vrsqrt.pop %v567
      %v569 = vmul.f32 %v559, %v568
      %v570 = vld [vmem:[%s2] sm:$0x1]
      %v572 = vlaneseq
      %v573 = vshrl.u32 %v572, 7
      %v574 = vsub.s32 0, %v573
      %v575 = vrot.slane %v570, %v574
      %v577 = vmul.f32 %v569, %v575
      %v578 = vpack.c.bf16 %v577, %v577
      %v579 = vld [vmem:[%s3] sm:$0xf]
      %v580 = vld [vmem:[%s3 + $0x4] sm:$0xf]
      %v581 = vld [vmem:[%s3 + $0x8] sm:$0xf]
      %v582 = vld [vmem:[%s3 + $0xc] sm:$0xf]
      %v587 = vunpack.c.l.b16 %v579
      %v588 = vunpack.c.l.b16 %v580
      %v589 = vunpack.c.l.b16 %v581
      %v590 = vunpack.c.l.b16 %v582
      %v591 = vpack.c.b16 %v588, %v587
      %v592 = vpack.c.b16 %v590, %v589
      %v596 = vsel %vm561, %v578, 0
      %598 = vmatprep.subr.bf16.mxu0 0
      %599 = vmatpush1.bf16.msra.mxu0 %v591
      %600 = vmatprep.subr.bf16.mxu0 0
      %601 = vmatpush1.bf16.msra.mxu0 %v592
      %602 = vmatprep.subr.bf16.mxu0 0
      %603 = vmatpush1.bf16.msra.mxu0 0
      %604 = vmatprep.subr.bf16.mxu0 0
      %605 = vmatpush1.bf16.msra.mxu0 0
      %606 = vmatprep.subr.bf16.mxu0 0
      %607 = vmatpush1.bf16.msra.mxu0 0
      %608 = vmatprep.subr.bf16.mxu0 0
      %609 = vmatpush1.bf16.msra.mxu0 0
      %610 = vmatprep.subr.bf16.mxu0 0
      %611 = vmatpush1.bf16.msra.mxu0 0
      %612 = vmatprep.subr.bf16.mxu0 0
      %613 = vmatpush1.bf16.msra.mxu0 0
      %614 = vmatprep.subr.bf16.mxu0 0
      %615 = vmatpush1.bf16.msra.mxu0 0
      %616 = vmatprep.subr.bf16.mxu0 0
      %617 = vmatpush1.bf16.msra.mxu0 0
      %618 = vmatprep.subr.bf16.mxu0 0
      %619 = vmatpush1.bf16.msra.mxu0 0
      %620 = vmatprep.subr.bf16.mxu0 0
      %621 = vmatpush1.bf16.msra.mxu0 0
      %622 = vmatprep.subr.bf16.mxu0 0
      %623 = vmatpush1.bf16.msra.mxu0 0
      %624 = vmatprep.subr.bf16.mxu0 0
      %625 = vmatpush1.bf16.msra.mxu0 0
      %626 = vmatprep.subr.bf16.mxu0 0
      %627 = vmatpush1.bf16.msra.mxu0 0
      %628 = vmatprep.subr.bf16.mxu0 0
      %629 = vmatpush1.bf16.msra.mxu0 0
      %630 = vmatprep.mubr.bf16.mxu0 0
      %631 = vmatmul.mubr.bf16.gmra.mrb[0].mxu0 %v596
      %v632 = vpop.f32.mrb[0].mxu0
      %v633 = vadd.f32 0.0, %v632
      %v634 = vpop.f32.mrb[0].mxu0
      %v635 = vpop.f32.mrb[0].mxu0
      %v636 = vpop.f32.mrb[0].mxu0
      %637 = vdwg.mxu0
      %v638 = vld [vmem:[%s4] sm:$0xf]
      %v639 = vld [vmem:[%s4 + $0x4] sm:$0xf]
      %v640 = vld [vmem:[%s4 + $0x8] sm:$0xf]
      %v641 = vld [vmem:[%s4 + $0xc] sm:$0xf]
      %v646 = vunpack.c.l.b16 %v638
      %v647 = vunpack.c.l.b16 %v639
      %v648 = vunpack.c.l.b16 %v640
      %v649 = vunpack.c.l.b16 %v641
      %v650 = vpack.c.b16 %v647, %v646
      %v651 = vpack.c.b16 %v649, %v648
      %654 = vmatprep.subr.bf16.mxu0 0
      %655 = vmatpush1.bf16.msra.mxu0 %v650
      %656 = vmatprep.subr.bf16.mxu0 0
      %657 = vmatpush1.bf16.msra.mxu0 %v651
      %658 = vmatprep.subr.bf16.mxu0 0
      %659 = vmatpush1.bf16.msra.mxu0 0
      %660 = vmatprep.subr.bf16.mxu0 0
      %661 = vmatpush1.bf16.msra.mxu0 0
      %662 = vmatprep.subr.bf16.mxu0 0
      %663 = vmatpush1.bf16.msra.mxu0 0
      %664 = vmatprep.subr.bf16.mxu0 0
      %665 = vmatpush1.bf16.msra.mxu0 0
      %666 = vmatprep.subr.bf16.mxu0 0
      %667 = vmatpush1.bf16.msra.mxu0 0
      %668 = vmatprep.subr.bf16.mxu0 0
      %669 = vmatpush1.bf16.msra.mxu0 0
      %670 = vmatprep.subr.bf16.mxu0 0
      %671 = vmatpush1.bf16.msra.mxu0 0
      %672 = vmatprep.subr.bf16.mxu0 0
      %673 = vmatpush1.bf16.msra.mxu0 0
      %674 = vmatprep.subr.bf16.mxu0 0
      %675 = vmatpush1.bf16.msra.mxu0 0
      %676 = vmatprep.subr.bf16.mxu0 0
      %677 = vmatpush1.bf16.msra.mxu0 0
      %678 = vmatprep.subr.bf16.mxu0 0
      %679 = vmatpush1.bf16.msra.mxu0 0
      %680 = vmatprep.subr.bf16.mxu0 0
      %681 = vmatpush1.bf16.msra.mxu0 0
      %682 = vmatprep.subr.bf16.mxu0 0
      %683 = vmatpush1.bf16.msra.mxu0 0
      %684 = vmatprep.subr.bf16.mxu0 0
      %685 = vmatpush1.bf16.msra.mxu0 0
      %686 = vmatprep.mubr.bf16.mxu0 0
      %687 = vmatmul.mubr.bf16.gmra.mrb[0].mxu0 %v596
      %v688 = vpop.f32.mrb[0].mxu0
      %v689 = vadd.f32 0.0, %v688
      %v690 = vpop.f32.mrb[0].mxu0
      %v691 = vpop.f32.mrb[0].mxu0
      %v692 = vpop.f32.mrb[0].mxu0
      %693 = vdwg.mxu0
      %v694 = vld [vmem:[#allocation3] sm:$0x7]
      %vm695 = vcmask 518144
      %696 = vst.msk [vmem:[#allocation2] sm:$0x7] %vm695, %v694
      %vm697 = vcmask 523264
      %698 = vst.msk [vmem:[#allocation2 + $0x3] sm:$0xff] %vm697, %v633
      %vm699 = vcmask 523269
      %700 = vst.msk [vmem:[#allocation3 - $0x5] sm:$0xe0] %vm699, %v633
      %v701 = vld [vmem:[#allocation2] sm:$0xff]
      %v702 = vld [vmem:[%s5] sm:$0x1]
      %v703 = vlaneseq
      %v704 = vshrl.u32 %v703, 7
      %v705 = vsub.s32 0, %v704
      %v706 = vrot.slane %v702, %v705
      %v707 = vmul.f32 %v701, %v706
      %v708 = vadd.f32 %v707, 0.0
      %v709 = vld [vmem:[#allocation2 + $0x1] sm:$0xff]
      %v710 = vld [vmem:[%s5 + $0x1] sm:$0x1]
      %v711 = vlaneseq
      %v712 = vshrl.u32 %v711, 7
      %v713 = vsub.s32 0, %v712
      %v714 = vrot.slane %v710, %v713
      %v715 = vmul.f32 %v709, %v714
      %v716 = vadd.f32 %v708, %v715
      %v717 = vld [vmem:[#allocation2 + $0x2] sm:$0xff]
      %v718 = vld [vmem:[%s5 + $0x2] sm:$0x1]
      %v719 = vlaneseq
      %v720 = vshrl.u32 %v719, 7
      %v721 = vsub.s32 0, %v720
      %v722 = vrot.slane %v718, %v721
      %v723 = vmul.f32 %v717, %v722
      %v724 = vadd.f32 %v716, %v723
      %v725 = vld [vmem:[#allocation2 + $0x3] sm:$0xff]
      %v726 = vld [vmem:[%s5 + $0x3] sm:$0x1]
      %v727 = vlaneseq
      %v728 = vshrl.u32 %v727, 7
      %v729 = vsub.s32 0, %v728
      %v730 = vrot.slane %v726, %v729
      %v731 = vmul.f32 %v725, %v730
      %v732 = vadd.f32 %v724, %v731
      %v733 = vld [vmem:[%s6] sm:$0x1]
      %v735 = vlaneseq
      %v736 = vshrl.u32 %v735, 7
      %v737 = vsub.s32 0, %v736
      %v738 = vrot.slane %v733, %v737
      %v740 = vadd.f32 %v732, %v738
      %v741 = vsub.f32 0.0, %v740
      %v742 = vmul.f32 %v741, 1.442695
      %v743 = vpow.pop %v742
      %v744 = vadd.f32 %v743, 1.0
      %v745 = vrcp.pop %v744
      %v746 = vmul.f32 %v740, %v745
      %v747 = vpack.c.bf16 %v746, %v746
      %v748 = vld [vmem:[%s7] sm:$0xff]
      %v749 = vld [vmem:[%s7 + $0x8] sm:$0xff]
      %v750 = vld [vmem:[%s7 + $0x10] sm:$0xff]
      %v751 = vld [vmem:[%s7 + $0x18] sm:$0xff]
      %v752 = vld [vmem:[%s7 + $0x20] sm:$0xff]
      %v753 = vld [vmem:[%s7 + $0x28] sm:$0xff]
      %v754 = vld [vmem:[%s7 + $0x30] sm:$0xff]
      %v755 = vld [vmem:[%s7 + $0x38] sm:$0xff]
      %v764 = vunpack.c.l.b16 %v748
      %v765 = vunpack.c.h.b16 %v748
      %v766 = vunpack.c.l.b16 %v749
      %v767 = vunpack.c.h.b16 %v749
      %v768 = vunpack.c.l.b16 %v750
      %v769 = vunpack.c.h.b16 %v750
      %v770 = vunpack.c.l.b16 %v751
      %v771 = vunpack.c.h.b16 %v751
      %v772 = vunpack.c.l.b16 %v752
      %v773 = vunpack.c.h.b16 %v752
      %v774 = vunpack.c.l.b16 %v753
      %v775 = vunpack.c.h.b16 %v753
      %v776 = vunpack.c.l.b16 %v754
      %v777 = vunpack.c.h.b16 %v754
      %v778 = vunpack.c.l.b16 %v755
      %v779 = vunpack.c.h.b16 %v755
      %v780 = vpack.c.b16 %v766, %v764
      %v781 = vpack.c.b16 %v767, %v765
      %v782 = vpack.c.b16 %v770, %v768
      %v783 = vpack.c.b16 %v771, %v769
      %v784 = vpack.c.b16 %v774, %v772
      %v785 = vpack.c.b16 %v775, %v773
      %v786 = vpack.c.b16 %v778, %v776
      %v787 = vpack.c.b16 %v779, %v777
      %v797 = vsel %vm697, %v747, 0
      %799 = vmatprep.subr.bf16.mxu0 %v781
      %800 = vmatpush1.bf16.msra.mxu0 %v780
      %801 = vmatprep.subr.bf16.mxu0 %v783
      %802 = vmatpush1.bf16.msra.mxu0 %v782
      %803 = vmatprep.subr.bf16.mxu0 %v785
      %804 = vmatpush1.bf16.msra.mxu0 %v784
      %805 = vmatprep.subr.bf16.mxu0 %v787
      %806 = vmatpush1.bf16.msra.mxu0 %v786
      %807 = vmatprep.subr.bf16.mxu0 0
      %808 = vmatpush1.bf16.msra.mxu0 0
      %809 = vmatprep.subr.bf16.mxu0 0
      %810 = vmatpush1.bf16.msra.mxu0 0
      %811 = vmatprep.subr.bf16.mxu0 0
      %812 = vmatpush1.bf16.msra.mxu0 0
      %813 = vmatprep.subr.bf16.mxu0 0
      %814 = vmatpush1.bf16.msra.mxu0 0
      %815 = vmatprep.subr.bf16.mxu0 0
      %816 = vmatpush1.bf16.msra.mxu0 0
      %817 = vmatprep.subr.bf16.mxu0 0
      %818 = vmatpush1.bf16.msra.mxu0 0
      %819 = vmatprep.subr.bf16.mxu0 0
      %820 = vmatpush1.bf16.msra.mxu0 0
      %821 = vmatprep.subr.bf16.mxu0 0
      %822 = vmatpush1.bf16.msra.mxu0 0
      %823 = vmatprep.subr.bf16.mxu0 0
      %824 = vmatpush1.bf16.msra.mxu0 0
      %825 = vmatprep.subr.bf16.mxu0 0
      %826 = vmatpush1.bf16.msra.mxu0 0
      %827 = vmatprep.subr.bf16.mxu0 0
      %828 = vmatpush1.bf16.msra.mxu0 0
      %829 = vmatprep.subr.bf16.mxu0 0
      %830 = vmatpush1.bf16.msra.mxu0 0
      %831 = vmatprep.mubr.bf16.mxu0 0
      %832 = vmatmul.mubr.bf16.gmra.mrb[0].mxu0 %v797
      %v833 = vpop.f32.mrb[0].mxu0
      %v834 = vadd.f32 0.0, %v833
      %v835 = vpop.f32.mrb[0].mxu0
      %v836 = vadd.f32 0.0, %v835
      %v837 = vpop.f32.mrb[0].mxu0
      %v838 = vpop.f32.mrb[0].mxu0
      %839 = vdwg.mxu0
      %v840 = vpack.c.bf16 %v834, %v834
      %v841 = vld [vmem:[%s8] sm:$0xf]
      %v842 = vld [vmem:[%s8 + $0x4] sm:$0xf]
      %v843 = vld [vmem:[%s8 + $0x8] sm:$0xf]
      %v844 = vld [vmem:[%s8 + $0xc] sm:$0xf]
      %v845 = vld [vmem:[%s8 + $0x10] sm:$0xf]
      %v846 = vld [vmem:[%s8 + $0x14] sm:$0xf]
      %v847 = vld [vmem:[%s8 + $0x18] sm:$0xf]
      %v848 = vld [vmem:[%s8 + $0x1c] sm:$0xf]
      %v849 = vld [vmem:[%s8 + $0x20] sm:$0xf]
      %v850 = vld [vmem:[%s8 + $0x24] sm:$0xf]
      %v851 = vld [vmem:[%s8 + $0x28] sm:$0xf]
      %v852 = vld [vmem:[%s8 + $0x2c] sm:$0xf]
      %v853 = vld [vmem:[%s8 + $0x30] sm:$0xf]
      %v854 = vld [vmem:[%s8 + $0x34] sm:$0xf]
      %v855 = vld [vmem:[%s8 + $0x38] sm:$0xf]
      %v856 = vld [vmem:[%s8 + $0x3c] sm:$0xf]
      %v857 = vld [vmem:[%s9] sm:$0x1]
      %v859 = vlaneseq
      %v860 = vshrl.u32 %v859, 7
      %v861 = vsub.s32 0, %v860
      %v862 = vrot.slane %v857, %v861
      %v880 = vunpack.c.l.b16 %v841
      %v881 = vunpack.c.l.b16 %v842
      %v882 = vunpack.c.l.b16 %v843
      %v883 = vunpack.c.l.b16 %v844
      %v884 = vunpack.c.l.b16 %v845
      %v885 = vunpack.c.l.b16 %v846
      %v886 = vunpack.c.l.b16 %v847
      %v887 = vunpack.c.l.b16 %v848
      %v888 = vunpack.c.l.b16 %v849
      %v889 = vunpack.c.l.b16 %v850
      %v890 = vunpack.c.l.b16 %v851
      %v891 = vunpack.c.l.b16 %v852
      %v892 = vunpack.c.l.b16 %v853
      %v893 = vunpack.c.l.b16 %v854
      %v894 = vunpack.c.l.b16 %v855
      %v895 = vunpack.c.l.b16 %v856
      %v896 = vpack.c.b16 %v881, %v880
      %v897 = vpack.c.b16 %v883, %v882
      %v898 = vpack.c.b16 %v885, %v884
      %v899 = vpack.c.b16 %v887, %v886
      %v900 = vpack.c.b16 %v889, %v888
      %v901 = vpack.c.b16 %v891, %v890
      %v902 = vpack.c.b16 %v893, %v892
      %v903 = vpack.c.b16 %v895, %v894
      %912 = vmatprep.subr.bf16.mxu0 0
      %913 = vmatpush1.bf16.msra.mxu0 %v896
      %914 = vmatprep.subr.bf16.mxu0 0
      %915 = vmatpush1.bf16.msra.mxu0 %v897
      %916 = vmatprep.subr.bf16.mxu0 0
      %917 = vmatpush1.bf16.msra.mxu0 %v898
      %918 = vmatprep.subr.bf16.mxu0 0
      %919 = vmatpush1.bf16.msra.mxu0 %v899
      %920 = vmatprep.subr.bf16.mxu0 0
      %921 = vmatpush1.bf16.msra.mxu0 %v900
      %922 = vmatprep.subr.bf16.mxu0 0
      %923 = vmatpush1.bf16.msra.mxu0 %v901
      %924 = vmatprep.subr.bf16.mxu0 0
      %925 = vmatpush1.bf16.msra.mxu0 %v902
      %926 = vmatprep.subr.bf16.mxu0 0
      %927 = vmatpush1.bf16.msra.mxu0 %v903
      %928 = vmatprep.subr.bf16.mxu0 0
      %929 = vmatpush1.bf16.msra.mxu0 0
      %930 = vmatprep.subr.bf16.mxu0 0
      %931 = vmatpush1.bf16.msra.mxu0 0
      %932 = vmatprep.subr.bf16.mxu0 0
      %933 = vmatpush1.bf16.msra.mxu0 0
      %934 = vmatprep.subr.bf16.mxu0 0
      %935 = vmatpush1.bf16.msra.mxu0 0
      %936 = vmatprep.subr.bf16.mxu0 0
      %937 = vmatpush1.bf16.msra.mxu0 0
      %938 = vmatprep.subr.bf16.mxu0 0
      %939 = vmatpush1.bf16.msra.mxu0 0
      %940 = vmatprep.subr.bf16.mxu0 0
      %941 = vmatpush1.bf16.msra.mxu0 0
      %942 = vmatprep.subr.bf16.mxu0 0
      %943 = vmatpush1.bf16.msra.mxu0 0
      %944 = vmatprep.mubr.bf16.mxu0 0
      %945 = vmatmul.mubr.bf16.gmra.mrb[0].mxu0 %v840
      %v946 = vpop.f32.mrb[0].mxu0
      %v947 = vadd.f32 %v862, %v946
      %v948 = vpop.f32.mrb[0].mxu0
      %v949 = vpop.f32.mrb[0].mxu0
      %v950 = vpop.f32.mrb[0].mxu0
      %951 = vdwg.mxu0
      %vm952 = vcmp.gt.f32.partialorder %v947, 20.0
      %v953 = vmin.f32 %v947, 20.0
      %v954 = vmul.f32 %v953, 1.442695
      %v955 = vpow.pop %v954
      %v956 = vadd.f32 %v955, 1.0
      %v957 = vlog2.pop %v956
      %v958 = vmul.f32 %v957, 0.6931472
      %v959 = vsel %vm952, %v947, %v958
      %960 = vst.msk [vmem:[#allocation5] sm:$0xff] %vm697, %v959
      %v961 = vmul.f32 %v959, %v746
      %962 = vst.msk [vmem:[#allocation6] sm:$0xff] %vm697, %v961
      %963 = vst [vmem:[#allocation7] sm:$0xff] %v836
      %v964 = vld [vmem:[%s10] sm:$0xff]
      %v965 = vld [vmem:[%s10 + $0x8] sm:$0xff]
      %v966 = vld [vmem:[%s10 + $0x10] sm:$0xff]
      %v967 = vld [vmem:[%s10 + $0x18] sm:$0xff]
      %v968 = vld [vmem:[%s10 + $0x20] sm:$0xff]
      %v969 = vld [vmem:[%s10 + $0x28] sm:$0xff]
      %v970 = vld [vmem:[%s10 + $0x30] sm:$0xff]
      %v971 = vld [vmem:[%s10 + $0x38] sm:$0xff]
      %v972 = vld [vmem:[#allocation4] sm:$0xff]
      %v973 = vld [vmem:[#allocation4 + $0x8] sm:$0xff]
      %v974 = vld [vmem:[#allocation4 + $0x10] sm:$0xff]
      %v975 = vld [vmem:[#allocation4 + $0x18] sm:$0xff]
      %v976 = vld [vmem:[#allocation4 + $0x20] sm:$0xff]
      %v977 = vld [vmem:[#allocation4 + $0x28] sm:$0xff]
      %v978 = vld [vmem:[#allocation4 + $0x30] sm:$0xff]
      %v979 = vld [vmem:[#allocation4 + $0x38] sm:$0xff]
      %v980 = vld [vmem:[#allocation5] sm:$0xff]
      %v981 = vld [vmem:[#allocation6] sm:$0xff]
      %v982 = vld [vmem:[#allocation7] sm:$0xff]
      %983 = vxpose.xlu0.b32.start [1/16] %v982, 128
      %984 = vxpose.xlu0.b32.cont [2/16] 0.0, 128
      %985 = vxpose.xlu0.b32.cont [3/16] 0.0, 128
      %986 = vxpose.xlu0.b32.cont [4/16] 0.0, 128
      %987 = vxpose.xlu0.b32.cont [5/16] 0.0, 128
      %988 = vxpose.xlu0.b32.cont [6/16] 0.0, 128
      %989 = vxpose.xlu0.b32.cont [7/16] 0.0, 128
      %990 = vxpose.xlu0.b32.cont [8/16] 0.0, 128
      %991 = vxpose.xlu0.b32.cont [9/16] 0.0, 128
      %992 = vxpose.xlu0.b32.cont [10/16] 0.0, 128
      %993 = vxpose.xlu0.b32.cont [11/16] 0.0, 128
      %994 = vxpose.xlu0.b32.cont [12/16] 0.0, 128
      %995 = vxpose.xlu0.b32.cont [13/16] 0.0, 128
      %996 = vxpose.xlu0.b32.cont [14/16] 0.0, 128
      %997 = vxpose.xlu0.b32.cont [15/16] 0.0, 128
      %998 = vxpose.xlu0.b32.end [16/16] 0.0, 128
      %v999 = vpop.trf.xlu0
      %v1000 = vpop.trf.xlu0
      %v1001 = vpop.trf.xlu0
      %v1002 = vpop.trf.xlu0
      %v1003 = vpop.trf.xlu0
      %v1004 = vpop.trf.xlu0
      %v1005 = vpop.trf.xlu0
      %v1006 = vpop.trf.xlu0
      %v1007 = vpop.trf.xlu0
      %v1008 = vpop.trf.xlu0
      %v1009 = vpop.trf.xlu0
      %v1010 = vpop.trf.xlu0
      %v1011 = vpop.trf.xlu0
      %v1012 = vpop.trf.xlu0
      %v1013 = vpop.trf.xlu0
      %v1014 = vpop.trf.xlu0
      %v1015 = vlaneseq
      %v1016 = vshrl.u32 %v1015, 7
      %v1017 = vsub.s32 0, %v1016
      %v1018 = vrot.slane %v980, %v1017
      %v1019 = vmul.f32 %v964, %v1018
      %v1020 = vmul.f32 %v965, %v1018
      %v1021 = vmul.f32 %v966, %v1018
      %v1022 = vmul.f32 %v967, %v1018
      %v1023 = vmul.f32 %v968, %v1018
      %v1024 = vmul.f32 %v969, %v1018
      %v1025 = vmul.f32 %v970, %v1018
      %v1026 = vmul.f32 %v971, %v1018
      %v1027 = vmul.f32 %v1019, 1.442695
      %v1028 = vpow.pop %v1027
      %v1029 = vmul.f32 %v1020, 1.442695
      %v1030 = vpow.pop %v1029
      %v1031 = vmul.f32 %v1021, 1.442695
      %v1032 = vpow.pop %v1031
      %v1033 = vmul.f32 %v1022, 1.442695
      %v1034 = vpow.pop %v1033
      %v1035 = vmul.f32 %v1023, 1.442695
      %v1036 = vpow.pop %v1035
      %v1037 = vmul.f32 %v1024, 1.442695
      %v1038 = vpow.pop %v1037
      %v1039 = vmul.f32 %v1025, 1.442695
      %v1040 = vpow.pop %v1039
      %v1041 = vmul.f32 %v1026, 1.442695
      %v1042 = vpow.pop %v1041
      %v1043 = vlaneseq
      %v1044 = vshrl.u32 %v1043, 7
      %v1045 = vsub.s32 1, %v1044
      %v1046 = vrot.slane %v980, %v1045
      %v1047 = vmul.f32 %v964, %v1046
      %v1048 = vmul.f32 %v965, %v1046
      %v1049 = vmul.f32 %v966, %v1046
      %v1050 = vmul.f32 %v967, %v1046
      %v1051 = vmul.f32 %v968, %v1046
      %v1052 = vmul.f32 %v969, %v1046
      %v1053 = vmul.f32 %v970, %v1046
      %v1054 = vmul.f32 %v971, %v1046
      %v1055 = vmul.f32 %v1047, 1.442695
      %v1056 = vpow.pop %v1055
      %v1057 = vmul.f32 %v1048, 1.442695
      %v1058 = vpow.pop %v1057
      %v1059 = vmul.f32 %v1049, 1.442695
      %v1060 = vpow.pop %v1059
      %v1061 = vmul.f32 %v1050, 1.442695
      %v1062 = vpow.pop %v1061
      %v1063 = vmul.f32 %v1051, 1.442695
      %v1064 = vpow.pop %v1063
      %v1065 = vmul.f32 %v1052, 1.442695
      %v1066 = vpow.pop %v1065
      %v1067 = vmul.f32 %v1053, 1.442695
      %v1068 = vpow.pop %v1067
      %v1069 = vmul.f32 %v1054, 1.442695
      %v1070 = vpow.pop %v1069
      %v1071 = vlaneseq
      %v1072 = vshrl.u32 %v1071, 7
      %v1073 = vsub.s32 2, %v1072
      %v1074 = vrot.slane %v980, %v1073
      %v1075 = vmul.f32 %v964, %v1074
      %v1076 = vmul.f32 %v965, %v1074
      %v1077 = vmul.f32 %v966, %v1074
      %v1078 = vmul.f32 %v967, %v1074
      %v1079 = vmul.f32 %v968, %v1074
      %v1080 = vmul.f32 %v969, %v1074
      %v1081 = vmul.f32 %v970, %v1074
      %v1082 = vmul.f32 %v971, %v1074
      %v1083 = vmul.f32 %v1075, 1.442695
      %v1084 = vpow.pop %v1083
      %v1085 = vmul.f32 %v1076, 1.442695
      %v1086 = vpow.pop %v1085
      %v1087 = vmul.f32 %v1077, 1.442695
      %v1088 = vpow.pop %v1087
      %v1089 = vmul.f32 %v1078, 1.442695
      %v1090 = vpow.pop %v1089
      %v1091 = vmul.f32 %v1079, 1.442695
      %v1092 = vpow.pop %v1091
      %v1093 = vmul.f32 %v1080, 1.442695
      %v1094 = vpow.pop %v1093
      %v1095 = vmul.f32 %v1081, 1.442695
      %v1096 = vpow.pop %v1095
      %v1097 = vmul.f32 %v1082, 1.442695
      %v1098 = vpow.pop %v1097
      %v1099 = vlaneseq
      %v1100 = vshrl.u32 %v1099, 7
      %v1101 = vsub.s32 3, %v1100
      %v1102 = vrot.slane %v980, %v1101
      %v1103 = vmul.f32 %v964, %v1102
      %v1104 = vmul.f32 %v965, %v1102
      %v1105 = vmul.f32 %v966, %v1102
      %v1106 = vmul.f32 %v967, %v1102
      %v1107 = vmul.f32 %v968, %v1102
      %v1108 = vmul.f32 %v969, %v1102
      %v1109 = vmul.f32 %v970, %v1102
      %v1110 = vmul.f32 %v971, %v1102
      %v1111 = vmul.f32 %v1103, 1.442695
      %v1112 = vpow.pop %v1111
      %v1113 = vmul.f32 %v1104, 1.442695
      %v1114 = vpow.pop %v1113
      %v1115 = vmul.f32 %v1105, 1.442695
      %v1116 = vpow.pop %v1115
      %v1117 = vmul.f32 %v1106, 1.442695
      %v1118 = vpow.pop %v1117
      %v1119 = vmul.f32 %v1107, 1.442695
      %v1120 = vpow.pop %v1119
      %v1121 = vmul.f32 %v1108, 1.442695
      %v1122 = vpow.pop %v1121
      %v1123 = vmul.f32 %v1109, 1.442695
      %v1124 = vpow.pop %v1123
      %v1125 = vmul.f32 %v1110, 1.442695
      %v1126 = vpow.pop %v1125
      %v1127 = vlaneseq
      %v1128 = vshrl.u32 %v1127, 7
      %v1129 = vsub.s32 4, %v1128
      %v1130 = vrot.slane %v980, %v1129
      %v1131 = vmul.f32 %v964, %v1130
      %v1132 = vmul.f32 %v965, %v1130
      %v1133 = vmul.f32 %v966, %v1130
      %v1134 = vmul.f32 %v967, %v1130
      %v1135 = vmul.f32 %v968, %v1130
      %v1136 = vmul.f32 %v969, %v1130
      %v1137 = vmul.f32 %v970, %v1130
      %v1138 = vmul.f32 %v971, %v1130
      %v1139 = vmul.f32 %v1131, 1.442695
      %v1140 = vpow.pop %v1139
      %v1141 = vmul.f32 %v1132, 1.442695
      %v1142 = vpow.pop %v1141
      %v1143 = vmul.f32 %v1133, 1.442695
      %v1144 = vpow.pop %v1143
      %v1145 = vmul.f32 %v1134, 1.442695
      %v1146 = vpow.pop %v1145
      %v1147 = vmul.f32 %v1135, 1.442695
      %v1148 = vpow.pop %v1147
      %v1149 = vmul.f32 %v1136, 1.442695
      %v1150 = vpow.pop %v1149
      %v1151 = vmul.f32 %v1137, 1.442695
      %v1152 = vpow.pop %v1151
      %v1153 = vmul.f32 %v1138, 1.442695
      %v1154 = vpow.pop %v1153
      %v1155 = vlaneseq
      %v1156 = vshrl.u32 %v1155, 7
      %v1157 = vsub.s32 5, %v1156
      %v1158 = vrot.slane %v980, %v1157
      %v1159 = vmul.f32 %v964, %v1158
      %v1160 = vmul.f32 %v965, %v1158
      %v1161 = vmul.f32 %v966, %v1158
      %v1162 = vmul.f32 %v967, %v1158
      %v1163 = vmul.f32 %v968, %v1158
      %v1164 = vmul.f32 %v969, %v1158
      %v1165 = vmul.f32 %v970, %v1158
      %v1166 = vmul.f32 %v971, %v1158
      %v1167 = vmul.f32 %v1159, 1.442695
      %v1168 = vpow.pop %v1167
      %v1169 = vmul.f32 %v1160, 1.442695
      %v1170 = vpow.pop %v1169
      %v1171 = vmul.f32 %v1161, 1.442695
      %v1172 = vpow.pop %v1171
      %v1173 = vmul.f32 %v1162, 1.442695
      %v1174 = vpow.pop %v1173
      %v1175 = vmul.f32 %v1163, 1.442695
      %v1176 = vpow.pop %v1175
      %v1177 = vmul.f32 %v1164, 1.442695
      %v1178 = vpow.pop %v1177
      %v1179 = vmul.f32 %v1165, 1.442695
      %v1180 = vpow.pop %v1179
      %v1181 = vmul.f32 %v1166, 1.442695
      %v1182 = vpow.pop %v1181
      %v1183 = vlaneseq
      %v1184 = vshrl.u32 %v1183, 7
      %v1185 = vsub.s32 6, %v1184
      %v1186 = vrot.slane %v980, %v1185
      %v1187 = vmul.f32 %v964, %v1186
      %v1188 = vmul.f32 %v965, %v1186
      %v1189 = vmul.f32 %v966, %v1186
      %v1190 = vmul.f32 %v967, %v1186
      %v1191 = vmul.f32 %v968, %v1186
      %v1192 = vmul.f32 %v969, %v1186
      %v1193 = vmul.f32 %v970, %v1186
      %v1194 = vmul.f32 %v971, %v1186
      %v1195 = vmul.f32 %v1187, 1.442695
      %v1196 = vpow.pop %v1195
      %v1197 = vmul.f32 %v1188, 1.442695
      %v1198 = vpow.pop %v1197
      %v1199 = vmul.f32 %v1189, 1.442695
      %v1200 = vpow.pop %v1199
      %v1201 = vmul.f32 %v1190, 1.442695
      %v1202 = vpow.pop %v1201
      %v1203 = vmul.f32 %v1191, 1.442695
      %v1204 = vpow.pop %v1203
      %v1205 = vmul.f32 %v1192, 1.442695
      %v1206 = vpow.pop %v1205
      %v1207 = vmul.f32 %v1193, 1.442695
      %v1208 = vpow.pop %v1207
      %v1209 = vmul.f32 %v1194, 1.442695
      %v1210 = vpow.pop %v1209
      %v1211 = vlaneseq
      %v1212 = vshrl.u32 %v1211, 7
      %v1213 = vsub.s32 7, %v1212
      %v1214 = vrot.slane %v980, %v1213
      %v1215 = vmul.f32 %v964, %v1214
      %v1216 = vmul.f32 %v965, %v1214
      %v1217 = vmul.f32 %v966, %v1214
      %v1218 = vmul.f32 %v967, %v1214
      %v1219 = vmul.f32 %v968, %v1214
      %v1220 = vmul.f32 %v969, %v1214
      %v1221 = vmul.f32 %v970, %v1214
      %v1222 = vmul.f32 %v971, %v1214
      %v1223 = vmul.f32 %v1215, 1.442695
      %v1224 = vpow.pop %v1223
      %v1225 = vmul.f32 %v1216, 1.442695
      %v1226 = vpow.pop %v1225
      %v1227 = vmul.f32 %v1217, 1.442695
      %v1228 = vpow.pop %v1227
      %v1229 = vmul.f32 %v1218, 1.442695
      %v1230 = vpow.pop %v1229
      %v1231 = vmul.f32 %v1219, 1.442695
      %v1232 = vpow.pop %v1231
      %v1233 = vmul.f32 %v1220, 1.442695
      %v1234 = vpow.pop %v1233
      %v1235 = vmul.f32 %v1221, 1.442695
      %v1236 = vpow.pop %v1235
      %v1237 = vmul.f32 %v1222, 1.442695
      %v1238 = vpow.pop %v1237
      %1240 = vset.pattern.permute.xlu0 0
      %1241 = vperm.xlu0 %1240, %v999
      %v1242 = vpop.permute.xlu0 %1241
      %1245 = vset.pattern.permute.xlu0 0
      %1246 = vperm.xlu0 %1245, %v1000
      %v1247 = vpop.permute.xlu0 %1246
      %1250 = vset.pattern.permute.xlu0 0
      %1251 = vperm.xlu0 %1250, %v1001
      %v1252 = vpop.permute.xlu0 %1251
      %1255 = vset.pattern.permute.xlu0 0
      %1256 = vperm.xlu0 %1255, %v1002
      %v1257 = vpop.permute.xlu0 %1256
      %1260 = vset.pattern.permute.xlu0 0
      %1261 = vperm.xlu0 %1260, %v1003
      %v1262 = vpop.permute.xlu0 %1261
      %1265 = vset.pattern.permute.xlu0 0
      %1266 = vperm.xlu0 %1265, %v1004
      %v1267 = vpop.permute.xlu0 %1266
      %1270 = vset.pattern.permute.xlu0 0
      %1271 = vperm.xlu0 %1270, %v1005
      %v1272 = vpop.permute.xlu0 %1271
      %1275 = vset.pattern.permute.xlu0 0
      %1276 = vperm.xlu0 %1275, %v1006
      %v1277 = vpop.permute.xlu0 %1276
      %v1279 = vlaneseq
      %v1280 = vshrl.u32 %v1279, 7
      %v1281 = vsub.s32 0, %v1280
      %v1282 = vrot.slane %v981, %v1281
      %v1283 = vmul.f32 %v1242, %v1282
      %v1284 = vmul.f32 %v1247, %v1282
      %v1285 = vmul.f32 %v1252, %v1282
      %v1286 = vmul.f32 %v1257, %v1282
      %v1287 = vmul.f32 %v1262, %v1282
      %v1288 = vmul.f32 %v1267, %v1282
      %v1289 = vmul.f32 %v1272, %v1282
      %v1290 = vmul.f32 %v1277, %v1282
      %1291 = vset.pattern.permute.xlu0 1
      %1292 = vperm.xlu0 %1291, %v999
      %v1293 = vpop.permute.xlu0 %1292
      %1295 = vset.pattern.permute.xlu0 1
      %1296 = vperm.xlu0 %1295, %v1000
      %v1297 = vpop.permute.xlu0 %1296
      %1299 = vset.pattern.permute.xlu0 1
      %1300 = vperm.xlu0 %1299, %v1001
      %v1301 = vpop.permute.xlu0 %1300
      %1303 = vset.pattern.permute.xlu0 1
      %1304 = vperm.xlu0 %1303, %v1002
      %v1305 = vpop.permute.xlu0 %1304
      %1307 = vset.pattern.permute.xlu0 1
      %1308 = vperm.xlu0 %1307, %v1003
      %v1309 = vpop.permute.xlu0 %1308
      %1311 = vset.pattern.permute.xlu0 1
      %1312 = vperm.xlu0 %1311, %v1004
      %v1313 = vpop.permute.xlu0 %1312
      %1315 = vset.pattern.permute.xlu0 1
      %1316 = vperm.xlu0 %1315, %v1005
      %v1317 = vpop.permute.xlu0 %1316
      %1319 = vset.pattern.permute.xlu0 1
      %1320 = vperm.xlu0 %1319, %v1006
      %v1321 = vpop.permute.xlu0 %1320
      %v1323 = vlaneseq
      %v1324 = vshrl.u32 %v1323, 7
      %v1325 = vsub.s32 1, %v1324
      %v1326 = vrot.slane %v981, %v1325
      %v1327 = vmul.f32 %v1293, %v1326
      %v1328 = vmul.f32 %v1297, %v1326
      %v1329 = vmul.f32 %v1301, %v1326
      %v1330 = vmul.f32 %v1305, %v1326
      %v1331 = vmul.f32 %v1309, %v1326
      %v1332 = vmul.f32 %v1313, %v1326
      %v1333 = vmul.f32 %v1317, %v1326
      %v1334 = vmul.f32 %v1321, %v1326
      %1335 = vset.pattern.permute.xlu0 2
      %1336 = vperm.xlu0 %1335, %v999
      %v1337 = vpop.permute.xlu0 %1336
      %1339 = vset.pattern.permute.xlu0 2
      %1340 = vperm.xlu0 %1339, %v1000
      %v1341 = vpop.permute.xlu0 %1340
      %1343 = vset.pattern.permute.xlu0 2
      %1344 = vperm.xlu0 %1343, %v1001
      %v1345 = vpop.permute.xlu0 %1344
      %1347 = vset.pattern.permute.xlu0 2
      %1348 = vperm.xlu0 %1347, %v1002
      %v1349 = vpop.permute.xlu0 %1348
      %1351 = vset.pattern.permute.xlu0 2
      %1352 = vperm.xlu0 %1351, %v1003
      %v1353 = vpop.permute.xlu0 %1352
      %1355 = vset.pattern.permute.xlu0 2
      %1356 = vperm.xlu0 %1355, %v1004
      %v1357 = vpop.permute.xlu0 %1356
      %1359 = vset.pattern.permute.xlu0 2
      %1360 = vperm.xlu0 %1359, %v1005
      %v1361 = vpop.permute.xlu0 %1360
      %1363 = vset.pattern.permute.xlu0 2
      %1364 = vperm.xlu0 %1363, %v1006
      %v1365 = vpop.permute.xlu0 %1364
      %v1367 = vlaneseq
      %v1368 = vshrl.u32 %v1367, 7
      %v1369 = vsub.s32 2, %v1368
      %v1370 = vrot.slane %v981, %v1369
      %v1371 = vmul.f32 %v1337, %v1370
      %v1372 = vmul.f32 %v1341, %v1370
      %v1373 = vmul.f32 %v1345, %v1370
      %v1374 = vmul.f32 %v1349, %v1370
      %v1375 = vmul.f32 %v1353, %v1370
      %v1376 = vmul.f32 %v1357, %v1370
      %v1377 = vmul.f32 %v1361, %v1370
      %v1378 = vmul.f32 %v1365, %v1370
      %1379 = vset.pattern.permute.xlu0 3
      %1380 = vperm.xlu0 %1379, %v999
      %v1381 = vpop.permute.xlu0 %1380
      %1383 = vset.pattern.permute.xlu0 3
      %1384 = vperm.xlu0 %1383, %v1000
      %v1385 = vpop.permute.xlu0 %1384
      %1387 = vset.pattern.permute.xlu0 3
      %1388 = vperm.xlu0 %1387, %v1001
      %v1389 = vpop.permute.xlu0 %1388
      %1391 = vset.pattern.permute.xlu0 3
      %1392 = vperm.xlu0 %1391, %v1002
      %v1393 = vpop.permute.xlu0 %1392
      %1395 = vset.pattern.permute.xlu0 3
      %1396 = vperm.xlu0 %1395, %v1003
      %v1397 = vpop.permute.xlu0 %1396
      %1399 = vset.pattern.permute.xlu0 3
      %1400 = vperm.xlu0 %1399, %v1004
      %v1401 = vpop.permute.xlu0 %1400
      %1403 = vset.pattern.permute.xlu0 3
      %1404 = vperm.xlu0 %1403, %v1005
      %v1405 = vpop.permute.xlu0 %1404
      %1407 = vset.pattern.permute.xlu0 3
      %1408 = vperm.xlu0 %1407, %v1006
      %v1409 = vpop.permute.xlu0 %1408
      %v1411 = vlaneseq
      %v1412 = vshrl.u32 %v1411, 7
      %v1413 = vsub.s32 3, %v1412
      %v1414 = vrot.slane %v981, %v1413
      %v1415 = vmul.f32 %v1381, %v1414
      %v1416 = vmul.f32 %v1385, %v1414
      %v1417 = vmul.f32 %v1389, %v1414
      %v1418 = vmul.f32 %v1393, %v1414
      %v1419 = vmul.f32 %v1397, %v1414
      %v1420 = vmul.f32 %v1401, %v1414
      %v1421 = vmul.f32 %v1405, %v1414
      %v1422 = vmul.f32 %v1409, %v1414
      %1423 = vset.pattern.permute.xlu0 4
      %1424 = vperm.xlu0 %1423, %v999
      %v1425 = vpop.permute.xlu0 %1424
      %1427 = vset.pattern.permute.xlu0 4
      %1428 = vperm.xlu0 %1427, %v1000
      %v1429 = vpop.permute.xlu0 %1428
      %1431 = vset.pattern.permute.xlu0 4
      %1432 = vperm.xlu0 %1431, %v1001
      %v1433 = vpop.permute.xlu0 %1432
      %1435 = vset.pattern.permute.xlu0 4
      %1436 = vperm.xlu0 %1435, %v1002
      %v1437 = vpop.permute.xlu0 %1436
      %1439 = vset.pattern.permute.xlu0 4
      %1440 = vperm.xlu0 %1439, %v1003
      %v1441 = vpop.permute.xlu0 %1440
      %1443 = vset.pattern.permute.xlu0 4
      %1444 = vperm.xlu0 %1443, %v1004
      %v1445 = vpop.permute.xlu0 %1444
      %1447 = vset.pattern.permute.xlu0 4
      %1448 = vperm.xlu0 %1447, %v1005
      %v1449 = vpop.permute.xlu0 %1448
      %1451 = vset.pattern.permute.xlu0 4
      %1452 = vperm.xlu0 %1451, %v1006
      %v1453 = vpop.permute.xlu0 %1452
      %v1455 = vlaneseq
      %v1456 = vshrl.u32 %v1455, 7
      %v1457 = vsub.s32 4, %v1456
      %v1458 = vrot.slane %v981, %v1457
      %v1459 = vmul.f32 %v1425, %v1458
      %v1460 = vmul.f32 %v1429, %v1458
      %v1461 = vmul.f32 %v1433, %v1458
      %v1462 = vmul.f32 %v1437, %v1458
      %v1463 = vmul.f32 %v1441, %v1458
      %v1464 = vmul.f32 %v1445, %v1458
      %v1465 = vmul.f32 %v1449, %v1458
      %v1466 = vmul.f32 %v1453, %v1458
      %1467 = vset.pattern.permute.xlu0 5
      %1468 = vperm.xlu0 %1467, %v999
      %v1469 = vpop.permute.xlu0 %1468
      %1471 = vset.pattern.permute.xlu0 5
      %1472 = vperm.xlu0 %1471, %v1000
      %v1473 = vpop.permute.xlu0 %1472
      %1475 = vset.pattern.permute.xlu0 5
      %1476 = vperm.xlu0 %1475, %v1001
      %v1477 = vpop.permute.xlu0 %1476
      %1479 = vset.pattern.permute.xlu0 5
      %1480 = vperm.xlu0 %1479, %v1002
      %v1481 = vpop.permute.xlu0 %1480
      %1483 = vset.pattern.permute.xlu0 5
      %1484 = vperm.xlu0 %1483, %v1003
      %v1485 = vpop.permute.xlu0 %1484
      %1487 = vset.pattern.permute.xlu0 5
      %1488 = vperm.xlu0 %1487, %v1004
      %v1489 = vpop.permute.xlu0 %1488
      %1491 = vset.pattern.permute.xlu0 5
      %1492 = vperm.xlu0 %1491, %v1005
      %v1493 = vpop.permute.xlu0 %1492
      %1495 = vset.pattern.permute.xlu0 5
      %1496 = vperm.xlu0 %1495, %v1006
      %v1497 = vpop.permute.xlu0 %1496
      %v1499 = vlaneseq
      %v1500 = vshrl.u32 %v1499, 7
      %v1501 = vsub.s32 5, %v1500
      %v1502 = vrot.slane %v981, %v1501
      %v1503 = vmul.f32 %v1469, %v1502
      %v1504 = vmul.f32 %v1473, %v1502
      %v1505 = vmul.f32 %v1477, %v1502
      %v1506 = vmul.f32 %v1481, %v1502
      %v1507 = vmul.f32 %v1485, %v1502
      %v1508 = vmul.f32 %v1489, %v1502
      %v1509 = vmul.f32 %v1493, %v1502
      %v1510 = vmul.f32 %v1497, %v1502
      %1511 = vset.pattern.permute.xlu0 6
      %1512 = vperm.xlu0 %1511, %v999
      %v1513 = vpop.permute.xlu0 %1512
      %1515 = vset.pattern.permute.xlu0 6
      %1516 = vperm.xlu0 %1515, %v1000
      %v1517 = vpop.permute.xlu0 %1516
      %1519 = vset.pattern.permute.xlu0 6
      %1520 = vperm.xlu0 %1519, %v1001
      %v1521 = vpop.permute.xlu0 %1520
      %1523 = vset.pattern.permute.xlu0 6
      %1524 = vperm.xlu0 %1523, %v1002
      %v1525 = vpop.permute.xlu0 %1524
      %1527 = vset.pattern.permute.xlu0 6
      %1528 = vperm.xlu0 %1527, %v1003
      %v1529 = vpop.permute.xlu0 %1528
      %1531 = vset.pattern.permute.xlu0 6
      %1532 = vperm.xlu0 %1531, %v1004
      %v1533 = vpop.permute.xlu0 %1532
      %1535 = vset.pattern.permute.xlu0 6
      %1536 = vperm.xlu0 %1535, %v1005
      %v1537 = vpop.permute.xlu0 %1536
      %1539 = vset.pattern.permute.xlu0 6
      %1540 = vperm.xlu0 %1539, %v1006
      %v1541 = vpop.permute.xlu0 %1540
      %v1543 = vlaneseq
      %v1544 = vshrl.u32 %v1543, 7
      %v1545 = vsub.s32 6, %v1544
      %v1546 = vrot.slane %v981, %v1545
      %v1547 = vmul.f32 %v1513, %v1546
      %v1548 = vmul.f32 %v1517, %v1546
      %v1549 = vmul.f32 %v1521, %v1546
      %v1550 = vmul.f32 %v1525, %v1546
      %v1551 = vmul.f32 %v1529, %v1546
      %v1552 = vmul.f32 %v1533, %v1546
      %v1553 = vmul.f32 %v1537, %v1546
      %v1554 = vmul.f32 %v1541, %v1546
      %1555 = vset.pattern.permute.xlu0 7
      %1556 = vperm.xlu0 %1555, %v999
      %v1557 = vpop.permute.xlu0 %1556
      %1559 = vset.pattern.permute.xlu0 7
      %1560 = vperm.xlu0 %1559, %v1000
      %v1561 = vpop.permute.xlu0 %1560
      %1563 = vset.pattern.permute.xlu0 7
      %1564 = vperm.xlu0 %1563, %v1001
      %v1565 = vpop.permute.xlu0 %1564
      %1567 = vset.pattern.permute.xlu0 7
      %1568 = vperm.xlu0 %1567, %v1002
      %v1569 = vpop.permute.xlu0 %1568
      %1571 = vset.pattern.permute.xlu0 7
      %1572 = vperm.xlu0 %1571, %v1003
      %v1573 = vpop.permute.xlu0 %1572
      %1575 = vset.pattern.permute.xlu0 7
      %1576 = vperm.xlu0 %1575, %v1004
      %v1577 = vpop.permute.xlu0 %1576
      %1579 = vset.pattern.permute.xlu0 7
      %1580 = vperm.xlu0 %1579, %v1005
      %v1581 = vpop.permute.xlu0 %1580
      %1583 = vset.pattern.permute.xlu0 7
      %1584 = vperm.xlu0 %1583, %v1006
      %v1585 = vpop.permute.xlu0 %1584
      %v1587 = vlaneseq
      %v1588 = vshrl.u32 %v1587, 7
      %v1589 = vsub.s32 7, %v1588
      %v1590 = vrot.slane %v981, %v1589
      %v1591 = vmul.f32 %v1557, %v1590
      %v1592 = vmul.f32 %v1561, %v1590
      %v1593 = vmul.f32 %v1565, %v1590
      %v1594 = vmul.f32 %v1569, %v1590
      %v1595 = vmul.f32 %v1573, %v1590
      %v1596 = vmul.f32 %v1577, %v1590
      %v1597 = vmul.f32 %v1581, %v1590
      %v1598 = vmul.f32 %v1585, %v1590
      %v1599 = vmul.f32 %v1028, %v972
      %v1600 = vmul.f32 %v1030, %v973
      %v1601 = vmul.f32 %v1032, %v974
      %v1602 = vmul.f32 %v1034, %v975
      %v1603 = vmul.f32 %v1036, %v976
      %v1604 = vmul.f32 %v1038, %v977
      %v1605 = vmul.f32 %v1040, %v978
      %v1606 = vmul.f32 %v1042, %v979
      %v1607 = vadd.f32 %v1599, %v1283
      %v1608 = vadd.f32 %v1600, %v1284
      %v1609 = vadd.f32 %v1601, %v1285
      %v1610 = vadd.f32 %v1602, %v1286
      %v1611 = vadd.f32 %v1603, %v1287
      %v1612 = vadd.f32 %v1604, %v1288
      %v1613 = vadd.f32 %v1605, %v1289
      %v1614 = vadd.f32 %v1606, %v1290
      %1616 = vset.pattern.permute.xlu0 0
      %1617 = vperm.xlu0 %1616, %v1007
      %v1618 = vpop.permute.xlu0 %1617
      %1621 = vset.pattern.permute.xlu0 0
      %1622 = vperm.xlu0 %1621, %v1008
      %v1623 = vpop.permute.xlu0 %1622
      %1626 = vset.pattern.permute.xlu0 0
      %1627 = vperm.xlu0 %1626, %v1009
      %v1628 = vpop.permute.xlu0 %1627
      %1631 = vset.pattern.permute.xlu0 0
      %1632 = vperm.xlu0 %1631, %v1010
      %v1633 = vpop.permute.xlu0 %1632
      %1636 = vset.pattern.permute.xlu0 0
      %1637 = vperm.xlu0 %1636, %v1011
      %v1638 = vpop.permute.xlu0 %1637
      %1641 = vset.pattern.permute.xlu0 0
      %1642 = vperm.xlu0 %1641, %v1012
      %v1643 = vpop.permute.xlu0 %1642
      %1646 = vset.pattern.permute.xlu0 0
      %1647 = vperm.xlu0 %1646, %v1013
      %v1648 = vpop.permute.xlu0 %1647
      %1651 = vset.pattern.permute.xlu0 0
      %1652 = vperm.xlu0 %1651, %v1014
      %v1653 = vpop.permute.xlu0 %1652
      %v1655 = vmul.f32 %v1618, %v1607
      %v1656 = vmul.f32 %v1623, %v1608
      %v1657 = vmul.f32 %v1628, %v1609
      %v1658 = vmul.f32 %v1633, %v1610
      %v1659 = vmul.f32 %v1638, %v1611
      %v1660 = vmul.f32 %v1643, %v1612
      %v1661 = vmul.f32 %v1648, %v1613
      %v1662 = vmul.f32 %v1653, %v1614
      %v1663 = vsel %vm697, %v1655, 0.0
      %v1664 = vsel %vm697, %v1656, 0.0
      %v1665 = vadd.f32 %v1663, %v1664
      %v1666 = vsel %vm697, %v1657, 0.0
      %v1667 = vadd.f32 %v1665, %v1666
      %v1668 = vsel %vm697, %v1658, 0.0
      %v1669 = vadd.f32 %v1667, %v1668
      %v1670 = vsel %vm697, %v1659, 0.0
      %v1671 = vadd.f32 %v1669, %v1670
      %v1672 = vsel %vm697, %v1660, 0.0
      %v1673 = vadd.f32 %v1671, %v1672
      %v1674 = vsel %vm697, %v1661, 0.0
      %v1675 = vadd.f32 %v1673, %v1674
      %v1676 = vsel %vm697, %v1662, 0.0
      %v1677 = vadd.f32 %v1675, %v1676
      %v1678 = vrot.slane %v1677, 4
      %v1679 = vadd.f32 %v1677, %v1678
      %v1680 = vrot.slane %v1679, 2
      %v1681 = vadd.f32 %v1679, %v1680
      %v1682 = vrot.slane %v1681, 1
      %v1683 = vadd.f32 %v1681, %v1682
      %v1684 = vmul.f32 %v1056, %v1607
      %v1685 = vmul.f32 %v1058, %v1608
      %v1686 = vmul.f32 %v1060, %v1609
      %v1687 = vmul.f32 %v1062, %v1610
      %v1688 = vmul.f32 %v1064, %v1611
      %v1689 = vmul.f32 %v1066, %v1612
      %v1690 = vmul.f32 %v1068, %v1613
      %v1691 = vmul.f32 %v1070, %v1614
      %v1692 = vadd.f32 %v1684, %v1327
      %v1693 = vadd.f32 %v1685, %v1328
      %v1694 = vadd.f32 %v1686, %v1329
      %v1695 = vadd.f32 %v1687, %v1330
      %v1696 = vadd.f32 %v1688, %v1331
      %v1697 = vadd.f32 %v1689, %v1332
      %v1698 = vadd.f32 %v1690, %v1333
      %v1699 = vadd.f32 %v1691, %v1334
      %1700 = vset.pattern.permute.xlu0 1
      %1701 = vperm.xlu0 %1700, %v1007
      %v1702 = vpop.permute.xlu0 %1701
      %1704 = vset.pattern.permute.xlu0 1
      %1705 = vperm.xlu0 %1704, %v1008
      %v1706 = vpop.permute.xlu0 %1705
      %1708 = vset.pattern.permute.xlu0 1
      %1709 = vperm.xlu0 %1708, %v1009
      %v1710 = vpop.permute.xlu0 %1709
      %1712 = vset.pattern.permute.xlu0 1
      %1713 = vperm.xlu0 %1712, %v1010
      %v1714 = vpop.permute.xlu0 %1713
      %1716 = vset.pattern.permute.xlu0 1
      %1717 = vperm.xlu0 %1716, %v1011
      %v1718 = vpop.permute.xlu0 %1717
      %1720 = vset.pattern.permute.xlu0 1
      %1721 = vperm.xlu0 %1720, %v1012
      %v1722 = vpop.permute.xlu0 %1721
      %1724 = vset.pattern.permute.xlu0 1
      %1725 = vperm.xlu0 %1724, %v1013
      %v1726 = vpop.permute.xlu0 %1725
      %1728 = vset.pattern.permute.xlu0 1
      %1729 = vperm.xlu0 %1728, %v1014
      %v1730 = vpop.permute.xlu0 %1729
      %v1732 = vmul.f32 %v1702, %v1692
      %v1733 = vmul.f32 %v1706, %v1693
      %v1734 = vmul.f32 %v1710, %v1694
      %v1735 = vmul.f32 %v1714, %v1695
      %v1736 = vmul.f32 %v1718, %v1696
      %v1737 = vmul.f32 %v1722, %v1697
      %v1738 = vmul.f32 %v1726, %v1698
      %v1739 = vmul.f32 %v1730, %v1699
      %v1740 = vsel %vm697, %v1732, 0.0
      %v1741 = vsel %vm697, %v1733, 0.0
      %v1742 = vadd.f32 %v1740, %v1741
      %v1743 = vsel %vm697, %v1734, 0.0
      %v1744 = vadd.f32 %v1742, %v1743
      %v1745 = vsel %vm697, %v1735, 0.0
      %v1746 = vadd.f32 %v1744, %v1745
      %v1747 = vsel %vm697, %v1736, 0.0
      %v1748 = vadd.f32 %v1746, %v1747
      %v1749 = vsel %vm697, %v1737, 0.0
      %v1750 = vadd.f32 %v1748, %v1749
      %v1751 = vsel %vm697, %v1738, 0.0
      %v1752 = vadd.f32 %v1750, %v1751
      %v1753 = vsel %vm697, %v1739, 0.0
      %v1754 = vadd.f32 %v1752, %v1753
      %v1755 = vrot.slane %v1754, 4
      %v1756 = vadd.f32 %v1754, %v1755
      %v1757 = vrot.slane %v1756, 2
      %v1758 = vadd.f32 %v1756, %v1757
      %v1759 = vrot.slane %v1758, 1
      %v1760 = vadd.f32 %v1758, %v1759
      %v1761 = vmul.f32 %v1084, %v1692
      %v1762 = vmul.f32 %v1086, %v1693
      %v1763 = vmul.f32 %v1088, %v1694
      %v1764 = vmul.f32 %v1090, %v1695
      %v1765 = vmul.f32 %v1092, %v1696
      %v1766 = vmul.f32 %v1094, %v1697
      %v1767 = vmul.f32 %v1096, %v1698
      %v1768 = vmul.f32 %v1098, %v1699
      %v1769 = vadd.f32 %v1761, %v1371
      %v1770 = vadd.f32 %v1762, %v1372
      %v1771 = vadd.f32 %v1763, %v1373
      %v1772 = vadd.f32 %v1764, %v1374
      %v1773 = vadd.f32 %v1765, %v1375
      %v1774 = vadd.f32 %v1766, %v1376
      %v1775 = vadd.f32 %v1767, %v1377
      %v1776 = vadd.f32 %v1768, %v1378
      %1777 = vset.pattern.permute.xlu0 2
      %1778 = vperm.xlu0 %1777, %v1007
      %v1779 = vpop.permute.xlu0 %1778
      %1781 = vset.pattern.permute.xlu0 2
      %1782 = vperm.xlu0 %1781, %v1008
      %v1783 = vpop.permute.xlu0 %1782
      %1785 = vset.pattern.permute.xlu0 2
      %1786 = vperm.xlu0 %1785, %v1009
      %v1787 = vpop.permute.xlu0 %1786
      %1789 = vset.pattern.permute.xlu0 2
      %1790 = vperm.xlu0 %1789, %v1010
      %v1791 = vpop.permute.xlu0 %1790
      %1793 = vset.pattern.permute.xlu0 2
      %1794 = vperm.xlu0 %1793, %v1011
      %v1795 = vpop.permute.xlu0 %1794
      %1797 = vset.pattern.permute.xlu0 2
      %1798 = vperm.xlu0 %1797, %v1012
      %v1799 = vpop.permute.xlu0 %1798
      %1801 = vset.pattern.permute.xlu0 2
      %1802 = vperm.xlu0 %1801, %v1013
      %v1803 = vpop.permute.xlu0 %1802
      %1805 = vset.pattern.permute.xlu0 2
      %1806 = vperm.xlu0 %1805, %v1014
      %v1807 = vpop.permute.xlu0 %1806
      %v1809 = vmul.f32 %v1779, %v1769
      %v1810 = vmul.f32 %v1783, %v1770
      %v1811 = vmul.f32 %v1787, %v1771
      %v1812 = vmul.f32 %v1791, %v1772
      %v1813 = vmul.f32 %v1795, %v1773
      %v1814 = vmul.f32 %v1799, %v1774
      %v1815 = vmul.f32 %v1803, %v1775
      %v1816 = vmul.f32 %v1807, %v1776
      %v1817 = vsel %vm697, %v1809, 0.0
      %v1818 = vsel %vm697, %v1810, 0.0
      %v1819 = vadd.f32 %v1817, %v1818
      %v1820 = vsel %vm697, %v1811, 0.0
      %v1821 = vadd.f32 %v1819, %v1820
      %v1822 = vsel %vm697, %v1812, 0.0
      %v1823 = vadd.f32 %v1821, %v1822
      %v1824 = vsel %vm697, %v1813, 0.0
      %v1825 = vadd.f32 %v1823, %v1824
      %v1826 = vsel %vm697, %v1814, 0.0
      %v1827 = vadd.f32 %v1825, %v1826
      %v1828 = vsel %vm697, %v1815, 0.0
      %v1829 = vadd.f32 %v1827, %v1828
      %v1830 = vsel %vm697, %v1816, 0.0
      %v1831 = vadd.f32 %v1829, %v1830
      %v1832 = vrot.slane %v1831, 4
      %v1833 = vadd.f32 %v1831, %v1832
      %v1834 = vrot.slane %v1833, 2
      %v1835 = vadd.f32 %v1833, %v1834
      %v1836 = vrot.slane %v1835, 1
      %v1837 = vadd.f32 %v1835, %v1836
      %v1838 = vmul.f32 %v1112, %v1769
      %v1839 = vmul.f32 %v1114, %v1770
      %v1840 = vmul.f32 %v1116, %v1771
      %v1841 = vmul.f32 %v1118, %v1772
      %v1842 = vmul.f32 %v1120, %v1773
      %v1843 = vmul.f32 %v1122, %v1774
      %v1844 = vmul.f32 %v1124, %v1775
      %v1845 = vmul.f32 %v1126, %v1776
      %v1846 = vadd.f32 %v1838, %v1415
      %v1847 = vadd.f32 %v1839, %v1416
      %v1848 = vadd.f32 %v1840, %v1417
      %v1849 = vadd.f32 %v1841, %v1418
      %v1850 = vadd.f32 %v1842, %v1419
      %v1851 = vadd.f32 %v1843, %v1420
      %v1852 = vadd.f32 %v1844, %v1421
      %v1853 = vadd.f32 %v1845, %v1422
      %1854 = vset.pattern.permute.xlu0 3
      %1855 = vperm.xlu0 %1854, %v1007
      %v1856 = vpop.permute.xlu0 %1855
      %1858 = vset.pattern.permute.xlu0 3
      %1859 = vperm.xlu0 %1858, %v1008
      %v1860 = vpop.permute.xlu0 %1859
      %1862 = vset.pattern.permute.xlu0 3
      %1863 = vperm.xlu0 %1862, %v1009
      %v1864 = vpop.permute.xlu0 %1863
      %1866 = vset.pattern.permute.xlu0 3
      %1867 = vperm.xlu0 %1866, %v1010
      %v1868 = vpop.permute.xlu0 %1867
      %1870 = vset.pattern.permute.xlu0 3
      %1871 = vperm.xlu0 %1870, %v1011
      %v1872 = vpop.permute.xlu0 %1871
      %1874 = vset.pattern.permute.xlu0 3
      %1875 = vperm.xlu0 %1874, %v1012
      %v1876 = vpop.permute.xlu0 %1875
      %1878 = vset.pattern.permute.xlu0 3
      %1879 = vperm.xlu0 %1878, %v1013
      %v1880 = vpop.permute.xlu0 %1879
      %1882 = vset.pattern.permute.xlu0 3
      %1883 = vperm.xlu0 %1882, %v1014
      %v1884 = vpop.permute.xlu0 %1883
      %v1886 = vmul.f32 %v1856, %v1846
      %v1887 = vmul.f32 %v1860, %v1847
      %v1888 = vmul.f32 %v1864, %v1848
      %v1889 = vmul.f32 %v1868, %v1849
      %v1890 = vmul.f32 %v1872, %v1850
      %v1891 = vmul.f32 %v1876, %v1851
      %v1892 = vmul.f32 %v1880, %v1852
      %v1893 = vmul.f32 %v1884, %v1853
      %v1894 = vsel %vm697, %v1886, 0.0
      %v1895 = vsel %vm697, %v1887, 0.0
      %v1896 = vadd.f32 %v1894, %v1895
      %v1897 = vsel %vm697, %v1888, 0.0
      %v1898 = vadd.f32 %v1896, %v1897
      %v1899 = vsel %vm697, %v1889, 0.0
      %v1900 = vadd.f32 %v1898, %v1899
      %v1901 = vsel %vm697, %v1890, 0.0
      %v1902 = vadd.f32 %v1900, %v1901
      %v1903 = vsel %vm697, %v1891, 0.0
      %v1904 = vadd.f32 %v1902, %v1903
      %v1905 = vsel %vm697, %v1892, 0.0
      %v1906 = vadd.f32 %v1904, %v1905
      %v1907 = vsel %vm697, %v1893, 0.0
      %v1908 = vadd.f32 %v1906, %v1907
      %v1909 = vrot.slane %v1908, 4
      %v1910 = vadd.f32 %v1908, %v1909
      %v1911 = vrot.slane %v1910, 2
      %v1912 = vadd.f32 %v1910, %v1911
      %v1913 = vrot.slane %v1912, 1
      %v1914 = vadd.f32 %v1912, %v1913
      %v1915 = vmul.f32 %v1140, %v1846
      %v1916 = vmul.f32 %v1142, %v1847
      %v1917 = vmul.f32 %v1144, %v1848
      %v1918 = vmul.f32 %v1146, %v1849
      %v1919 = vmul.f32 %v1148, %v1850
      %v1920 = vmul.f32 %v1150, %v1851
      %v1921 = vmul.f32 %v1152, %v1852
      %v1922 = vmul.f32 %v1154, %v1853
      %v1923 = vadd.f32 %v1915, %v1459
      %v1924 = vadd.f32 %v1916, %v1460
      %v1925 = vadd.f32 %v1917, %v1461
      %v1926 = vadd.f32 %v1918, %v1462
      %v1927 = vadd.f32 %v1919, %v1463
      %v1928 = vadd.f32 %v1920, %v1464
      %v1929 = vadd.f32 %v1921, %v1465
      %v1930 = vadd.f32 %v1922, %v1466
      %1931 = vset.pattern.permute.xlu0 4
      %1932 = vperm.xlu0 %1931, %v1007
      %v1933 = vpop.permute.xlu0 %1932
      %1935 = vset.pattern.permute.xlu0 4
      %1936 = vperm.xlu0 %1935, %v1008
      %v1937 = vpop.permute.xlu0 %1936
      %1939 = vset.pattern.permute.xlu0 4
      %1940 = vperm.xlu0 %1939, %v1009
      %v1941 = vpop.permute.xlu0 %1940
      %1943 = vset.pattern.permute.xlu0 4
      %1944 = vperm.xlu0 %1943, %v1010
      %v1945 = vpop.permute.xlu0 %1944
      %1947 = vset.pattern.permute.xlu0 4
      %1948 = vperm.xlu0 %1947, %v1011
      %v1949 = vpop.permute.xlu0 %1948
      %1951 = vset.pattern.permute.xlu0 4
      %1952 = vperm.xlu0 %1951, %v1012
      %v1953 = vpop.permute.xlu0 %1952
      %1955 = vset.pattern.permute.xlu0 4
      %1956 = vperm.xlu0 %1955, %v1013
      %v1957 = vpop.permute.xlu0 %1956
      %1959 = vset.pattern.permute.xlu0 4
      %1960 = vperm.xlu0 %1959, %v1014
      %v1961 = vpop.permute.xlu0 %1960
      %v1963 = vmul.f32 %v1933, %v1923
      %v1964 = vmul.f32 %v1937, %v1924
      %v1965 = vmul.f32 %v1941, %v1925
      %v1966 = vmul.f32 %v1945, %v1926
      %v1967 = vmul.f32 %v1949, %v1927
      %v1968 = vmul.f32 %v1953, %v1928
      %v1969 = vmul.f32 %v1957, %v1929
      %v1970 = vmul.f32 %v1961, %v1930
      %v1971 = vsel %vm697, %v1963, 0.0
      %v1972 = vsel %vm697, %v1964, 0.0
      %v1973 = vadd.f32 %v1971, %v1972
      %v1974 = vsel %vm697, %v1965, 0.0
      %v1975 = vadd.f32 %v1973, %v1974
      %v1976 = vsel %vm697, %v1966, 0.0
      %v1977 = vadd.f32 %v1975, %v1976
      %v1978 = vsel %vm697, %v1967, 0.0
      %v1979 = vadd.f32 %v1977, %v1978
      %v1980 = vsel %vm697, %v1968, 0.0
      %v1981 = vadd.f32 %v1979, %v1980
      %v1982 = vsel %vm697, %v1969, 0.0
      %v1983 = vadd.f32 %v1981, %v1982
      %v1984 = vsel %vm697, %v1970, 0.0
      %v1985 = vadd.f32 %v1983, %v1984
      %v1986 = vrot.slane %v1985, 4
      %v1987 = vadd.f32 %v1985, %v1986
      %v1988 = vrot.slane %v1987, 2
      %v1989 = vadd.f32 %v1987, %v1988
      %v1990 = vrot.slane %v1989, 1
      %v1991 = vadd.f32 %v1989, %v1990
      %v1992 = vmul.f32 %v1168, %v1923
      %v1993 = vmul.f32 %v1170, %v1924
      %v1994 = vmul.f32 %v1172, %v1925
      %v1995 = vmul.f32 %v1174, %v1926
      %v1996 = vmul.f32 %v1176, %v1927
      %v1997 = vmul.f32 %v1178, %v1928
      %v1998 = vmul.f32 %v1180, %v1929
      %v1999 = vmul.f32 %v1182, %v1930
      %v2000 = vadd.f32 %v1992, %v1503
      %v2001 = vadd.f32 %v1993, %v1504
      %v2002 = vadd.f32 %v1994, %v1505
      %v2003 = vadd.f32 %v1995, %v1506
      %v2004 = vadd.f32 %v1996, %v1507
      %v2005 = vadd.f32 %v1997, %v1508
      %v2006 = vadd.f32 %v1998, %v1509
      %v2007 = vadd.f32 %v1999, %v1510
      %2008 = vset.pattern.permute.xlu0 5
      %2009 = vperm.xlu0 %2008, %v1007
      %v2010 = vpop.permute.xlu0 %2009
      %2012 = vset.pattern.permute.xlu0 5
      %2013 = vperm.xlu0 %2012, %v1008
      %v2014 = vpop.permute.xlu0 %2013
      %2016 = vset.pattern.permute.xlu0 5
      %2017 = vperm.xlu0 %2016, %v1009
      %v2018 = vpop.permute.xlu0 %2017
      %2020 = vset.pattern.permute.xlu0 5
      %2021 = vperm.xlu0 %2020, %v1010
      %v2022 = vpop.permute.xlu0 %2021
      %2024 = vset.pattern.permute.xlu0 5
      %2025 = vperm.xlu0 %2024, %v1011
      %v2026 = vpop.permute.xlu0 %2025
      %2028 = vset.pattern.permute.xlu0 5
      %2029 = vperm.xlu0 %2028, %v1012
      %v2030 = vpop.permute.xlu0 %2029
      %2032 = vset.pattern.permute.xlu0 5
      %2033 = vperm.xlu0 %2032, %v1013
      %v2034 = vpop.permute.xlu0 %2033
      %2036 = vset.pattern.permute.xlu0 5
      %2037 = vperm.xlu0 %2036, %v1014
      %v2038 = vpop.permute.xlu0 %2037
      %v2040 = vmul.f32 %v2010, %v2000
      %v2041 = vmul.f32 %v2014, %v2001
      %v2042 = vmul.f32 %v2018, %v2002
      %v2043 = vmul.f32 %v2022, %v2003
      %v2044 = vmul.f32 %v2026, %v2004
      %v2045 = vmul.f32 %v2030, %v2005
      %v2046 = vmul.f32 %v2034, %v2006
      %v2047 = vmul.f32 %v2038, %v2007
      %v2048 = vsel %vm697, %v2040, 0.0
      %v2049 = vsel %vm697, %v2041, 0.0
      %v2050 = vadd.f32 %v2048, %v2049
      %v2051 = vsel %vm697, %v2042, 0.0
      %v2052 = vadd.f32 %v2050, %v2051
      %v2053 = vsel %vm697, %v2043, 0.0
      %v2054 = vadd.f32 %v2052, %v2053
      %v2055 = vsel %vm697, %v2044, 0.0
      %v2056 = vadd.f32 %v2054, %v2055
      %v2057 = vsel %vm697, %v2045, 0.0
      %v2058 = vadd.f32 %v2056, %v2057
      %v2059 = vsel %vm697, %v2046, 0.0
      %v2060 = vadd.f32 %v2058, %v2059
      %v2061 = vsel %vm697, %v2047, 0.0
      %v2062 = vadd.f32 %v2060, %v2061
      %v2063 = vrot.slane %v2062, 4
      %v2064 = vadd.f32 %v2062, %v2063
      %v2065 = vrot.slane %v2064, 2
      %v2066 = vadd.f32 %v2064, %v2065
      %v2067 = vrot.slane %v2066, 1
      %v2068 = vadd.f32 %v2066, %v2067
      %v2069 = vmul.f32 %v1196, %v2000
      %v2070 = vmul.f32 %v1198, %v2001
      %v2071 = vmul.f32 %v1200, %v2002
      %v2072 = vmul.f32 %v1202, %v2003
      %v2073 = vmul.f32 %v1204, %v2004
      %v2074 = vmul.f32 %v1206, %v2005
      %v2075 = vmul.f32 %v1208, %v2006
      %v2076 = vmul.f32 %v1210, %v2007
      %v2077 = vadd.f32 %v2069, %v1547
      %v2078 = vadd.f32 %v2070, %v1548
      %v2079 = vadd.f32 %v2071, %v1549
      %v2080 = vadd.f32 %v2072, %v1550
      %v2081 = vadd.f32 %v2073, %v1551
      %v2082 = vadd.f32 %v2074, %v1552
      %v2083 = vadd.f32 %v2075, %v1553
      %v2084 = vadd.f32 %v2076, %v1554
      %2085 = vset.pattern.permute.xlu0 6
      %2086 = vperm.xlu0 %2085, %v1007
      %v2087 = vpop.permute.xlu0 %2086
      %2089 = vset.pattern.permute.xlu0 6
      %2090 = vperm.xlu0 %2089, %v1008
      %v2091 = vpop.permute.xlu0 %2090
      %2093 = vset.pattern.permute.xlu0 6
      %2094 = vperm.xlu0 %2093, %v1009
      %v2095 = vpop.permute.xlu0 %2094
      %2097 = vset.pattern.permute.xlu0 6
      %2098 = vperm.xlu0 %2097, %v1010
      %v2099 = vpop.permute.xlu0 %2098
      %2101 = vset.pattern.permute.xlu0 6
      %2102 = vperm.xlu0 %2101, %v1011
      %v2103 = vpop.permute.xlu0 %2102
      %2105 = vset.pattern.permute.xlu0 6
      %2106 = vperm.xlu0 %2105, %v1012
      %v2107 = vpop.permute.xlu0 %2106
      %2109 = vset.pattern.permute.xlu0 6
      %2110 = vperm.xlu0 %2109, %v1013
      %v2111 = vpop.permute.xlu0 %2110
      %2113 = vset.pattern.permute.xlu0 6
      %2114 = vperm.xlu0 %2113, %v1014
      %v2115 = vpop.permute.xlu0 %2114
      %v2117 = vmul.f32 %v2087, %v2077
      %v2118 = vmul.f32 %v2091, %v2078
      %v2119 = vmul.f32 %v2095, %v2079
      %v2120 = vmul.f32 %v2099, %v2080
      %v2121 = vmul.f32 %v2103, %v2081
      %v2122 = vmul.f32 %v2107, %v2082
      %v2123 = vmul.f32 %v2111, %v2083
      %v2124 = vmul.f32 %v2115, %v2084
      %v2125 = vsel %vm697, %v2117, 0.0
      %v2126 = vsel %vm697, %v2118, 0.0
      %v2127 = vadd.f32 %v2125, %v2126
      %v2128 = vsel %vm697, %v2119, 0.0
      %v2129 = vadd.f32 %v2127, %v2128
      %v2130 = vsel %vm697, %v2120, 0.0
      %v2131 = vadd.f32 %v2129, %v2130
      %v2132 = vsel %vm697, %v2121, 0.0
      %v2133 = vadd.f32 %v2131, %v2132
      %v2134 = vsel %vm697, %v2122, 0.0
      %v2135 = vadd.f32 %v2133, %v2134
      %v2136 = vsel %vm697, %v2123, 0.0
      %v2137 = vadd.f32 %v2135, %v2136
      %v2138 = vsel %vm697, %v2124, 0.0
      %v2139 = vadd.f32 %v2137, %v2138
      %v2140 = vrot.slane %v2139, 4
      %v2141 = vadd.f32 %v2139, %v2140
      %v2142 = vrot.slane %v2141, 2
      %v2143 = vadd.f32 %v2141, %v2142
      %v2144 = vrot.slane %v2143, 1
      %v2145 = vadd.f32 %v2143, %v2144
      %v2146 = vmul.f32 %v1224, %v2077
      %v2147 = vmul.f32 %v1226, %v2078
      %v2148 = vmul.f32 %v1228, %v2079
      %v2149 = vmul.f32 %v1230, %v2080
      %v2150 = vmul.f32 %v1232, %v2081
      %v2151 = vmul.f32 %v1234, %v2082
      %v2152 = vmul.f32 %v1236, %v2083
      %v2153 = vmul.f32 %v1238, %v2084
      %v2154 = vadd.f32 %v2146, %v1591
      %v2155 = vadd.f32 %v2147, %v1592
      %v2156 = vadd.f32 %v2148, %v1593
      %v2157 = vadd.f32 %v2149, %v1594
      %v2158 = vadd.f32 %v2150, %v1595
      %v2159 = vadd.f32 %v2151, %v1596
      %v2160 = vadd.f32 %v2152, %v1597
      %v2161 = vadd.f32 %v2153, %v1598
      %2162 = vset.pattern.permute.xlu0 7
      %2163 = vperm.xlu0 %2162, %v1007
      %v2164 = vpop.permute.xlu0 %2163
      %2166 = vset.pattern.permute.xlu0 7
      %2167 = vperm.xlu0 %2166, %v1008
      %v2168 = vpop.permute.xlu0 %2167
      %2170 = vset.pattern.permute.xlu0 7
      %2171 = vperm.xlu0 %2170, %v1009
      %v2172 = vpop.permute.xlu0 %2171
      %2174 = vset.pattern.permute.xlu0 7
      %2175 = vperm.xlu0 %2174, %v1010
      %v2176 = vpop.permute.xlu0 %2175
      %2178 = vset.pattern.permute.xlu0 7
      %2179 = vperm.xlu0 %2178, %v1011
      %v2180 = vpop.permute.xlu0 %2179
      %2182 = vset.pattern.permute.xlu0 7
      %2183 = vperm.xlu0 %2182, %v1012
      %v2184 = vpop.permute.xlu0 %2183
      %2186 = vset.pattern.permute.xlu0 7
      %2187 = vperm.xlu0 %2186, %v1013
      %v2188 = vpop.permute.xlu0 %2187
      %2190 = vset.pattern.permute.xlu0 7
      %2191 = vperm.xlu0 %2190, %v1014
      %v2192 = vpop.permute.xlu0 %2191
      %v2194 = vmul.f32 %v2164, %v2154
      %v2195 = vmul.f32 %v2168, %v2155
      %v2196 = vmul.f32 %v2172, %v2156
      %v2197 = vmul.f32 %v2176, %v2157
      %v2198 = vmul.f32 %v2180, %v2158
      %v2199 = vmul.f32 %v2184, %v2159
      %v2200 = vmul.f32 %v2188, %v2160
      %v2201 = vmul.f32 %v2192, %v2161
      %v2202 = vsel %vm697, %v2194, 0.0
      %v2203 = vsel %vm697, %v2195, 0.0
      %v2204 = vadd.f32 %v2202, %v2203
      %v2205 = vsel %vm697, %v2196, 0.0
      %v2206 = vadd.f32 %v2204, %v2205
      %v2207 = vsel %vm697, %v2197, 0.0
      %v2208 = vadd.f32 %v2206, %v2207
      %v2209 = vsel %vm697, %v2198, 0.0
      %v2210 = vadd.f32 %v2208, %v2209
      %v2211 = vsel %vm697, %v2199, 0.0
      %v2212 = vadd.f32 %v2210, %v2211
      %v2213 = vsel %vm697, %v2200, 0.0
      %v2214 = vadd.f32 %v2212, %v2213
      %v2215 = vsel %vm697, %v2201, 0.0
      %v2216 = vadd.f32 %v2214, %v2215
      %v2217 = vrot.slane %v2216, 4
      %v2218 = vadd.f32 %v2216, %v2217
      %v2219 = vrot.slane %v2218, 2
      %v2220 = vadd.f32 %v2218, %v2219
      %v2221 = vrot.slane %v2220, 1
      %v2222 = vadd.f32 %v2220, %v2221
      %vm2223 = vcmask 1040384
      %v2224 = vsel %vm2223, %v1683, %v1760
      %vm2225 = vcmask 1041408
      %v2226 = vsel %vm2225, %v2224, %v1837
      %vm2227 = vcmask 1042432
      %v2228 = vsel %vm2227, %v2226, %v1914
      %vm2229 = vcmask 1043456
      %v2230 = vsel %vm2229, %v2228, %v1991
      %vm2231 = vcmask 1044480
      %v2232 = vsel %vm2231, %v2230, %v2068
      %vm2233 = vcmask 1045504
      %v2234 = vsel %vm2233, %v2232, %v2145
      %vm2235 = vcmask 1046528
      %v2236 = vsel %vm2235, %v2234, %v2222
      %2237 = vst.msk [vmem:[#allocation8] sm:$0xff] %vm697, %v2236
      %2238 = vst.msk [vmem:[#allocation4] sm:$0xff] %vm697, %v2154
      %2239 = vst.msk [vmem:[#allocation4 + $0x8] sm:$0xff] %vm697, %v2155
      %2240 = vst.msk [vmem:[#allocation4 + $0x10] sm:$0xff] %vm697, %v2156
      %2241 = vst.msk [vmem:[#allocation4 + $0x18] sm:$0xff] %vm697, %v2157
      %2242 = vst.msk [vmem:[#allocation4 + $0x20] sm:$0xff] %vm697, %v2158
      %2243 = vst.msk [vmem:[#allocation4 + $0x28] sm:$0xff] %vm697, %v2159
      %2244 = vst.msk [vmem:[#allocation4 + $0x30] sm:$0xff] %vm697, %v2160
      %2245 = vst.msk [vmem:[#allocation4 + $0x38] sm:$0xff] %vm697, %v2161
      %v2246 = vld [vmem:[#allocation8] sm:$0xff]
      %v2247 = vld [vmem:[%s11] sm:$0x1]
      %v2249 = vlaneseq
      %v2250 = vshrl.u32 %v2249, 7
      %v2251 = vsub.s32 0, %v2250
      %v2252 = vrot.slane %v2247, %v2251
      %v2254 = vmul.f32 %v746, %v2252
      %v2255 = vadd.f32 %v2246, %v2254
      %v2256 = vsub.f32 0.0, %v689
      %v2257 = vmul.f32 %v2256, 1.442695
      %v2258 = vpow.pop %v2257
      %v2259 = vadd.f32 %v2258, 1.0
      %v2260 = vrcp.pop %v2259
      %v2261 = vmul.f32 %v689, %v2260
      %v2262 = vmul.f32 %v2255, %v2261
      %v2263 = vpack.c.bf16 %v2262, %v2262
      %v2264 = vld [vmem:[%s12] sm:$0xf]
      %v2265 = vld [vmem:[%s12 + $0x4] sm:$0xf]
      %v2266 = vld [vmem:[%s12 + $0x8] sm:$0xf]
      %v2267 = vld [vmem:[%s12 + $0xc] sm:$0xf]
      %v2268 = vld [vmem:[%s12 + $0x10] sm:$0xf]
      %v2269 = vld [vmem:[%s12 + $0x14] sm:$0xf]
      %v2270 = vld [vmem:[%s12 + $0x18] sm:$0xf]
      %v2271 = vld [vmem:[%s12 + $0x1c] sm:$0xf]
      %v2280 = vunpack.c.l.b16 %v2264
      %v2281 = vunpack.c.l.b16 %v2265
      %v2282 = vunpack.c.l.b16 %v2266
      %v2283 = vunpack.c.l.b16 %v2267
      %v2284 = vunpack.c.l.b16 %v2268
      %v2285 = vunpack.c.l.b16 %v2269
      %v2286 = vunpack.c.l.b16 %v2270
      %v2287 = vunpack.c.l.b16 %v2271
      %v2288 = vpack.c.b16 %v2281, %v2280
      %v2289 = vpack.c.b16 %v2283, %v2282
      %v2290 = vpack.c.b16 %v2285, %v2284
      %v2291 = vpack.c.b16 %v2287, %v2286
      %v2297 = vsel %vm697, %v2263, 0
      %2299 = vmatprep.subr.bf16.mxu0 0
      %2300 = vmatpush1.bf16.msra.mxu0 %v2288
      %2301 = vmatprep.subr.bf16.mxu0 0
      %2302 = vmatpush1.bf16.msra.mxu0 %v2289
      %2303 = vmatprep.subr.bf16.mxu0 0
      %2304 = vmatpush1.bf16.msra.mxu0 %v2290
      %2305 = vmatprep.subr.bf16.mxu0 0
      %2306 = vmatpush1.bf16.msra.mxu0 %v2291
      %2307 = vmatprep.subr.bf16.mxu0 0
      %2308 = vmatpush1.bf16.msra.mxu0 0
      %2309 = vmatprep.subr.bf16.mxu0 0
      %2310 = vmatpush1.bf16.msra.mxu0 0
      %2311 = vmatprep.subr.bf16.mxu0 0
      %2312 = vmatpush1.bf16.msra.mxu0 0
      %2313 = vmatprep.subr.bf16.mxu0 0
      %2314 = vmatpush1.bf16.msra.mxu0 0
      %2315 = vmatprep.subr.bf16.mxu0 0
      %2316 = vmatpush1.bf16.msra.mxu0 0
      %2317 = vmatprep.subr.bf16.mxu0 0
      %2318 = vmatpush1.bf16.msra.mxu0 0
      %2319 = vmatprep.subr.bf16.mxu0 0
      %2320 = vmatpush1.bf16.msra.mxu0 0
      %2321 = vmatprep.subr.bf16.mxu0 0
      %2322 = vmatpush1.bf16.msra.mxu0 0
      %2323 = vmatprep.subr.bf16.mxu0 0
      %2324 = vmatpush1.bf16.msra.mxu0 0
      %2325 = vmatprep.subr.bf16.mxu0 0
      %2326 = vmatpush1.bf16.msra.mxu0 0
      %2327 = vmatprep.subr.bf16.mxu0 0
      %2328 = vmatpush1.bf16.msra.mxu0 0
      %2329 = vmatprep.subr.bf16.mxu0 0
      %2330 = vmatpush1.bf16.msra.mxu0 0
      %2331 = vmatprep.mubr.bf16.mxu0 0
      %2332 = vmatmul.mubr.bf16.gmra.mrb[0].mxu0 %v2297
      %v2333 = vpop.f32.mrb[0].mxu0
      %v2334 = vadd.f32 0.0, %v2333
      %v2335 = vpop.f32.mrb[0].mxu0
      %v2336 = vpop.f32.mrb[0].mxu0
      %v2337 = vpop.f32.mrb[0].mxu0
      %2338 = vdwg.mxu0
      %2339 = vst.msk [vmem:[%s533] sm:$0xff] %vm561, %v2334
      %2340 = vst.msk [vmem:[%s540] sm:$0xff] %vm561, %v559
      %p2341 = scmp.lt.s32.totalorder %s30, 1
      %s2342 = scalar_select %p2341, %s30, 1
      %p2343 = scmp.lt.s32.totalorder %s31, 0
      %s2344 = scalar_select %p2343, %s31, 0
      %s2345 = sadd.s32 %s2344, %s2342
      %s2346 = smul.addr %s2345, 8
      %s2347 = scalar_lea.vmem %s13, %s2346
      %p2348 = scmp.lt.s32.totalorder %s30, 1
      %s2349 = scalar_select %p2348, %s30, 1
      %p2350 = scmp.lt.s32.totalorder %s31, 0
      %s2351 = scalar_select %p2350, %s31, 0
      %s2352 = sadd.s32 %s2351, %s2349
      %s2353 = smul.addr %s2352, 8
      %s2354 = scalar_lea.vmem %s14, %s2353
      // Predicated region
      $region77: #{pure_mamba_forward.4} parent=71 // pred_check
        %p2355 = pneg %p345
      $region78: #{pure_mamba_forward.4} parent=71 // pred_check_branch
        %2357 = sbr.rel (%p2355) target = $region80
      $region79: #{pure_mamba_forward.4} parent=71 // pred_region
        _
      $region80: #{pure_mamba_forward.4} parent=71 // pred_fallthru
        _
      // Predicated region
      $region81: #{pure_mamba_forward.4} parent=71 // pred_check
        %p2358 = pneg %p373
      $region82: #{pure_mamba_forward.4} parent=71 // pred_check_branch
        %2360 = sbr.rel (%p2358) target = $region84
      $region83: #{pure_mamba_forward.4} parent=71 // pred_region
        _
      $region84: #{pure_mamba_forward.4} parent=71 // pred_fallthru
        _
    $region72: #{pure_mamba_forward.4} parent=5 // pred_fallthru
      _
    %p2361 = scmp.le.s32.totalorder 2, %s21
    // Predicated region
    $region85: #{pure_mamba_forward.4} parent=5 // pred_check
      %p2362 = pneg %p2361
    $region86: #{pure_mamba_forward.4} parent=5 // pred_check_branch
      %2364 = sbr.rel (%p2362) target = $region88
    $region87: #{pure_mamba_forward.4} parent=5 // pred_region
      %s2365 = ssub.s32 %s21, 2
      // Predicated region
      $region89: #{pure_mamba_forward.4} parent=87 // pred_check
        %p2366 = pneg %p351
      $region90: #{pure_mamba_forward.4} parent=87 // pred_check_branch
        %2368 = sbr.rel (%p2366) target = $region92
      $region91: #{pure_mamba_forward.4} parent=87 // pred_region
        %p2369 = scmp.lt.s32.totalorder %s32, 1
        %s2370 = scalar_select %p2369, %s32, 1
        %p2371 = scmp.lt.s32.totalorder %s33, 0
        %s2372 = scalar_select %p2371, %s33, 0
        %s2373 = sadd.s32 %s2372, %s2370
        %s2374 = smul.addr %s2373, 8
        %s2375 = scalar_lea.vmem %s13, %s2374
      $region92: #{pure_mamba_forward.4} parent=87 // pred_fallthru
        _
      // Predicated region
      $region93: #{pure_mamba_forward.4} parent=87 // pred_check
        %p2376 = pneg %p379
      $region94: #{pure_mamba_forward.4} parent=87 // pred_check_branch
        %2378 = sbr.rel (%p2376) target = $region96
      $region95: #{pure_mamba_forward.4} parent=87 // pred_region
        %p2379 = scmp.lt.s32.totalorder %s32, 1
        %s2380 = scalar_select %p2379, %s32, 1
        %p2381 = scmp.lt.s32.totalorder %s33, 0
        %s2382 = scalar_select %p2381, %s33, 0
        %s2383 = sadd.s32 %s2382, %s2380
        %s2384 = smul.addr %s2383, 8
        %s2385 = scalar_lea.vmem %s14, %s2384
      $region96: #{pure_mamba_forward.4} parent=87 // pred_fallthru
        _
    $region88: #{pure_mamba_forward.4} parent=5 // pred_fallthru
      _
  $region6: #{pure_mamba_forward.4} parent=0 // loop_footer
    %s25 = sadd.s32 1, %s21
  $region7: #{pure_mamba_forward.4} parent=0 // loop_footer_branch
    %20 = sbr.rel target = $region3
  $region8: #{pure_mamba_forward.4} parent=0 // loop_exit
    _

</llo_original>
